<compile_context>
chip_gen: v7x
topology: tpu7x:2x2x1
jax: 0.10.0
libtpu: 0.0.40
codegen_flags: <defaults>
</compile_context>

<pallas_src>
import jax
import jax.numpy as jnp
import numpy as np
from jax import lax
from jax.experimental import pallas as pl
from jax.experimental.pallas import tpu as pltpu

THETA0 = 3
THETA = 2
SMOOTH = 1e-5
K = 2 * THETA0 + 1       # max-pool kernel size = 7
PAD = THETA0             # max-pool padding = 3
NSTAT = 5                # per-class partial sums produced by the kernel

# pooled = maxpool(1 - v) of a {0,1} field is {0,1}, so the weight map takes only
# two values: pooled==0 -> 1.0 ; pooled==1 -> exp(-1/theta^2).  Exact rewrite.
_W1 = float(np.exp(-1.0 / float(THETA * THETA)))
_W1SQ = float(np.exp(-2.0 / float(THETA * THETA)))
_BIG = 1 << 20           # "+inf" sentinel for the min-pool (any value > max class id)


def _boundary_stats_kernel(logits_ref, labp_ref, out_ref):
    """Grid axis 0 iterates over D-tiles of the volume (reduction axis).

    Accumulates per foreground class c = 1..C-1 into SMEM out_ref[c-1, :]:
      [0] sum(u*w * v*w)      (intersection_p)
      [1] sum(u*w)            (sum boundary_u)
      [2] sum(v*w)            (sum boundary_v)
      [3] sum(w)              (-> complement sums via subtraction in the wrapper)
      [4] sum((1-u)(1-v)w^2)  (intersection_r)
    with u = softmax(logits)[:, c], v = onehot(true)[:, c],
         w = exp(-maxpool3d(1-v, 7, stride=1, pad=3)^2 / theta^2).
    """
    t = pl.program_id(0)

    B, C, DT, H, W = logits_ref.shape
    n_fg = C - 1

    # ---- init SMEM accumulators on the first spatial tile -------------------
    @pl.when(t == 0)
    def _():
        for i in range(n_fg):
            for j in range(NSTAT):
                out_ref[i, j] = jnp.float32(0.0)

    # ---- label halo window for this D-tile (labels block stays resident) ----
    d0 = t * DT
    lab_win = labp_ref[:, pl.ds(d0, DT + 2 * PAD), :, :].astype(jnp.int32)
    lab_core = lab_win[:, PAD:PAD + DT, PAD:PAD + H, PAD:PAD + W]   # [B,DT,H,W]

    # ---- softmax over channels, once per tile (not per class) ---------------
    logit = logits_ref[...]                                          # [B,C,DT,H,W]
    m = jnp.max(logit, axis=1, keepdims=True)
    e = jnp.exp(logit - m)
    inv_den = 1.0 / jnp.sum(e, axis=1)                               # [B,DT,H,W]

    # ---- class-independent 7x7x7 min/max label pooling -----------------------
    # maxpool_7(1 - v_c) == 0  <=>  all in-volume labels in the window equal c
    #                          <=>  (window min == c) and (window max == c).
    # The -1 sentinel (out-of-volume) never wins the max (labels >= 0, equivalent
    # to PyTorch's -inf pool padding) and is mapped to +BIG for the min pool.
    lab_max_src = lab_win
    lab_min_src = jnp.where(lab_win < 0, jnp.int32(_BIG), lab_win)

    def _pool(x, op):
        # Separable stride-1 window-7 pool, log-step: shifts 1, 2, 3 per axis.
        for ax, out_sz in ((1, DT), (2, H), (3, W)):
            n = x.shape[ax]
            x = op(lax.slice_in_dim(x, 0, n - 1, axis=ax),
                   lax.slice_in_dim(x, 1, n, axis=ax))               # window 2
            n = x.shape[ax]
            x = op(lax.slice_in_dim(x, 0, n - 2, axis=ax),
                   lax.slice_in_dim(x, 2, n, axis=ax))               # window 4
            x = op(lax.slice_in_dim(x, 0, out_sz, axis=ax),
                   lax.slice_in_dim(x, 3, 3 + out_sz, axis=ax))      # window 7
        return x

    wmax = _pool(lab_max_src, jnp.maximum)                           # [B,DT,H,W]
    wmin = _pool(lab_min_src, jnp.minimum)

    # ---- per-class partial sums (static loop; C is small) -------------------
    for ci in range(n_fg):
        c = ci + 1
        u = e[:, c] * inv_den                     # softmax prob of class c
        is_c = lab_core == c                      # one-hot v as a mask
        interior = jnp.logical_and(wmin == c, wmax == c)
        w = jnp.where(interior, 1.0, _W1)         # exact exp(-pooled^2/theta^2)
        w2 = jnp.where(interior, 1.0, _W1SQ)
        uw = u * w
        vw = jnp.where(is_c, w, 0.0)              # v * w with v in {0,1}
        rc = jnp.where(is_c, 0.0, (1.0 - u) * w2)  # (1-u)(1-v)w^2

        out_ref[ci, 0] += jnp.sum(uw * vw)
        out_ref[ci, 1] += jnp.sum(uw)
        out_ref[ci, 2] += jnp.sum(vw)
        out_ref[ci, 3] += jnp.sum(w)
        out_ref[ci, 4] += jnp.sum(rc)


def _pick_d_tile(D, target=8):
    t = min(D, target)
    while D % t:
        t -= 1
    return t


def boundary_loss(logits, true, *, d_tile=None):
    """Pallas implementation of BoundaryLoss.forward (theta0=3, theta=2, smooth=1e-5)."""
    logits = logits.astype(jnp.float32)
    B, C, D, H, W = logits.shape
    assert C >= 2, "need at least one foreground class"

    if d_tile is None:
        d_tile = _pick_d_tile(D)
    assert D % d_tile == 0, "d_tile must divide D"
    n_tiles = D // d_tile

    # int8 labels, spatially pre-padded with a -1 sentinel (== PyTorch -inf pool
    # padding behaviour, valid because 1 - onehot >= 0).
    labp = jnp.pad(
        true.astype(jnp.int8),
        ((0, 0), (PAD, PAD), (PAD, PAD), (PAD, PAD)),
        constant_values=-1,
    )

    stats = pl.pallas_call(
        _boundary_stats_kernel,
        grid=(n_tiles,),
        in_specs=[
            # logits: tiled along D, pipelined, each HBM byte read exactly once.
            pl.BlockSpec((B, C, d_tile, H, W), lambda t: (0, 0, t, 0, 0)),
            # padded labels: constant block index -> fetched once, kept resident.
            pl.BlockSpec(
                (B, D + 2 * PAD, H + 2 * PAD, W + 2 * PAD),
                lambda t: (0, 0, 0, 0),
            ),
        ],
        out_specs=pl.BlockSpec(memory_space=pltpu.MemorySpace.SMEM),
        out_shape=jax.ShapeDtypeStruct((C - 1, NSTAT), jnp.float32),
        compiler_params=pltpu.CompilerParams(
            # spatial-tile axis is a reduction (accumulates into one SMEM output)
            # TODO(synk): emit per-tile partials to allow "parallel" on v7x megacore.
            dimension_semantics=("arbitrary",),
            vmem_limit_bytes=48 * 1024 * 1024,
        ),
    )(logits, labp)

    s_uvw2 = stats[:, 0]
    s_uw = stats[:, 1]
    s_vw = stats[:, 2]
    s_w = stats[:, 3]
    s_r = stats[:, 4]

    precision = (2.0 * s_uvw2 + SMOOTH) / (s_uw + s_vw + SMOOTH)
    # sum((1-u)w) = sum(w) - sum(uw) ; sum((1-v)w) = sum(w) - sum(vw)   (exact)
    recall = (2.0 * s_r + SMOOTH) / ((s_w - s_uw) + (s_w - s_vw) + SMOOTH)
    pr = precision + recall
    f1 = 2.0 * precision * recall / jnp.where(pr > 0, pr, 1.0)
    per_class = jnp.where(pr > 0, 1.0 - f1, 1.0)
    return jnp.sum(per_class) / (C - 1)


def boundary_loss_ref(logits, true):
    """Pure-JAX reference mirroring the PyTorch module (for verification)."""
    logits = logits.astype(jnp.float32)
    B, C, D, H, W = logits.shape
    prob = jax.nn.softmax(logits, axis=1)
    onehot = jax.nn.one_hot(true, C, dtype=jnp.float32)      # [B, D, H, W, C]
    onehot = jnp.transpose(onehot, (0, 4, 1, 2, 3))           # [B, C, D, H, W]
    loss = 0.0
    for c in range(1, C):
        v = onehot[:, c]
        u = prob[:, c]
        pooled = jax.lax.reduce_window(
            1.0 - v, -jnp.inf, jax.lax.max,
            (1, K, K, K), (1, 1, 1, 1),
            [(0, 0), (PAD, PAD), (PAD, PAD), (PAD, PAD)],
        )
        w = jnp.exp(-(pooled ** 2) / float(THETA ** 2))
        bu, bv = u * w, v * w
        ip = jnp.sum(bu * bv)
        cp = jnp.sum(bu) + jnp.sum(bv)
        precision = (2.0 * ip + SMOOTH) / (cp + SMOOTH)
        buc, bvc = (1.0 - u) * w, (1.0 - v) * w
        ir = jnp.sum(buc * bvc)
        cr = jnp.sum(buc) + jnp.sum(bvc)
        recall = (2.0 * ir + SMOOTH) / (cr + SMOOTH)
        pr = precision + recall
        loss = loss + jnp.where(pr > 0, 1.0 - 2.0 * precision * recall / pr, 1.0)
    return loss / (C - 1)


if __name__ == "__main__":
    # Small deterministic inputs (module __init__ has no learnable params).
    B, C, D, H, W = 2, 4, 8, 16, 16
    key = jax.random.PRNGKey(0)
    k1, k2 = jax.random.split(key)
    logits = jax.random.normal(k1, (B, C, D, H, W), dtype=jnp.float32)
    true = jax.random.randint(k2, (B, D, H, W), 0, C, dtype=jnp.int32)

    # d_tile=4 -> 2 spatial tiles: exercises the D-halo slicing and accumulation.
    out = boundary_loss(logits, true, d_tile=4)
    out = jax.block_until_ready(out)

    ref = jax.block_until_ready(boundary_loss_ref(logits, true))
    np.testing.assert_allclose(np.asarray(out), np.asarray(ref), rtol=1e-3, atol=1e-5)

    print("KERNEL_OK")
</pallas_src>

<mosaic_0001>
module attributes {stable_mosaic.version = 11 : i64} {
  func.func @_boundary_stats_kernel(%arg0: i32, %arg1: memref<2x4x4x16x16xf32, #tpu.memory_space<vmem>>, %arg2: memref<2x14x22x22xi8, #tpu.memory_space<vmem>>, %arg3: memref<3x5xf32, #tpu.memory_space<smem>>) attributes {dimension_semantics = [#tpu.dimension_semantics<arbitrary>], iteration_bounds = array<i64: 2>, scalar_prefetch = 0 : i64, scratch_operands = 0 : i64, tpu.core_type = #tpu.core_type<tc>, window_params = [{transform_indices = @transform_0, window_bounds = array<i64: 2, 4, 4, 16, 16>}, {pipeline_mode = #tpu.pipeline_mode<synchronous>, transform_indices = @transform_1, window_bounds = array<i64: 2, 14, 22, 22>}, {transform_indices = @transform_2, window_bounds = array<i64: 3, 5>}]} {
    %c0_i32 = arith.constant 0 : i32
    %0 = arith.cmpi eq, %arg0, %c0_i32 : i32
    %1 = arith.extui %0 : i1 to i32
    %c0_i32_0 = arith.constant 0 : i32
    %2 = arith.cmpi ne, %1, %c0_i32_0 : i32
    scf.if %2 {
      %cst_109 = arith.constant 0.000000e+00 : f32
      %c0_110 = arith.constant 0 : index
      %c0_111 = arith.constant 0 : index
      %255 = memref.load %arg3[%c0_110, %c0_111] : memref<3x5xf32, #tpu.memory_space<smem>>
      memref.store %cst_109, %arg3[%c0_110, %c0_111] : memref<3x5xf32, #tpu.memory_space<smem>>
      %cst_112 = arith.constant 0.000000e+00 : f32
      %c0_113 = arith.constant 0 : index
      %c1_114 = arith.constant 1 : index
      %256 = memref.load %arg3[%c0_113, %c1_114] : memref<3x5xf32, #tpu.memory_space<smem>>
      memref.store %cst_112, %arg3[%c0_113, %c1_114] : memref<3x5xf32, #tpu.memory_space<smem>>
      %cst_115 = arith.constant 0.000000e+00 : f32
      %c0_116 = arith.constant 0 : index
      %c2_117 = arith.constant 2 : index
      %257 = memref.load %arg3[%c0_116, %c2_117] : memref<3x5xf32, #tpu.memory_space<smem>>
      memref.store %cst_115, %arg3[%c0_116, %c2_117] : memref<3x5xf32, #tpu.memory_space<smem>>
      %cst_118 = arith.constant 0.000000e+00 : f32
      %c0_119 = arith.constant 0 : index
      %c3_120 = arith.constant 3 : index
      %258 = memref.load %arg3[%c0_119, %c3_120] : memref<3x5xf32, #tpu.memory_space<smem>>
      memref.store %cst_118, %arg3[%c0_119, %c3_120] : memref<3x5xf32, #tpu.memory_space<smem>>
      %cst_121 = arith.constant 0.000000e+00 : f32
      %c0_122 = arith.constant 0 : index
      %c4_123 = arith.constant 4 : index
      %259 = memref.load %arg3[%c0_122, %c4_123] : memref<3x5xf32, #tpu.memory_space<smem>>
      memref.store %cst_121, %arg3[%c0_122, %c4_123] : memref<3x5xf32, #tpu.memory_space<smem>>
      %cst_124 = arith.constant 0.000000e+00 : f32
      %c1_125 = arith.constant 1 : index
      %c0_126 = arith.constant 0 : index
      %260 = memref.load %arg3[%c1_125, %c0_126] : memref<3x5xf32, #tpu.memory_space<smem>>
      memref.store %cst_124, %arg3[%c1_125, %c0_126] : memref<3x5xf32, #tpu.memory_space<smem>>
      %cst_127 = arith.constant 0.000000e+00 : f32
      %c1_128 = arith.constant 1 : index
      %c1_129 = arith.constant 1 : index
      %261 = memref.load %arg3[%c1_128, %c1_129] : memref<3x5xf32, #tpu.memory_space<smem>>
      memref.store %cst_127, %arg3[%c1_128, %c1_129] : memref<3x5xf32, #tpu.memory_space<smem>>
      %cst_130 = arith.constant 0.000000e+00 : f32
      %c1_131 = arith.constant 1 : index
      %c2_132 = arith.constant 2 : index
      %262 = memref.load %arg3[%c1_131, %c2_132] : memref<3x5xf32, #tpu.memory_space<smem>>
      memref.store %cst_130, %arg3[%c1_131, %c2_132] : memref<3x5xf32, #tpu.memory_space<smem>>
      %cst_133 = arith.constant 0.000000e+00 : f32
      %c1_134 = arith.constant 1 : index
      %c3_135 = arith.constant 3 : index
      %263 = memref.load %arg3[%c1_134, %c3_135] : memref<3x5xf32, #tpu.memory_space<smem>>
      memref.store %cst_133, %arg3[%c1_134, %c3_135] : memref<3x5xf32, #tpu.memory_space<smem>>
      %cst_136 = arith.constant 0.000000e+00 : f32
      %c1_137 = arith.constant 1 : index
      %c4_138 = arith.constant 4 : index
      %264 = memref.load %arg3[%c1_137, %c4_138] : memref<3x5xf32, #tpu.memory_space<smem>>
      memref.store %cst_136, %arg3[%c1_137, %c4_138] : memref<3x5xf32, #tpu.memory_space<smem>>
      %cst_139 = arith.constant 0.000000e+00 : f32
      %c2_140 = arith.constant 2 : index
      %c0_141 = arith.constant 0 : index
      %265 = memref.load %arg3[%c2_140, %c0_141] : memref<3x5xf32, #tpu.memory_space<smem>>
      memref.store %cst_139, %arg3[%c2_140, %c0_141] : memref<3x5xf32, #tpu.memory_space<smem>>
      %cst_142 = arith.constant 0.000000e+00 : f32
      %c2_143 = arith.constant 2 : index
      %c1_144 = arith.constant 1 : index
      %266 = memref.load %arg3[%c2_143, %c1_144] : memref<3x5xf32, #tpu.memory_space<smem>>
      memref.store %cst_142, %arg3[%c2_143, %c1_144] : memref<3x5xf32, #tpu.memory_space<smem>>
      %cst_145 = arith.constant 0.000000e+00 : f32
      %c2_146 = arith.constant 2 : index
      %c2_147 = arith.constant 2 : index
      %267 = memref.load %arg3[%c2_146, %c2_147] : memref<3x5xf32, #tpu.memory_space<smem>>
      memref.store %cst_145, %arg3[%c2_146, %c2_147] : memref<3x5xf32, #tpu.memory_space<smem>>
      %cst_148 = arith.constant 0.000000e+00 : f32
      %c2_149 = arith.constant 2 : index
      %c3_150 = arith.constant 3 : index
      %268 = memref.load %arg3[%c2_149, %c3_150] : memref<3x5xf32, #tpu.memory_space<smem>>
      memref.store %cst_148, %arg3[%c2_149, %c3_150] : memref<3x5xf32, #tpu.memory_space<smem>>
      %cst_151 = arith.constant 0.000000e+00 : f32
      %c2_152 = arith.constant 2 : index
      %c4_153 = arith.constant 4 : index
      %269 = memref.load %arg3[%c2_152, %c4_153] : memref<3x5xf32, #tpu.memory_space<smem>>
      memref.store %cst_151, %arg3[%c2_152, %c4_153] : memref<3x5xf32, #tpu.memory_space<smem>>
    } else {
    }
    %c4_i32 = arith.constant 4 : i32
    %3 = arith.muli %arg0, %c4_i32 : i32
    %c0 = arith.constant 0 : index
    %4 = arith.index_cast %3 : i32 to index
    %c0_1 = arith.constant 0 : index
    %c0_2 = arith.constant 0 : index
    %5 = vector.load %arg2[%c0, %4, %c0_1, %c0_2] : memref<2x14x22x22xi8, #tpu.memory_space<vmem>>, vector<2x10x22x22xi8>
    %6 = arith.extsi %5 : vector<2x10x22x22xi8> to vector<2x10x22x22xi32>
    %7 = vector.extract_strided_slice %6 {offsets = [0, 3, 3, 3], sizes = [2, 4, 16, 16], strides = [1, 1, 1, 1]} : vector<2x10x22x22xi32> to vector<2x4x16x16xi32>
    %c0_3 = arith.constant 0 : index
    %c0_4 = arith.constant 0 : index
    %c0_5 = arith.constant 0 : index
    %c0_6 = arith.constant 0 : index
    %c0_7 = arith.constant 0 : index
    %8 = vector.load %arg1[%c0_3, %c0_4, %c0_5, %c0_6, %c0_7] : memref<2x4x4x16x16xf32, #tpu.memory_space<vmem>>, vector<2x4x4x16x16xf32>
    %cst = arith.constant dense<0xFF800000> : vector<2x4x16x16xf32>
    %9 = vector.multi_reduction <maximumf>, %8, %cst [1] : vector<2x4x4x16x16xf32> to vector<2x4x16x16xf32>
    %10 = vector.shape_cast %9 : vector<2x4x16x16xf32> to vector<2x1x4x16x16xf32>
    %11 = vector.broadcast %10 : vector<2x1x4x16x16xf32> to vector<2x4x4x16x16xf32>
    %12 = arith.subf %8, %11 : vector<2x4x4x16x16xf32>
    %13 = math.exp %12 : vector<2x4x4x16x16xf32>
    %cst_8 = arith.constant dense<0.000000e+00> : vector<2x4x16x16xf32>
    %14 = vector.multi_reduction <add>, %13, %cst_8 [1] : vector<2x4x4x16x16xf32> to vector<2x4x16x16xf32>
    %cst_9 = arith.constant 1.000000e+00 : f32
    %15 = vector.broadcast %cst_9 : f32 to vector<2x4x16x16xf32>
    %16 = arith.divf %15, %14 : vector<2x4x16x16xf32>
    %c0_i32_10 = arith.constant 0 : i32
    %17 = vector.broadcast %c0_i32_10 : i32 to vector<2x10x22x22xi32>
    %18 = arith.cmpi slt, %6, %17 : vector<2x10x22x22xi32>
    %c1048576_i32 = arith.constant 1048576 : i32
    %19 = vector.broadcast %c1048576_i32 : i32 to vector<2x10x22x22xi32>
    %20 = arith.select %18, %19, %6 : vector<2x10x22x22xi1>, vector<2x10x22x22xi32>
    %21 = vector.extract_strided_slice %6 {offsets = [0, 0, 0, 0], sizes = [2, 9, 22, 22], strides = [1, 1, 1, 1]} : vector<2x10x22x22xi32> to vector<2x9x22x22xi32>
    %22 = vector.extract_strided_slice %6 {offsets = [0, 1, 0, 0], sizes = [2, 9, 22, 22], strides = [1, 1, 1, 1]} : vector<2x10x22x22xi32> to vector<2x9x22x22xi32>
    %23 = arith.maxsi %21, %22 : vector<2x9x22x22xi32>
    %24 = vector.extract_strided_slice %23 {offsets = [0, 0, 0, 0], sizes = [2, 7, 22, 22], strides = [1, 1, 1, 1]} : vector<2x9x22x22xi32> to vector<2x7x22x22xi32>
    %25 = vector.extract_strided_slice %23 {offsets = [0, 2, 0, 0], sizes = [2, 7, 22, 22], strides = [1, 1, 1, 1]} : vector<2x9x22x22xi32> to vector<2x7x22x22xi32>
    %26 = arith.maxsi %24, %25 : vector<2x7x22x22xi32>
    %27 = vector.extract_strided_slice %26 {offsets = [0, 0, 0, 0], sizes = [2, 4, 22, 22], strides = [1, 1, 1, 1]} : vector<2x7x22x22xi32> to vector<2x4x22x22xi32>
    %28 = vector.extract_strided_slice %26 {offsets = [0, 3, 0, 0], sizes = [2, 4, 22, 22], strides = [1, 1, 1, 1]} : vector<2x7x22x22xi32> to vector<2x4x22x22xi32>
    %29 = arith.maxsi %27, %28 : vector<2x4x22x22xi32>
    %30 = vector.extract_strided_slice %29 {offsets = [0, 0, 0, 0], sizes = [2, 4, 21, 22], strides = [1, 1, 1, 1]} : vector<2x4x22x22xi32> to vector<2x4x21x22xi32>
    %31 = vector.extract_strided_slice %29 {offsets = [0, 0, 1, 0], sizes = [2, 4, 21, 22], strides = [1, 1, 1, 1]} : vector<2x4x22x22xi32> to vector<2x4x21x22xi32>
    %32 = arith.maxsi %30, %31 : vector<2x4x21x22xi32>
    %33 = vector.extract_strided_slice %32 {offsets = [0, 0, 0, 0], sizes = [2, 4, 19, 22], strides = [1, 1, 1, 1]} : vector<2x4x21x22xi32> to vector<2x4x19x22xi32>
    %34 = vector.extract_strided_slice %32 {offsets = [0, 0, 2, 0], sizes = [2, 4, 19, 22], strides = [1, 1, 1, 1]} : vector<2x4x21x22xi32> to vector<2x4x19x22xi32>
    %35 = arith.maxsi %33, %34 : vector<2x4x19x22xi32>
    %36 = vector.extract_strided_slice %35 {offsets = [0, 0, 0, 0], sizes = [2, 4, 16, 22], strides = [1, 1, 1, 1]} : vector<2x4x19x22xi32> to vector<2x4x16x22xi32>
    %37 = vector.extract_strided_slice %35 {offsets = [0, 0, 3, 0], sizes = [2, 4, 16, 22], strides = [1, 1, 1, 1]} : vector<2x4x19x22xi32> to vector<2x4x16x22xi32>
    %38 = arith.maxsi %36, %37 : vector<2x4x16x22xi32>
    %39 = vector.extract_strided_slice %38 {offsets = [0, 0, 0, 0], sizes = [2, 4, 16, 21], strides = [1, 1, 1, 1]} : vector<2x4x16x22xi32> to vector<2x4x16x21xi32>
    %40 = vector.extract_strided_slice %38 {offsets = [0, 0, 0, 1], sizes = [2, 4, 16, 21], strides = [1, 1, 1, 1]} : vector<2x4x16x22xi32> to vector<2x4x16x21xi32>
    %41 = arith.maxsi %39, %40 : vector<2x4x16x21xi32>
    %42 = vector.extract_strided_slice %41 {offsets = [0, 0, 0, 0], sizes = [2, 4, 16, 19], strides = [1, 1, 1, 1]} : vector<2x4x16x21xi32> to vector<2x4x16x19xi32>
    %43 = vector.extract_strided_slice %41 {offsets = [0, 0, 0, 2], sizes = [2, 4, 16, 19], strides = [1, 1, 1, 1]} : vector<2x4x16x21xi32> to vector<2x4x16x19xi32>
    %44 = arith.maxsi %42, %43 : vector<2x4x16x19xi32>
    %45 = vector.extract_strided_slice %44 {offsets = [0, 0, 0, 0], sizes = [2, 4, 16, 16], strides = [1, 1, 1, 1]} : vector<2x4x16x19xi32> to vector<2x4x16x16xi32>
    %46 = vector.extract_strided_slice %44 {offsets = [0, 0, 0, 3], sizes = [2, 4, 16, 16], strides = [1, 1, 1, 1]} : vector<2x4x16x19xi32> to vector<2x4x16x16xi32>
    %47 = arith.maxsi %45, %46 : vector<2x4x16x16xi32>
    %48 = vector.extract_strided_slice %20 {offsets = [0, 0, 0, 0], sizes = [2, 9, 22, 22], strides = [1, 1, 1, 1]} : vector<2x10x22x22xi32> to vector<2x9x22x22xi32>
    %49 = vector.extract_strided_slice %20 {offsets = [0, 1, 0, 0], sizes = [2, 9, 22, 22], strides = [1, 1, 1, 1]} : vector<2x10x22x22xi32> to vector<2x9x22x22xi32>
    %50 = arith.minsi %48, %49 : vector<2x9x22x22xi32>
    %51 = vector.extract_strided_slice %50 {offsets = [0, 0, 0, 0], sizes = [2, 7, 22, 22], strides = [1, 1, 1, 1]} : vector<2x9x22x22xi32> to vector<2x7x22x22xi32>
    %52 = vector.extract_strided_slice %50 {offsets = [0, 2, 0, 0], sizes = [2, 7, 22, 22], strides = [1, 1, 1, 1]} : vector<2x9x22x22xi32> to vector<2x7x22x22xi32>
    %53 = arith.minsi %51, %52 : vector<2x7x22x22xi32>
    %54 = vector.extract_strided_slice %53 {offsets = [0, 0, 0, 0], sizes = [2, 4, 22, 22], strides = [1, 1, 1, 1]} : vector<2x7x22x22xi32> to vector<2x4x22x22xi32>
    %55 = vector.extract_strided_slice %53 {offsets = [0, 3, 0, 0], sizes = [2, 4, 22, 22], strides = [1, 1, 1, 1]} : vector<2x7x22x22xi32> to vector<2x4x22x22xi32>
    %56 = arith.minsi %54, %55 : vector<2x4x22x22xi32>
    %57 = vector.extract_strided_slice %56 {offsets = [0, 0, 0, 0], sizes = [2, 4, 21, 22], strides = [1, 1, 1, 1]} : vector<2x4x22x22xi32> to vector<2x4x21x22xi32>
    %58 = vector.extract_strided_slice %56 {offsets = [0, 0, 1, 0], sizes = [2, 4, 21, 22], strides = [1, 1, 1, 1]} : vector<2x4x22x22xi32> to vector<2x4x21x22xi32>
    %59 = arith.minsi %57, %58 : vector<2x4x21x22xi32>
    %60 = vector.extract_strided_slice %59 {offsets = [0, 0, 0, 0], sizes = [2, 4, 19, 22], strides = [1, 1, 1, 1]} : vector<2x4x21x22xi32> to vector<2x4x19x22xi32>
    %61 = vector.extract_strided_slice %59 {offsets = [0, 0, 2, 0], sizes = [2, 4, 19, 22], strides = [1, 1, 1, 1]} : vector<2x4x21x22xi32> to vector<2x4x19x22xi32>
    %62 = arith.minsi %60, %61 : vector<2x4x19x22xi32>
    %63 = vector.extract_strided_slice %62 {offsets = [0, 0, 0, 0], sizes = [2, 4, 16, 22], strides = [1, 1, 1, 1]} : vector<2x4x19x22xi32> to vector<2x4x16x22xi32>
    %64 = vector.extract_strided_slice %62 {offsets = [0, 0, 3, 0], sizes = [2, 4, 16, 22], strides = [1, 1, 1, 1]} : vector<2x4x19x22xi32> to vector<2x4x16x22xi32>
    %65 = arith.minsi %63, %64 : vector<2x4x16x22xi32>
    %66 = vector.extract_strided_slice %65 {offsets = [0, 0, 0, 0], sizes = [2, 4, 16, 21], strides = [1, 1, 1, 1]} : vector<2x4x16x22xi32> to vector<2x4x16x21xi32>
    %67 = vector.extract_strided_slice %65 {offsets = [0, 0, 0, 1], sizes = [2, 4, 16, 21], strides = [1, 1, 1, 1]} : vector<2x4x16x22xi32> to vector<2x4x16x21xi32>
    %68 = arith.minsi %66, %67 : vector<2x4x16x21xi32>
    %69 = vector.extract_strided_slice %68 {offsets = [0, 0, 0, 0], sizes = [2, 4, 16, 19], strides = [1, 1, 1, 1]} : vector<2x4x16x21xi32> to vector<2x4x16x19xi32>
    %70 = vector.extract_strided_slice %68 {offsets = [0, 0, 0, 2], sizes = [2, 4, 16, 19], strides = [1, 1, 1, 1]} : vector<2x4x16x21xi32> to vector<2x4x16x19xi32>
    %71 = arith.minsi %69, %70 : vector<2x4x16x19xi32>
    %72 = vector.extract_strided_slice %71 {offsets = [0, 0, 0, 0], sizes = [2, 4, 16, 16], strides = [1, 1, 1, 1]} : vector<2x4x16x19xi32> to vector<2x4x16x16xi32>
    %73 = vector.extract_strided_slice %71 {offsets = [0, 0, 0, 3], sizes = [2, 4, 16, 16], strides = [1, 1, 1, 1]} : vector<2x4x16x19xi32> to vector<2x4x16x16xi32>
    %74 = arith.minsi %72, %73 : vector<2x4x16x16xi32>
    %75 = vector.extract_strided_slice %13 {offsets = [0, 1, 0, 0, 0], sizes = [2, 1, 4, 16, 16], strides = [1, 1, 1, 1, 1]} : vector<2x4x4x16x16xf32> to vector<2x1x4x16x16xf32>
    %76 = vector.shape_cast %75 : vector<2x1x4x16x16xf32> to vector<2x4x16x16xf32>
    %77 = arith.mulf %76, %16 : vector<2x4x16x16xf32>
    %c1_i32 = arith.constant 1 : i32
    %78 = vector.broadcast %c1_i32 : i32 to vector<2x4x16x16xi32>
    %79 = arith.cmpi eq, %7, %78 : vector<2x4x16x16xi32>
    %c1_i32_11 = arith.constant 1 : i32
    %80 = vector.broadcast %c1_i32_11 : i32 to vector<2x4x16x16xi32>
    %81 = arith.cmpi eq, %74, %80 : vector<2x4x16x16xi32>
    %c1_i32_12 = arith.constant 1 : i32
    %82 = vector.broadcast %c1_i32_12 : i32 to vector<2x4x16x16xi32>
    %83 = arith.cmpi eq, %47, %82 : vector<2x4x16x16xi32>
    %84 = arith.andi %81, %83 : vector<2x4x16x16xi1>
    %cst_13 = arith.constant 1.000000e+00 : f32
    %cst_14 = arith.constant 0.778800785 : f32
    %85 = vector.broadcast %cst_13 : f32 to vector<2x4x16x16xf32>
    %86 = vector.broadcast %cst_14 : f32 to vector<2x4x16x16xf32>
    %87 = arith.select %84, %85, %86 : vector<2x4x16x16xi1>, vector<2x4x16x16xf32>
    %cst_15 = arith.constant 1.000000e+00 : f32
    %cst_16 = arith.constant 0.606530666 : f32
    %88 = vector.broadcast %cst_15 : f32 to vector<2x4x16x16xf32>
    %89 = vector.broadcast %cst_16 : f32 to vector<2x4x16x16xf32>
    %90 = arith.select %84, %88, %89 : vector<2x4x16x16xi1>, vector<2x4x16x16xf32>
    %91 = arith.mulf %77, %87 : vector<2x4x16x16xf32>
    %cst_17 = arith.constant 0.000000e+00 : f32
    %92 = vector.broadcast %cst_17 : f32 to vector<2x4x16x16xf32>
    %93 = arith.select %79, %87, %92 : vector<2x4x16x16xi1>, vector<2x4x16x16xf32>
    %cst_18 = arith.constant 1.000000e+00 : f32
    %94 = vector.broadcast %cst_18 : f32 to vector<2x4x16x16xf32>
    %95 = arith.subf %94, %77 : vector<2x4x16x16xf32>
    %96 = arith.mulf %95, %90 : vector<2x4x16x16xf32>
    %cst_19 = arith.constant 0.000000e+00 : f32
    %97 = vector.broadcast %cst_19 : f32 to vector<2x4x16x16xf32>
    %98 = arith.select %79, %97, %96 : vector<2x4x16x16xi1>, vector<2x4x16x16xf32>
    %c0_20 = arith.constant 0 : index
    %c0_21 = arith.constant 0 : index
    %99 = memref.load %arg3[%c0_20, %c0_21] : memref<3x5xf32, #tpu.memory_space<smem>>
    %100 = arith.mulf %91, %93 : vector<2x4x16x16xf32>
    %101 = vector.shape_cast %100 : vector<2x4x16x16xf32> to vector<1x2x4x16x16xf32>
    %cst_22 = arith.constant dense<0.000000e+00> : vector<1xf32>
    %102 = vector.multi_reduction <add>, %101, %cst_22 [1, 2, 3, 4] : vector<1x2x4x16x16xf32> to vector<1xf32>
    %103 = vector.shape_cast %102 : vector<1xf32> to vector<1x1x1x1x1xf32>
    %104 = vector.extract %103[0, 0, 0, 0, 0] : f32 from vector<1x1x1x1x1xf32>
    %105 = arith.addf %99, %104 : f32
    %c0_23 = arith.constant 0 : index
    %c0_24 = arith.constant 0 : index
    %106 = memref.load %arg3[%c0_23, %c0_24] : memref<3x5xf32, #tpu.memory_space<smem>>
    memref.store %105, %arg3[%c0_23, %c0_24] : memref<3x5xf32, #tpu.memory_space<smem>>
    %c0_25 = arith.constant 0 : index
    %c1 = arith.constant 1 : index
    %107 = memref.load %arg3[%c0_25, %c1] : memref<3x5xf32, #tpu.memory_space<smem>>
    %108 = vector.shape_cast %91 : vector<2x4x16x16xf32> to vector<1x2x4x16x16xf32>
    %cst_26 = arith.constant dense<0.000000e+00> : vector<1xf32>
    %109 = vector.multi_reduction <add>, %108, %cst_26 [1, 2, 3, 4] : vector<1x2x4x16x16xf32> to vector<1xf32>
    %110 = vector.shape_cast %109 : vector<1xf32> to vector<1x1x1x1x1xf32>
    %111 = vector.extract %110[0, 0, 0, 0, 0] : f32 from vector<1x1x1x1x1xf32>
    %112 = arith.addf %107, %111 : f32
    %c0_27 = arith.constant 0 : index
    %c1_28 = arith.constant 1 : index
    %113 = memref.load %arg3[%c0_27, %c1_28] : memref<3x5xf32, #tpu.memory_space<smem>>
    memref.store %112, %arg3[%c0_27, %c1_28] : memref<3x5xf32, #tpu.memory_space<smem>>
    %c0_29 = arith.constant 0 : index
    %c2 = arith.constant 2 : index
    %114 = memref.load %arg3[%c0_29, %c2] : memref<3x5xf32, #tpu.memory_space<smem>>
    %115 = vector.shape_cast %93 : vector<2x4x16x16xf32> to vector<1x2x4x16x16xf32>
    %cst_30 = arith.constant dense<0.000000e+00> : vector<1xf32>
    %116 = vector.multi_reduction <add>, %115, %cst_30 [1, 2, 3, 4] : vector<1x2x4x16x16xf32> to vector<1xf32>
    %117 = vector.shape_cast %116 : vector<1xf32> to vector<1x1x1x1x1xf32>
    %118 = vector.extract %117[0, 0, 0, 0, 0] : f32 from vector<1x1x1x1x1xf32>
    %119 = arith.addf %114, %118 : f32
    %c0_31 = arith.constant 0 : index
    %c2_32 = arith.constant 2 : index
    %120 = memref.load %arg3[%c0_31, %c2_32] : memref<3x5xf32, #tpu.memory_space<smem>>
    memref.store %119, %arg3[%c0_31, %c2_32] : memref<3x5xf32, #tpu.memory_space<smem>>
    %c0_33 = arith.constant 0 : index
    %c3 = arith.constant 3 : index
    %121 = memref.load %arg3[%c0_33, %c3] : memref<3x5xf32, #tpu.memory_space<smem>>
    %122 = vector.shape_cast %87 : vector<2x4x16x16xf32> to vector<1x2x4x16x16xf32>
    %cst_34 = arith.constant dense<0.000000e+00> : vector<1xf32>
    %123 = vector.multi_reduction <add>, %122, %cst_34 [1, 2, 3, 4] : vector<1x2x4x16x16xf32> to vector<1xf32>
    %124 = vector.shape_cast %123 : vector<1xf32> to vector<1x1x1x1x1xf32>
    %125 = vector.extract %124[0, 0, 0, 0, 0] : f32 from vector<1x1x1x1x1xf32>
    %126 = arith.addf %121, %125 : f32
    %c0_35 = arith.constant 0 : index
    %c3_36 = arith.constant 3 : index
    %127 = memref.load %arg3[%c0_35, %c3_36] : memref<3x5xf32, #tpu.memory_space<smem>>
    memref.store %126, %arg3[%c0_35, %c3_36] : memref<3x5xf32, #tpu.memory_space<smem>>
    %c0_37 = arith.constant 0 : index
    %c4 = arith.constant 4 : index
    %128 = memref.load %arg3[%c0_37, %c4] : memref<3x5xf32, #tpu.memory_space<smem>>
    %129 = vector.shape_cast %98 : vector<2x4x16x16xf32> to vector<1x2x4x16x16xf32>
    %cst_38 = arith.constant dense<0.000000e+00> : vector<1xf32>
    %130 = vector.multi_reduction <add>, %129, %cst_38 [1, 2, 3, 4] : vector<1x2x4x16x16xf32> to vector<1xf32>
    %131 = vector.shape_cast %130 : vector<1xf32> to vector<1x1x1x1x1xf32>
    %132 = vector.extract %131[0, 0, 0, 0, 0] : f32 from vector<1x1x1x1x1xf32>
    %133 = arith.addf %128, %132 : f32
    %c0_39 = arith.constant 0 : index
    %c4_40 = arith.constant 4 : index
    %134 = memref.load %arg3[%c0_39, %c4_40] : memref<3x5xf32, #tpu.memory_space<smem>>
    memref.store %133, %arg3[%c0_39, %c4_40] : memref<3x5xf32, #tpu.memory_space<smem>>
    %135 = vector.extract_strided_slice %13 {offsets = [0, 2, 0, 0, 0], sizes = [2, 1, 4, 16, 16], strides = [1, 1, 1, 1, 1]} : vector<2x4x4x16x16xf32> to vector<2x1x4x16x16xf32>
    %136 = vector.shape_cast %135 : vector<2x1x4x16x16xf32> to vector<2x4x16x16xf32>
    %137 = arith.mulf %136, %16 : vector<2x4x16x16xf32>
    %c2_i32 = arith.constant 2 : i32
    %138 = vector.broadcast %c2_i32 : i32 to vector<2x4x16x16xi32>
    %139 = arith.cmpi eq, %7, %138 : vector<2x4x16x16xi32>
    %c2_i32_41 = arith.constant 2 : i32
    %140 = vector.broadcast %c2_i32_41 : i32 to vector<2x4x16x16xi32>
    %141 = arith.cmpi eq, %74, %140 : vector<2x4x16x16xi32>
    %c2_i32_42 = arith.constant 2 : i32
    %142 = vector.broadcast %c2_i32_42 : i32 to vector<2x4x16x16xi32>
    %143 = arith.cmpi eq, %47, %142 : vector<2x4x16x16xi32>
    %144 = arith.andi %141, %143 : vector<2x4x16x16xi1>
    %cst_43 = arith.constant 1.000000e+00 : f32
    %cst_44 = arith.constant 0.778800785 : f32
    %145 = vector.broadcast %cst_43 : f32 to vector<2x4x16x16xf32>
    %146 = vector.broadcast %cst_44 : f32 to vector<2x4x16x16xf32>
    %147 = arith.select %144, %145, %146 : vector<2x4x16x16xi1>, vector<2x4x16x16xf32>
    %cst_45 = arith.constant 1.000000e+00 : f32
    %cst_46 = arith.constant 0.606530666 : f32
    %148 = vector.broadcast %cst_45 : f32 to vector<2x4x16x16xf32>
    %149 = vector.broadcast %cst_46 : f32 to vector<2x4x16x16xf32>
    %150 = arith.select %144, %148, %149 : vector<2x4x16x16xi1>, vector<2x4x16x16xf32>
    %151 = arith.mulf %137, %147 : vector<2x4x16x16xf32>
    %cst_47 = arith.constant 0.000000e+00 : f32
    %152 = vector.broadcast %cst_47 : f32 to vector<2x4x16x16xf32>
    %153 = arith.select %139, %147, %152 : vector<2x4x16x16xi1>, vector<2x4x16x16xf32>
    %cst_48 = arith.constant 1.000000e+00 : f32
    %154 = vector.broadcast %cst_48 : f32 to vector<2x4x16x16xf32>
    %155 = arith.subf %154, %137 : vector<2x4x16x16xf32>
    %156 = arith.mulf %155, %150 : vector<2x4x16x16xf32>
    %cst_49 = arith.constant 0.000000e+00 : f32
    %157 = vector.broadcast %cst_49 : f32 to vector<2x4x16x16xf32>
    %158 = arith.select %139, %157, %156 : vector<2x4x16x16xi1>, vector<2x4x16x16xf32>
    %c1_50 = arith.constant 1 : index
    %c0_51 = arith.constant 0 : index
    %159 = memref.load %arg3[%c1_50, %c0_51] : memref<3x5xf32, #tpu.memory_space<smem>>
    %160 = arith.mulf %151, %153 : vector<2x4x16x16xf32>
    %161 = vector.shape_cast %160 : vector<2x4x16x16xf32> to vector<1x2x4x16x16xf32>
    %cst_52 = arith.constant dense<0.000000e+00> : vector<1xf32>
    %162 = vector.multi_reduction <add>, %161, %cst_52 [1, 2, 3, 4] : vector<1x2x4x16x16xf32> to vector<1xf32>
    %163 = vector.shape_cast %162 : vector<1xf32> to vector<1x1x1x1x1xf32>
    %164 = vector.extract %163[0, 0, 0, 0, 0] : f32 from vector<1x1x1x1x1xf32>
    %165 = arith.addf %159, %164 : f32
    %c1_53 = arith.constant 1 : index
    %c0_54 = arith.constant 0 : index
    %166 = memref.load %arg3[%c1_53, %c0_54] : memref<3x5xf32, #tpu.memory_space<smem>>
    memref.store %165, %arg3[%c1_53, %c0_54] : memref<3x5xf32, #tpu.memory_space<smem>>
    %c1_55 = arith.constant 1 : index
    %c1_56 = arith.constant 1 : index
    %167 = memref.load %arg3[%c1_55, %c1_56] : memref<3x5xf32, #tpu.memory_space<smem>>
    %168 = vector.shape_cast %151 : vector<2x4x16x16xf32> to vector<1x2x4x16x16xf32>
    %cst_57 = arith.constant dense<0.000000e+00> : vector<1xf32>
    %169 = vector.multi_reduction <add>, %168, %cst_57 [1, 2, 3, 4] : vector<1x2x4x16x16xf32> to vector<1xf32>
    %170 = vector.shape_cast %169 : vector<1xf32> to vector<1x1x1x1x1xf32>
    %171 = vector.extract %170[0, 0, 0, 0, 0] : f32 from vector<1x1x1x1x1xf32>
    %172 = arith.addf %167, %171 : f32
    %c1_58 = arith.constant 1 : index
    %c1_59 = arith.constant 1 : index
    %173 = memref.load %arg3[%c1_58, %c1_59] : memref<3x5xf32, #tpu.memory_space<smem>>
    memref.store %172, %arg3[%c1_58, %c1_59] : memref<3x5xf32, #tpu.memory_space<smem>>
    %c1_60 = arith.constant 1 : index
    %c2_61 = arith.constant 2 : index
    %174 = memref.load %arg3[%c1_60, %c2_61] : memref<3x5xf32, #tpu.memory_space<smem>>
    %175 = vector.shape_cast %153 : vector<2x4x16x16xf32> to vector<1x2x4x16x16xf32>
    %cst_62 = arith.constant dense<0.000000e+00> : vector<1xf32>
    %176 = vector.multi_reduction <add>, %175, %cst_62 [1, 2, 3, 4] : vector<1x2x4x16x16xf32> to vector<1xf32>
    %177 = vector.shape_cast %176 : vector<1xf32> to vector<1x1x1x1x1xf32>
    %178 = vector.extract %177[0, 0, 0, 0, 0] : f32 from vector<1x1x1x1x1xf32>
    %179 = arith.addf %174, %178 : f32
    %c1_63 = arith.constant 1 : index
    %c2_64 = arith.constant 2 : index
    %180 = memref.load %arg3[%c1_63, %c2_64] : memref<3x5xf32, #tpu.memory_space<smem>>
    memref.store %179, %arg3[%c1_63, %c2_64] : memref<3x5xf32, #tpu.memory_space<smem>>
    %c1_65 = arith.constant 1 : index
    %c3_66 = arith.constant 3 : index
    %181 = memref.load %arg3[%c1_65, %c3_66] : memref<3x5xf32, #tpu.memory_space<smem>>
    %182 = vector.shape_cast %147 : vector<2x4x16x16xf32> to vector<1x2x4x16x16xf32>
    %cst_67 = arith.constant dense<0.000000e+00> : vector<1xf32>
    %183 = vector.multi_reduction <add>, %182, %cst_67 [1, 2, 3, 4] : vector<1x2x4x16x16xf32> to vector<1xf32>
    %184 = vector.shape_cast %183 : vector<1xf32> to vector<1x1x1x1x1xf32>
    %185 = vector.extract %184[0, 0, 0, 0, 0] : f32 from vector<1x1x1x1x1xf32>
    %186 = arith.addf %181, %185 : f32
    %c1_68 = arith.constant 1 : index
    %c3_69 = arith.constant 3 : index
    %187 = memref.load %arg3[%c1_68, %c3_69] : memref<3x5xf32, #tpu.memory_space<smem>>
    memref.store %186, %arg3[%c1_68, %c3_69] : memref<3x5xf32, #tpu.memory_space<smem>>
    %c1_70 = arith.constant 1 : index
    %c4_71 = arith.constant 4 : index
    %188 = memref.load %arg3[%c1_70, %c4_71] : memref<3x5xf32, #tpu.memory_space<smem>>
    %189 = vector.shape_cast %158 : vector<2x4x16x16xf32> to vector<1x2x4x16x16xf32>
    %cst_72 = arith.constant dense<0.000000e+00> : vector<1xf32>
    %190 = vector.multi_reduction <add>, %189, %cst_72 [1, 2, 3, 4] : vector<1x2x4x16x16xf32> to vector<1xf32>
    %191 = vector.shape_cast %190 : vector<1xf32> to vector<1x1x1x1x1xf32>
    %192 = vector.extract %191[0, 0, 0, 0, 0] : f32 from vector<1x1x1x1x1xf32>
    %193 = arith.addf %188, %192 : f32
    %c1_73 = arith.constant 1 : index
    %c4_74 = arith.constant 4 : index
    %194 = memref.load %arg3[%c1_73, %c4_74] : memref<3x5xf32, #tpu.memory_space<smem>>
    memref.store %193, %arg3[%c1_73, %c4_74] : memref<3x5xf32, #tpu.memory_space<smem>>
    %195 = vector.extract_strided_slice %13 {offsets = [0, 3, 0, 0, 0], sizes = [2, 1, 4, 16, 16], strides = [1, 1, 1, 1, 1]} : vector<2x4x4x16x16xf32> to vector<2x1x4x16x16xf32>
    %196 = vector.shape_cast %195 : vector<2x1x4x16x16xf32> to vector<2x4x16x16xf32>
    %197 = arith.mulf %196, %16 : vector<2x4x16x16xf32>
    %c3_i32 = arith.constant 3 : i32
    %198 = vector.broadcast %c3_i32 : i32 to vector<2x4x16x16xi32>
    %199 = arith.cmpi eq, %7, %198 : vector<2x4x16x16xi32>
    %c3_i32_75 = arith.constant 3 : i32
    %200 = vector.broadcast %c3_i32_75 : i32 to vector<2x4x16x16xi32>
    %201 = arith.cmpi eq, %74, %200 : vector<2x4x16x16xi32>
    %c3_i32_76 = arith.constant 3 : i32
    %202 = vector.broadcast %c3_i32_76 : i32 to vector<2x4x16x16xi32>
    %203 = arith.cmpi eq, %47, %202 : vector<2x4x16x16xi32>
    %204 = arith.andi %201, %203 : vector<2x4x16x16xi1>
    %cst_77 = arith.constant 1.000000e+00 : f32
    %cst_78 = arith.constant 0.778800785 : f32
    %205 = vector.broadcast %cst_77 : f32 to vector<2x4x16x16xf32>
    %206 = vector.broadcast %cst_78 : f32 to vector<2x4x16x16xf32>
    %207 = arith.select %204, %205, %206 : vector<2x4x16x16xi1>, vector<2x4x16x16xf32>
    %cst_79 = arith.constant 1.000000e+00 : f32
    %cst_80 = arith.constant 0.606530666 : f32
    %208 = vector.broadcast %cst_79 : f32 to vector<2x4x16x16xf32>
    %209 = vector.broadcast %cst_80 : f32 to vector<2x4x16x16xf32>
    %210 = arith.select %204, %208, %209 : vector<2x4x16x16xi1>, vector<2x4x16x16xf32>
    %211 = arith.mulf %197, %207 : vector<2x4x16x16xf32>
    %cst_81 = arith.constant 0.000000e+00 : f32
    %212 = vector.broadcast %cst_81 : f32 to vector<2x4x16x16xf32>
    %213 = arith.select %199, %207, %212 : vector<2x4x16x16xi1>, vector<2x4x16x16xf32>
    %cst_82 = arith.constant 1.000000e+00 : f32
    %214 = vector.broadcast %cst_82 : f32 to vector<2x4x16x16xf32>
    %215 = arith.subf %214, %197 : vector<2x4x16x16xf32>
    %216 = arith.mulf %215, %210 : vector<2x4x16x16xf32>
    %cst_83 = arith.constant 0.000000e+00 : f32
    %217 = vector.broadcast %cst_83 : f32 to vector<2x4x16x16xf32>
    %218 = arith.select %199, %217, %216 : vector<2x4x16x16xi1>, vector<2x4x16x16xf32>
    %c2_84 = arith.constant 2 : index
    %c0_85 = arith.constant 0 : index
    %219 = memref.load %arg3[%c2_84, %c0_85] : memref<3x5xf32, #tpu.memory_space<smem>>
    %220 = arith.mulf %211, %213 : vector<2x4x16x16xf32>
    %221 = vector.shape_cast %220 : vector<2x4x16x16xf32> to vector<1x2x4x16x16xf32>
    %cst_86 = arith.constant dense<0.000000e+00> : vector<1xf32>
    %222 = vector.multi_reduction <add>, %221, %cst_86 [1, 2, 3, 4] : vector<1x2x4x16x16xf32> to vector<1xf32>
    %223 = vector.shape_cast %222 : vector<1xf32> to vector<1x1x1x1x1xf32>
    %224 = vector.extract %223[0, 0, 0, 0, 0] : f32 from vector<1x1x1x1x1xf32>
    %225 = arith.addf %219, %224 : f32
    %c2_87 = arith.constant 2 : index
    %c0_88 = arith.constant 0 : index
    %226 = memref.load %arg3[%c2_87, %c0_88] : memref<3x5xf32, #tpu.memory_space<smem>>
    memref.store %225, %arg3[%c2_87, %c0_88] : memref<3x5xf32, #tpu.memory_space<smem>>
    %c2_89 = arith.constant 2 : index
    %c1_90 = arith.constant 1 : index
    %227 = memref.load %arg3[%c2_89, %c1_90] : memref<3x5xf32, #tpu.memory_space<smem>>
    %228 = vector.shape_cast %211 : vector<2x4x16x16xf32> to vector<1x2x4x16x16xf32>
    %cst_91 = arith.constant dense<0.000000e+00> : vector<1xf32>
    %229 = vector.multi_reduction <add>, %228, %cst_91 [1, 2, 3, 4] : vector<1x2x4x16x16xf32> to vector<1xf32>
    %230 = vector.shape_cast %229 : vector<1xf32> to vector<1x1x1x1x1xf32>
    %231 = vector.extract %230[0, 0, 0, 0, 0] : f32 from vector<1x1x1x1x1xf32>
    %232 = arith.addf %227, %231 : f32
    %c2_92 = arith.constant 2 : index
    %c1_93 = arith.constant 1 : index
    %233 = memref.load %arg3[%c2_92, %c1_93] : memref<3x5xf32, #tpu.memory_space<smem>>
    memref.store %232, %arg3[%c2_92, %c1_93] : memref<3x5xf32, #tpu.memory_space<smem>>
    %c2_94 = arith.constant 2 : index
    %c2_95 = arith.constant 2 : index
    %234 = memref.load %arg3[%c2_94, %c2_95] : memref<3x5xf32, #tpu.memory_space<smem>>
    %235 = vector.shape_cast %213 : vector<2x4x16x16xf32> to vector<1x2x4x16x16xf32>
    %cst_96 = arith.constant dense<0.000000e+00> : vector<1xf32>
    %236 = vector.multi_reduction <add>, %235, %cst_96 [1, 2, 3, 4] : vector<1x2x4x16x16xf32> to vector<1xf32>
    %237 = vector.shape_cast %236 : vector<1xf32> to vector<1x1x1x1x1xf32>
    %238 = vector.extract %237[0, 0, 0, 0, 0] : f32 from vector<1x1x1x1x1xf32>
    %239 = arith.addf %234, %238 : f32
    %c2_97 = arith.constant 2 : index
    %c2_98 = arith.constant 2 : index
    %240 = memref.load %arg3[%c2_97, %c2_98] : memref<3x5xf32, #tpu.memory_space<smem>>
    memref.store %239, %arg3[%c2_97, %c2_98] : memref<3x5xf32, #tpu.memory_space<smem>>
    %c2_99 = arith.constant 2 : index
    %c3_100 = arith.constant 3 : index
    %241 = memref.load %arg3[%c2_99, %c3_100] : memref<3x5xf32, #tpu.memory_space<smem>>
    %242 = vector.shape_cast %207 : vector<2x4x16x16xf32> to vector<1x2x4x16x16xf32>
    %cst_101 = arith.constant dense<0.000000e+00> : vector<1xf32>
    %243 = vector.multi_reduction <add>, %242, %cst_101 [1, 2, 3, 4] : vector<1x2x4x16x16xf32> to vector<1xf32>
    %244 = vector.shape_cast %243 : vector<1xf32> to vector<1x1x1x1x1xf32>
    %245 = vector.extract %244[0, 0, 0, 0, 0] : f32 from vector<1x1x1x1x1xf32>
    %246 = arith.addf %241, %245 : f32
    %c2_102 = arith.constant 2 : index
    %c3_103 = arith.constant 3 : index
    %247 = memref.load %arg3[%c2_102, %c3_103] : memref<3x5xf32, #tpu.memory_space<smem>>
    memref.store %246, %arg3[%c2_102, %c3_103] : memref<3x5xf32, #tpu.memory_space<smem>>
    %c2_104 = arith.constant 2 : index
    %c4_105 = arith.constant 4 : index
    %248 = memref.load %arg3[%c2_104, %c4_105] : memref<3x5xf32, #tpu.memory_space<smem>>
    %249 = vector.shape_cast %218 : vector<2x4x16x16xf32> to vector<1x2x4x16x16xf32>
    %cst_106 = arith.constant dense<0.000000e+00> : vector<1xf32>
    %250 = vector.multi_reduction <add>, %249, %cst_106 [1, 2, 3, 4] : vector<1x2x4x16x16xf32> to vector<1xf32>
    %251 = vector.shape_cast %250 : vector<1xf32> to vector<1x1x1x1x1xf32>
    %252 = vector.extract %251[0, 0, 0, 0, 0] : f32 from vector<1x1x1x1x1xf32>
    %253 = arith.addf %248, %252 : f32
    %c2_107 = arith.constant 2 : index
    %c4_108 = arith.constant 4 : index
    %254 = memref.load %arg3[%c2_107, %c4_108] : memref<3x5xf32, #tpu.memory_space<smem>>
    memref.store %253, %arg3[%c2_107, %c4_108] : memref<3x5xf32, #tpu.memory_space<smem>>
    return
  }
  func.func @transform_0(%arg0: i32) -> (i32, i32, i32, i32, i32) {
    %c0_i32 = arith.constant 0 : i32
    %c0_i32_0 = arith.constant 0 : i32
    %c0_i32_1 = arith.constant 0 : i32
    %c0_i32_2 = arith.constant 0 : i32
    %c0_i32_3 = arith.constant 0 : i32
    return %c0_i32, %c0_i32_0, %arg0, %c0_i32_1, %c0_i32_2 : i32, i32, i32, i32, i32
  }
  func.func @transform_1(%arg0: i32) -> (i32, i32, i32, i32) {
    %c0_i32 = arith.constant 0 : i32
    %c0_i32_0 = arith.constant 0 : i32
    %c0_i32_1 = arith.constant 0 : i32
    %c0_i32_2 = arith.constant 0 : i32
    %c0_i32_3 = arith.constant 0 : i32
    return %c0_i32, %c0_i32_0, %c0_i32_1, %c0_i32_2 : i32, i32, i32, i32
  }
  func.func @transform_2(%arg0: i32) -> (i32, i32) {
    %c0_i32 = arith.constant 0 : i32
    %c0_i32_0 = arith.constant 0 : i32
    %c0_i32_1 = arith.constant 0 : i32
    return %c0_i32, %c0_i32_0 : i32, i32
  }
}

</mosaic_0001>

<llo_original>
// kernel: tpu_custom_call.1
$region0: #{tpu_custom_call.1}
  #allocation0 [shape = 'u32[]', space=smem, size = 0x4, offset = 0x4, fixed_abs, tag = 'smem constant byte address 0x4 - core index']
  #allocation1 [shape = 'u32[144,128]{1,0:T(1,128)}', space=vmem, size = 0x12000, scoped, tag = 'internal scratch']
  #allocation8 [shape = 's32[]', space=sflag, size = 0x4, offset = 0, fixed_abs, tag = 'sflag constant byte address 0x0 - dummy sync flag']
  %s0 = inlined_call_operand.hbm [shape: f32[2,4,8,16,16], index: 0, kind: input, shape index: {}]
  %s1 = inlined_call_operand.hbm [shape: s8[2,14,22,22], index: 1, kind: input, shape index: {}]
  %s2 = inlined_call_operand.hbm [shape: f32[3,5], index: 2, kind: output, shape index: {}]
  %s3 = sld [smem:[#allocation0]]
  $region53: #{tpu_custom_call.1} parent=0
    _
  %s5 = ssub.s32 1, %s3
  %s6 = scalar_select 0, %s5, %s3
  $region1: #{tpu_custom_call.1} parent=0
    #allocation2 [shape = 'u8[524288]{0}', space=vmem, size = 0x80000, scoped, tag = 'input window, operand 0']
    #allocation3 [shape = 's32[2]{0}', space=sflag, size = 0x8, scoped, tag = 'scoped memory for tpu_custom_call.1']
    #allocation4 [shape = 's32[2]{0}', space=sflag, size = 0x8, scoped, tag = 'scoped memory for tpu_custom_call.1']
    #allocation5 [shape = 'u8[86016]{0}', space=vmem, size = 0x15000, scoped, tag = 'input window, operand 1, single buffered']
    #allocation6 [shape = 's32[1]{0}', space=sflag, size = 0x4, scoped, tag = 'scoped memory for tpu_custom_call.1']
    #allocation7 [shape = 'u8[2048]{0}', space=smem, size = 0x800, scoped, tag = 'output window, operand 0, single buffered']
    %7 = vsyncpa [#allocation3], 0
    %s8 = scalar_lea.sflag [#allocation3], 1
    %9 = vsyncpa %s8, 0
    %10 = vsyncpa [#allocation6], 0
    %11 = vsyncpa [#allocation4], 0
    loop: start=0, step=1, limit=4
    $region2: #{tpu_custom_call.1} parent=1 // loop_pre_header
      _
    $region3: #{tpu_custom_call.1} parent=1 // loop_header
      %s13 = sphi 0, %s17
      %p14 = scmp.ge.s32.totalorder %s13, 4
      %s23 = sphi 0, %s25
      %s26 = sphi 0, %s23
      %s27 = sphi 0, %s26
      %s43 = sphi 0, %s27
      %s47 = sphi 0, %s47
      %s49 = sphi 0, %s47
      %s50 = sphi 0, %s49
      %s64 = sphi 0, %s50
      %s68 = sphi 0, %s68
      %s70 = sphi 0, %s68
      %s71 = sphi 0, %s70
      %s85 = sphi 0, %s71
    $region4: #{tpu_custom_call.1} parent=1 // loop_header_branch
      %16 = sbr.rel (%p14) target = $region8
    $region5: #{tpu_custom_call.1} parent=1 // loop_body
      %s18 = ssub.s32 %s13, 1
      %s19 = ssub.s32 %s13, 2
      %s20 = sadd.s32 %s13, 1
      %s21 = ssub.s32 %s13, %s20
      %p22 = scmp.eq.s32.totalorder %s21, 0
      %s24 = sadd.s32 %s23, 1
      %s25 = scalar_select %p22, %s23, %s24
      %p28 = pneg %p22
      %p29 = scmp.eq.s32.totalorder %s13, 1
      %p30 = por %p28, %p29
      %p31 = scmp.ne.s32.totalorder %s23, %s26
      %p32 = scmp.eq.s32.totalorder %s13, 0
      %p33 = por %p31, %p32
      %p34 = scmp.ne.s32.totalorder %s23, %s26
      %p35 = scmp.eq.s32.totalorder %s18, 1
      %p36 = por %p34, %p35
      %p37 = scmp.ne.s32.totalorder %s26, %s27
      %p38 = scmp.eq.s32.totalorder %s18, 0
      %p39 = por %p37, %p38
      %p40 = scmp.ne.s32.totalorder %s26, %s27
      %p41 = scmp.eq.s32.totalorder %s19, 1
      %p42 = por %p40, %p41
      %p44 = scmp.ne.s32.totalorder %s27, %s43
      %p45 = scmp.eq.s32.totalorder %s19, 0
      %p46 = por %p44, %p45
      %s48 = sadd.s32 %s47, 1
      %p51 = scmp.eq.s32.totalorder %s13, 1
      %p52 = scmp.ne.s32.totalorder %s47, %s49
      %p53 = scmp.eq.s32.totalorder %s13, 0
      %p54 = por %p52, %p53
      %p55 = scmp.ne.s32.totalorder %s47, %s49
      %p56 = scmp.eq.s32.totalorder %s18, 1
      %p57 = por %p55, %p56
      %p58 = scmp.ne.s32.totalorder %s49, %s50
      %p59 = scmp.eq.s32.totalorder %s18, 0
      %p60 = por %p58, %p59
      %p61 = scmp.ne.s32.totalorder %s49, %s50
      %p62 = scmp.eq.s32.totalorder %s19, 1
      %p63 = por %p61, %p62
      %p65 = scmp.ne.s32.totalorder %s50, %s64
      %p66 = scmp.eq.s32.totalorder %s19, 0
      %p67 = por %p65, %p66
      %s69 = sadd.s32 %s68, 1
      %p72 = scmp.eq.s32.totalorder %s13, 1
      %p73 = scmp.ne.s32.totalorder %s68, %s70
      %p74 = scmp.eq.s32.totalorder %s13, 0
      %p75 = por %p73, %p74
      %p76 = scmp.ne.s32.totalorder %s68, %s70
      %p77 = scmp.eq.s32.totalorder %s18, 1
      %p78 = por %p76, %p77
      %p79 = scmp.ne.s32.totalorder %s70, %s71
      %p80 = scmp.eq.s32.totalorder %s18, 0
      %p81 = por %p79, %p80
      %p82 = scmp.ne.s32.totalorder %s70, %s71
      %p83 = scmp.eq.s32.totalorder %s19, 1
      %p84 = por %p82, %p83
      %p86 = scmp.ne.s32.totalorder %s71, %s85
      %p87 = scmp.eq.s32.totalorder %s19, 0
      %p88 = por %p86, %p87
      %p89 = scmp.le.s32.totalorder 1, %s13
      %p90 = scmp.lt.s32.totalorder %s13, 3
      %p91 = pnand %p89, %p90
      %p92 = pneg %p91
      // Predicated region
      $region9: #{tpu_custom_call.1} parent=5 // pred_check
        _
      $region10: #{tpu_custom_call.1} parent=5 // pred_check_branch
        %94 = sbr.rel (%p91) target = $region12
      $region11: #{tpu_custom_call.1} parent=5 // pred_region
        %s95 = ssub.s32 %s13, 1
        // Predicated region
        $region13: #{tpu_custom_call.1} parent=11 // pred_check
          %p96 = pneg %p60
        $region14: #{tpu_custom_call.1} parent=11 // pred_check_branch
          %98 = sbr.rel (%p96) target = $region16
        $region15: #{tpu_custom_call.1} parent=11 // pred_region
          %s100 = ssub.s32 2688, 2688
          %101 = vsyncadd [#allocation6], %s100
          %s102 = sshll.u32 [#allocation5], 4
          %s103 = int_to_ptr.vmem [resolvable:$true] %s102
          %108 = dma.hbm_to_vmem [thread:$0]  %s1, 2688, %s103, [#allocation6], 32, 32, 2
        $region16: #{tpu_custom_call.1} parent=11 // pred_fallthru
          _
      $region12: #{tpu_custom_call.1} parent=5 // pred_fallthru
        _
      %p109 = scmp.lt.s32.totalorder %s13, 2
      // Predicated region
      $region17: #{tpu_custom_call.1} parent=5 // pred_check
        %p110 = pneg %p109
      $region18: #{tpu_custom_call.1} parent=5 // pred_check_branch
        %112 = sbr.rel (%p110) target = $region20
      $region19: #{tpu_custom_call.1} parent=5 // pred_region
        // Predicated region
        $region21: #{tpu_custom_call.1} parent=19 // pred_check
          %p113 = pneg %p33
        $region22: #{tpu_custom_call.1} parent=19 // pred_check_branch
          %115 = sbr.rel (%p113) target = $region24
        $region23: #{tpu_custom_call.1} parent=19 // pred_region
          #allocation9 [shape = 'u32[6]{0}', space=smem, size = 0x18, scoped, tag = 'DMA stride descriptor']
          %s116 = sand.u32 %s23, 1
          %s117 = scalar_lea.sflag [#allocation3], %s116
          %s118 = sand.u32 %s23, 1
          %s119 = smul.addr %s118, 512
          %s120 = scalar_lea.vmem [#allocation2], %s119
          %s121 = smul.u32 4, %s13
          %s123 = ssub.s32 8192, 8192
          %124 = vsyncadd %s117, %s123
          %s125 = smul.addr %s121, 2
          %s126 = smul.addr %s125, 128
          %s127 = scalar_lea.hbm %s0, %s126
          %s129 = sshll.u32 1, 14
          %s130 = sxor.u32 4294967295, %s129
          %s132 = sld [smem:[#allocation0]]
          %s133 = sadd.s32 2, %s132
          %s135 = sshll.u32 7, 26
          %s136 = sxor.u32 4294967295, %s135
          %s137 = sand.u32 0, %s136
          %s138 = sshll.u32 %s133, 26
          %s139 = sor.u32 %s137, %s138
          %s140 = sshll.u32 %s120, 4
          %s141 = int_to_ptr.vmem [resolvable:$true] %s140
          %147 = sst [smem:[#allocation9]] 2048
          %s148 = scalar_lea.smem [#allocation9], 1
          %149 = sst [smem:[%s148]] 1024
          %s150 = scalar_lea.smem [#allocation9], 2
          %151 = sst [smem:[%s150]] 8
          %s152 = scalar_lea.smem [#allocation9], 3
          %153 = sst [smem:[%s152]] 128
          %s154 = scalar_lea.smem [#allocation9], 4
          %155 = sst [smem:[%s154]] 128
          %s156 = scalar_lea.smem [#allocation9], 5
          %157 = sst [smem:[%s156]] 8
          %159 = dma.general %s127, 8192, %s141, %s117, [#allocation8], [#allocation9], %s139, 0
        $region24: #{tpu_custom_call.1} parent=19 // pred_fallthru
          _
      $region20: #{tpu_custom_call.1} parent=5 // pred_fallthru
        _
      %p160 = scmp.le.s32.totalorder 1, %s13
      %p161 = scmp.lt.s32.totalorder %s13, 3
      %p162 = pnand %p160, %p161
      %p163 = pneg %p162
      // Predicated region
      $region25: #{tpu_custom_call.1} parent=5 // pred_check
        _
      $region26: #{tpu_custom_call.1} parent=5 // pred_check_branch
        %165 = sbr.rel (%p162) target = $region28
      $region27: #{tpu_custom_call.1} parent=5 // pred_region
        %s166 = ssub.s32 %s13, 1
        %s167 = sand.u32 %s26, 1
        %s168 = scalar_lea.sflag [#allocation3], %s167
        %s169 = sand.u32 %s26, 1
        %s170 = smul.addr %s169, 512
        %s171 = scalar_lea.vmem [#allocation2], %s170
        // Predicated region
        $region29: #{tpu_custom_call.1} parent=27 // pred_check
          %p172 = pneg %p39
        $region30: #{tpu_custom_call.1} parent=27 // pred_check_branch
          %174 = sbr.rel (%p172) target = $region32
        $region31: #{tpu_custom_call.1} parent=27 // pred_region
          %175 = dma.done %s168, 8192
        $region32: #{tpu_custom_call.1} parent=27 // pred_fallthru
          _
        // Predicated region
        $region33: #{tpu_custom_call.1} parent=27 // pred_check
          %p176 = pneg %p60
        $region34: #{tpu_custom_call.1} parent=27 // pred_check_branch
          %178 = sbr.rel (%p176) target = $region36
        $region35: #{tpu_custom_call.1} parent=27 // pred_region
          %179 = dma.done [#allocation6], 2688
        $region36: #{tpu_custom_call.1} parent=27 // pred_fallthru
          _
        %s180 = sand.u32 %s26, 1
        %s181 = scalar_lea.sflag [#allocation3], %s180
        %s182 = sand.u32 %s26, 1
        %s183 = smul.addr %s182, 512
        %s184 = scalar_lea.vmem [#allocation2], %s183
        %p185 = pneg %p39
        %p186 = pneg %p36
        %p187 = pneg %p60
        %p188 = pneg %p57
        %p189 = pneg %p81
        %p190 = pneg %p78
        %s191 = smul.u32 4, %s18
        %p192 = scmp.eq.s32.totalorder %s18, 0
        // Predicated region
        $region37: #{tpu_custom_call.1} parent=27 // pred_check
          %p193 = pneg %p192
        $region38: #{tpu_custom_call.1} parent=27 // pred_check_branch
          %195 = sbr.rel (%p193) target = $region40
        $region39: #{tpu_custom_call.1} parent=27 // pred_region
          %s196 = scalar_lea.smem [#allocation7], 0
          %197 = sst [smem:[%s196]] 0.0
          %s198 = scalar_lea.smem [#allocation7], 1
          %199 = sst [smem:[%s198]] 0.0
          %s200 = scalar_lea.smem [#allocation7], 2
          %201 = sst [smem:[%s200]] 0.0
          %s202 = scalar_lea.smem [#allocation7], 3
          %203 = sst [smem:[%s202]] 0.0
          %s204 = scalar_lea.smem [#allocation7], 4
          %205 = sst [smem:[%s204]] 0.0
          %s206 = scalar_lea.smem [#allocation7], 128
          %207 = sst [smem:[%s206]] 0.0
          %s208 = scalar_lea.smem [#allocation7], 129
          %209 = sst [smem:[%s208]] 0.0
          %s210 = scalar_lea.smem [#allocation7], 130
          %211 = sst [smem:[%s210]] 0.0
          %s212 = scalar_lea.smem [#allocation7], 131
          %213 = sst [smem:[%s212]] 0.0
          %s214 = scalar_lea.smem [#allocation7], 132
          %215 = sst [smem:[%s214]] 0.0
          %s216 = scalar_lea.smem [#allocation7], 256
          %217 = sst [smem:[%s216]] 0.0
          %s218 = scalar_lea.smem [#allocation7], 257
          %219 = sst [smem:[%s218]] 0.0
          %s220 = scalar_lea.smem [#allocation7], 258
          %221 = sst [smem:[%s220]] 0.0
          %s222 = scalar_lea.smem [#allocation7], 259
          %223 = sst [smem:[%s222]] 0.0
          %s224 = scalar_lea.smem [#allocation7], 260
          %225 = sst [smem:[%s224]] 0.0
        $region40: #{tpu_custom_call.1} parent=27 // pred_fallthru
          _
        %s226 = smul.u32 %s18, 4
        %s227 = smul.u32 %s226, 3
        %s228 = smul.addr %s227, 2
        %s229 = scalar_lea.vmem [#allocation5], %s228
        %v230 = vld [vmem:[%s229] sm:$0x3]
        %v231 = vld [vmem:[%s229 + $0x2] sm:$0x3]
        %v232 = vld [vmem:[%s229 + $0x4] sm:$0x3]
        %v233 = vld [vmem:[%s229 + $0x6] sm:$0x3]
        %v234 = vld [vmem:[%s229 + $0x8] sm:$0x3]
        %v235 = vld [vmem:[%s229 + $0xa] sm:$0x3]
        %v236 = vld [vmem:[%s229 + $0xc] sm:$0x3]
        %v237 = vld [vmem:[%s229 + $0xe] sm:$0x3]
        %v238 = vld [vmem:[%s229 + $0x10] sm:$0x3]
        %v239 = vld [vmem:[%s229 + $0x12] sm:$0x3]
        %v240 = vld [vmem:[%s229 + $0x14] sm:$0x3]
        %v241 = vld [vmem:[%s229 + $0x16] sm:$0x3]
        %v242 = vld [vmem:[%s229 + $0x18] sm:$0x3]
        %v243 = vld [vmem:[%s229 + $0x1a] sm:$0x3]
        %v244 = vld [vmem:[%s229 + $0x1c] sm:$0x3]
        %v245 = vld [vmem:[%s229 + $0x1e] sm:$0x3]
        %v246 = vld [vmem:[%s229 + $0x20] sm:$0x3]
        %v247 = vld [vmem:[%s229 + $0x22] sm:$0x3]
        %v248 = vld [vmem:[%s229 + $0x24] sm:$0x3]
        %v249 = vld [vmem:[%s229 + $0x26] sm:$0x3]
        %v250 = vld [vmem:[%s229 + $0x28] sm:$0x3]
        %v251 = vld [vmem:[%s229 + $0x2a] sm:$0x3]
        %v252 = vld [vmem:[%s229 + $0x2c] sm:$0x3]
        %v253 = vld [vmem:[%s229 + $0x2e] sm:$0x3]
        %v254 = vld [vmem:[%s229 + $0x30] sm:$0x3]
        %v255 = vld [vmem:[%s229 + $0x32] sm:$0x3]
        %v256 = vld [vmem:[%s229 + $0x34] sm:$0x3]
        %v257 = vld [vmem:[%s229 + $0x36] sm:$0x3]
        %v258 = vld [vmem:[%s229 + $0x38] sm:$0x3]
        %v259 = vld [vmem:[%s229 + $0x3a] sm:$0x3]
        %v260 = vld [vmem:[%s229 + $0x54] sm:$0x3]
        %v261 = vld [vmem:[%s229 + $0x56] sm:$0x3]
        %v262 = vld [vmem:[%s229 + $0x58] sm:$0x3]
        %v263 = vld [vmem:[%s229 + $0x5a] sm:$0x3]
        %v264 = vld [vmem:[%s229 + $0x5c] sm:$0x3]
        %v265 = vld [vmem:[%s229 + $0x5e] sm:$0x3]
        %v266 = vld [vmem:[%s229 + $0x60] sm:$0x3]
        %v267 = vld [vmem:[%s229 + $0x62] sm:$0x3]
        %v268 = vld [vmem:[%s229 + $0x64] sm:$0x3]
        %v269 = vld [vmem:[%s229 + $0x66] sm:$0x3]
        %v270 = vld [vmem:[%s229 + $0x68] sm:$0x3]
        %v271 = vld [vmem:[%s229 + $0x6a] sm:$0x3]
        %v272 = vld [vmem:[%s229 + $0x6c] sm:$0x3]
        %v273 = vld [vmem:[%s229 + $0x6e] sm:$0x3]
        %v274 = vld [vmem:[%s229 + $0x70] sm:$0x3]
        %v275 = vld [vmem:[%s229 + $0x72] sm:$0x3]
        %v276 = vld [vmem:[%s229 + $0x74] sm:$0x3]
        %v277 = vld [vmem:[%s229 + $0x76] sm:$0x3]
        %v278 = vld [vmem:[%s229 + $0x78] sm:$0x3]
        %v279 = vld [vmem:[%s229 + $0x7a] sm:$0x3]
        %v280 = vld [vmem:[%s229 + $0x7c] sm:$0x3]
        %v281 = vld [vmem:[%s229 + $0x7e] sm:$0x3]
        %v282 = vld [vmem:[%s229 + $0x80] sm:$0x3]
        %v283 = vld [vmem:[%s229 + $0x82] sm:$0x3]
        %v284 = vld [vmem:[%s229 + $0x84] sm:$0x3]
        %v285 = vld [vmem:[%s229 + $0x86] sm:$0x3]
        %v286 = vld [vmem:[%s229 + $0x88] sm:$0x3]
        %v287 = vld [vmem:[%s229 + $0x8a] sm:$0x3]
        %v288 = vld [vmem:[%s229 + $0x8c] sm:$0x3]
        %v289 = vld [vmem:[%s229 + $0x8e] sm:$0x3]
        %v290 = vunpack.c.0.s8 %v230
        %v291 = vunpack.c.0.s8 %v231
        %v292 = vunpack.c.0.s8 %v232
        %v293 = vunpack.c.0.s8 %v233
        %v294 = vunpack.c.0.s8 %v234
        %v295 = vunpack.c.0.s8 %v235
        %v296 = vunpack.c.0.s8 %v236
        %v297 = vunpack.c.0.s8 %v237
        %v298 = vunpack.c.0.s8 %v238
        %v299 = vunpack.c.0.s8 %v239
        %v300 = vunpack.c.0.s8 %v240
        %v301 = vunpack.c.0.s8 %v241
        %v302 = vunpack.c.0.s8 %v242
        %v303 = vunpack.c.0.s8 %v243
        %v304 = vunpack.c.0.s8 %v244
        %v305 = vunpack.c.0.s8 %v245
        %v306 = vunpack.c.0.s8 %v246
        %v307 = vunpack.c.0.s8 %v247
        %v308 = vunpack.c.0.s8 %v248
        %v309 = vunpack.c.0.s8 %v249
        %v310 = vunpack.c.0.s8 %v250
        %v311 = vunpack.c.0.s8 %v251
        %v312 = vunpack.c.0.s8 %v252
        %v313 = vunpack.c.0.s8 %v253
        %v314 = vunpack.c.0.s8 %v254
        %v315 = vunpack.c.0.s8 %v255
        %v316 = vunpack.c.0.s8 %v256
        %v317 = vunpack.c.0.s8 %v257
        %v318 = vunpack.c.0.s8 %v258
        %v319 = vunpack.c.0.s8 %v259
        %v320 = vunpack.c.0.s8 %v260
        %v321 = vunpack.c.0.s8 %v261
        %v322 = vunpack.c.0.s8 %v262
        %v323 = vunpack.c.0.s8 %v263
        %v324 = vunpack.c.0.s8 %v264
        %v325 = vunpack.c.0.s8 %v265
        %v326 = vunpack.c.0.s8 %v266
        %v327 = vunpack.c.0.s8 %v267
        %v328 = vunpack.c.0.s8 %v268
        %v329 = vunpack.c.0.s8 %v269
        %v330 = vunpack.c.0.s8 %v270
        %v331 = vunpack.c.0.s8 %v271
        %v332 = vunpack.c.0.s8 %v272
        %v333 = vunpack.c.0.s8 %v273
        %v334 = vunpack.c.0.s8 %v274
        %v335 = vunpack.c.0.s8 %v275
        %v336 = vunpack.c.0.s8 %v276
        %v337 = vunpack.c.0.s8 %v277
        %v338 = vunpack.c.0.s8 %v278
        %v339 = vunpack.c.0.s8 %v279
        %v340 = vunpack.c.0.s8 %v280
        %v341 = vunpack.c.0.s8 %v281
        %v342 = vunpack.c.0.s8 %v282
        %v343 = vunpack.c.0.s8 %v283
        %v344 = vunpack.c.0.s8 %v284
        %v345 = vunpack.c.0.s8 %v285
        %v346 = vunpack.c.0.s8 %v286
        %v347 = vunpack.c.0.s8 %v287
        %v348 = vunpack.c.0.s8 %v288
        %v349 = vunpack.c.0.s8 %v289
        %v350 = vld [vmem:[%s171] sm:$0xff]
        %v351 = vld [vmem:[%s171 + $0x8] sm:$0xff]
        %v352 = vld [vmem:[%s171 + $0x10] sm:$0xff]
        %v353 = vld [vmem:[%s171 + $0x18] sm:$0xff]
        %v354 = vld [vmem:[%s171 + $0x20] sm:$0xff]
        %v355 = vld [vmem:[%s171 + $0x28] sm:$0xff]
        %v356 = vld [vmem:[%s171 + $0x30] sm:$0xff]
        %v357 = vld [vmem:[%s171 + $0x38] sm:$0xff]
        %v358 = vld [vmem:[%s171 + $0x40] sm:$0xff]
        %v359 = vld [vmem:[%s171 + $0x48] sm:$0xff]
        %v360 = vld [vmem:[%s171 + $0x50] sm:$0xff]
        %v361 = vld [vmem:[%s171 + $0x58] sm:$0xff]
        %v362 = vld [vmem:[%s171 + $0x60] sm:$0xff]
        %v363 = vld [vmem:[%s171 + $0x68] sm:$0xff]
        %v364 = vld [vmem:[%s171 + $0x70] sm:$0xff]
        %v365 = vld [vmem:[%s171 + $0x78] sm:$0xff]
        %v366 = vld [vmem:[%s171 + $0x80] sm:$0xff]
        %v367 = vld [vmem:[%s171 + $0x88] sm:$0xff]
        %v368 = vld [vmem:[%s171 + $0x90] sm:$0xff]
        %v369 = vld [vmem:[%s171 + $0x98] sm:$0xff]
        %v370 = vld [vmem:[%s171 + $0xa0] sm:$0xff]
        %v371 = vld [vmem:[%s171 + $0xa8] sm:$0xff]
        %v372 = vld [vmem:[%s171 + $0xb0] sm:$0xff]
        %v373 = vld [vmem:[%s171 + $0xb8] sm:$0xff]
        %v374 = vld [vmem:[%s171 + $0xc0] sm:$0xff]
        %v375 = vld [vmem:[%s171 + $0xc8] sm:$0xff]
        %v376 = vld [vmem:[%s171 + $0xd0] sm:$0xff]
        %v377 = vld [vmem:[%s171 + $0xd8] sm:$0xff]
        %v378 = vld [vmem:[%s171 + $0xe0] sm:$0xff]
        %v379 = vld [vmem:[%s171 + $0xe8] sm:$0xff]
        %v380 = vld [vmem:[%s171 + $0xf0] sm:$0xff]
        %v381 = vld [vmem:[%s171 + $0xf8] sm:$0xff]
        %v382 = vld [vmem:[%s171 + $0x100] sm:$0xff]
        %v383 = vld [vmem:[%s171 + $0x108] sm:$0xff]
        %v384 = vld [vmem:[%s171 + $0x110] sm:$0xff]
        %v385 = vld [vmem:[%s171 + $0x118] sm:$0xff]
        %v386 = vld [vmem:[%s171 + $0x120] sm:$0xff]
        %v387 = vld [vmem:[%s171 + $0x128] sm:$0xff]
        %v388 = vld [vmem:[%s171 + $0x130] sm:$0xff]
        %v389 = vld [vmem:[%s171 + $0x138] sm:$0xff]
        %v390 = vld [vmem:[%s171 + $0x140] sm:$0xff]
        %v391 = vld [vmem:[%s171 + $0x148] sm:$0xff]
        %v392 = vld [vmem:[%s171 + $0x150] sm:$0xff]
        %v393 = vld [vmem:[%s171 + $0x158] sm:$0xff]
        %v394 = vld [vmem:[%s171 + $0x160] sm:$0xff]
        %v395 = vld [vmem:[%s171 + $0x168] sm:$0xff]
        %v396 = vld [vmem:[%s171 + $0x170] sm:$0xff]
        %v397 = vld [vmem:[%s171 + $0x178] sm:$0xff]
        %v398 = vld [vmem:[%s171 + $0x180] sm:$0xff]
        %v399 = vld [vmem:[%s171 + $0x188] sm:$0xff]
        %v400 = vld [vmem:[%s171 + $0x190] sm:$0xff]
        %v401 = vld [vmem:[%s171 + $0x198] sm:$0xff]
        %v402 = vld [vmem:[%s171 + $0x1a0] sm:$0xff]
        %v403 = vld [vmem:[%s171 + $0x1a8] sm:$0xff]
        %v404 = vld [vmem:[%s171 + $0x1b0] sm:$0xff]
        %v405 = vld [vmem:[%s171 + $0x1b8] sm:$0xff]
        %v406 = vld [vmem:[%s171 + $0x1c0] sm:$0xff]
        %v407 = vld [vmem:[%s171 + $0x1c8] sm:$0xff]
        %v408 = vld [vmem:[%s171 + $0x1d0] sm:$0xff]
        %v409 = vld [vmem:[%s171 + $0x1d8] sm:$0xff]
        %v410 = vld [vmem:[%s171 + $0x1e0] sm:$0xff]
        %v411 = vld [vmem:[%s171 + $0x1e8] sm:$0xff]
        %v412 = vld [vmem:[%s171 + $0x1f0] sm:$0xff]
        %v413 = vld [vmem:[%s171 + $0x1f8] sm:$0xff]
        %vm414 = vcmask 130048
        %v415 = vsel %vm414, %v350, -inf
        %v416 = vsel %vm414, %v358, -inf
        %v417 = vmax.f32 %v415, %v416
        %v418 = vsel %vm414, %v366, -inf
        %v419 = vmax.f32 %v417, %v418
        %v420 = vsel %vm414, %v374, -inf
        %v421 = vmax.f32 %v419, %v420
        %v422 = vsel %vm414, %v351, -inf
        %v423 = vsel %vm414, %v359, -inf
        %v424 = vmax.f32 %v422, %v423
        %v425 = vsel %vm414, %v367, -inf
        %v426 = vmax.f32 %v424, %v425
        %v427 = vsel %vm414, %v375, -inf
        %v428 = vmax.f32 %v426, %v427
        %v429 = vsel %vm414, %v352, -inf
        %v430 = vsel %vm414, %v360, -inf
        %v431 = vmax.f32 %v429, %v430
        %v432 = vsel %vm414, %v368, -inf
        %v433 = vmax.f32 %v431, %v432
        %v434 = vsel %vm414, %v376, -inf
        %v435 = vmax.f32 %v433, %v434
        %v436 = vsel %vm414, %v353, -inf
        %v437 = vsel %vm414, %v361, -inf
        %v438 = vmax.f32 %v436, %v437
        %v439 = vsel %vm414, %v369, -inf
        %v440 = vmax.f32 %v438, %v439
        %v441 = vsel %vm414, %v377, -inf
        %v442 = vmax.f32 %v440, %v441
        %v443 = vsel %vm414, %v354, -inf
        %v444 = vsel %vm414, %v362, -inf
        %v445 = vmax.f32 %v443, %v444
        %v446 = vsel %vm414, %v370, -inf
        %v447 = vmax.f32 %v445, %v446
        %v448 = vsel %vm414, %v378, -inf
        %v449 = vmax.f32 %v447, %v448
        %v450 = vsel %vm414, %v355, -inf
        %v451 = vsel %vm414, %v363, -inf
        %v452 = vmax.f32 %v450, %v451
        %v453 = vsel %vm414, %v371, -inf
        %v454 = vmax.f32 %v452, %v453
        %v455 = vsel %vm414, %v379, -inf
        %v456 = vmax.f32 %v454, %v455
        %v457 = vsel %vm414, %v356, -inf
        %v458 = vsel %vm414, %v364, -inf
        %v459 = vmax.f32 %v457, %v458
        %v460 = vsel %vm414, %v372, -inf
        %v461 = vmax.f32 %v459, %v460
        %v462 = vsel %vm414, %v380, -inf
        %v463 = vmax.f32 %v461, %v462
        %v464 = vsel %vm414, %v357, -inf
        %v465 = vsel %vm414, %v365, -inf
        %v466 = vmax.f32 %v464, %v465
        %v467 = vsel %vm414, %v373, -inf
        %v468 = vmax.f32 %v466, %v467
        %v469 = vsel %vm414, %v381, -inf
        %v470 = vmax.f32 %v468, %v469
        %v471 = vsel %vm414, %v382, -inf
        %v472 = vsel %vm414, %v390, -inf
        %v473 = vmax.f32 %v471, %v472
        %v474 = vsel %vm414, %v398, -inf
        %v475 = vmax.f32 %v473, %v474
        %v476 = vsel %vm414, %v406, -inf
        %v477 = vmax.f32 %v475, %v476
        %v478 = vsel %vm414, %v383, -inf
        %v479 = vsel %vm414, %v391, -inf
        %v480 = vmax.f32 %v478, %v479
        %v481 = vsel %vm414, %v399, -inf
        %v482 = vmax.f32 %v480, %v481
        %v483 = vsel %vm414, %v407, -inf
        %v484 = vmax.f32 %v482, %v483
        %v485 = vsel %vm414, %v384, -inf
        %v486 = vsel %vm414, %v392, -inf
        %v487 = vmax.f32 %v485, %v486
        %v488 = vsel %vm414, %v400, -inf
        %v489 = vmax.f32 %v487, %v488
        %v490 = vsel %vm414, %v408, -inf
        %v491 = vmax.f32 %v489, %v490
        %v492 = vsel %vm414, %v385, -inf
        %v493 = vsel %vm414, %v393, -inf
        %v494 = vmax.f32 %v492, %v493
        %v495 = vsel %vm414, %v401, -inf
        %v496 = vmax.f32 %v494, %v495
        %v497 = vsel %vm414, %v409, -inf
        %v498 = vmax.f32 %v496, %v497
        %v499 = vsel %vm414, %v386, -inf
        %v500 = vsel %vm414, %v394, -inf
        %v501 = vmax.f32 %v499, %v500
        %v502 = vsel %vm414, %v402, -inf
        %v503 = vmax.f32 %v501, %v502
        %v504 = vsel %vm414, %v410, -inf
        %v505 = vmax.f32 %v503, %v504
        %v506 = vsel %vm414, %v387, -inf
        %v507 = vsel %vm414, %v395, -inf
        %v508 = vmax.f32 %v506, %v507
        %v509 = vsel %vm414, %v403, -inf
        %v510 = vmax.f32 %v508, %v509
        %v511 = vsel %vm414, %v411, -inf
        %v512 = vmax.f32 %v510, %v511
        %v513 = vsel %vm414, %v388, -inf
        %v514 = vsel %vm414, %v396, -inf
        %v515 = vmax.f32 %v513, %v514
        %v516 = vsel %vm414, %v404, -inf
        %v517 = vmax.f32 %v515, %v516
        %v518 = vsel %vm414, %v412, -inf
        %v519 = vmax.f32 %v517, %v518
        %v520 = vsel %vm414, %v389, -inf
        %v521 = vsel %vm414, %v397, -inf
        %v522 = vmax.f32 %v520, %v521
        %v523 = vsel %vm414, %v405, -inf
        %v524 = vmax.f32 %v522, %v523
        %v525 = vsel %vm414, %v413, -inf
        %v526 = vmax.f32 %v524, %v525
        %v527 = vsub.f32 %v350, %v421
        %v528 = vsub.f32 %v351, %v428
        %v529 = vsub.f32 %v352, %v435
        %v530 = vsub.f32 %v353, %v442
        %v531 = vsub.f32 %v354, %v449
        %v532 = vsub.f32 %v355, %v456
        %v533 = vsub.f32 %v356, %v463
        %v534 = vsub.f32 %v357, %v470
        %v535 = vsub.f32 %v358, %v421
        %v536 = vsub.f32 %v359, %v428
        %v537 = vsub.f32 %v360, %v435
        %v538 = vsub.f32 %v361, %v442
        %v539 = vsub.f32 %v362, %v449
        %v540 = vsub.f32 %v363, %v456
        %v541 = vsub.f32 %v364, %v463
        %v542 = vsub.f32 %v365, %v470
        %v543 = vsub.f32 %v366, %v421
        %v544 = vsub.f32 %v367, %v428
        %v545 = vsub.f32 %v368, %v435
        %v546 = vsub.f32 %v369, %v442
        %v547 = vsub.f32 %v370, %v449
        %v548 = vsub.f32 %v371, %v456
        %v549 = vsub.f32 %v372, %v463
        %v550 = vsub.f32 %v373, %v470
        %v551 = vsub.f32 %v374, %v421
        %v552 = vsub.f32 %v375, %v428
        %v553 = vsub.f32 %v376, %v435
        %v554 = vsub.f32 %v377, %v442
        %v555 = vsub.f32 %v378, %v449
        %v556 = vsub.f32 %v379, %v456
        %v557 = vsub.f32 %v380, %v463
        %v558 = vsub.f32 %v381, %v470
        %v559 = vsub.f32 %v382, %v477
        %v560 = vsub.f32 %v383, %v484
        %v561 = vsub.f32 %v384, %v491
        %v562 = vsub.f32 %v385, %v498
        %v563 = vsub.f32 %v386, %v505
        %v564 = vsub.f32 %v387, %v512
        %v565 = vsub.f32 %v388, %v519
        %v566 = vsub.f32 %v389, %v526
        %v567 = vsub.f32 %v390, %v477
        %v568 = vsub.f32 %v391, %v484
        %v569 = vsub.f32 %v392, %v491
        %v570 = vsub.f32 %v393, %v498
        %v571 = vsub.f32 %v394, %v505
        %v572 = vsub.f32 %v395, %v512
        %v573 = vsub.f32 %v396, %v519
        %v574 = vsub.f32 %v397, %v526
        %v575 = vsub.f32 %v398, %v477
        %v576 = vsub.f32 %v399, %v484
        %v577 = vsub.f32 %v400, %v491
        %v578 = vsub.f32 %v401, %v498
        %v579 = vsub.f32 %v402, %v505
        %v580 = vsub.f32 %v403, %v512
        %v581 = vsub.f32 %v404, %v519
        %v582 = vsub.f32 %v405, %v526
        %v583 = vsub.f32 %v406, %v477
        %v584 = vsub.f32 %v407, %v484
        %v585 = vsub.f32 %v408, %v491
        %v586 = vsub.f32 %v409, %v498
        %v587 = vsub.f32 %v410, %v505
        %v588 = vsub.f32 %v411, %v512
        %v589 = vsub.f32 %v412, %v519
        %v590 = vsub.f32 %v413, %v526
        %v591 = vmul.f32 %v527, 1.442695
        %v592 = vpow.pop %v591
        %v593 = vmul.f32 %v528, 1.442695
        %v594 = vpow.pop %v593
        %v595 = vmul.f32 %v529, 1.442695
        %v596 = vpow.pop %v595
        %v597 = vmul.f32 %v530, 1.442695
        %v598 = vpow.pop %v597
        %v599 = vmul.f32 %v531, 1.442695
        %v600 = vpow.pop %v599
        %v601 = vmul.f32 %v532, 1.442695
        %v602 = vpow.pop %v601
        %v603 = vmul.f32 %v533, 1.442695
        %v604 = vpow.pop %v603
        %v605 = vmul.f32 %v534, 1.442695
        %v606 = vpow.pop %v605
        %v607 = vmul.f32 %v535, 1.442695
        %v608 = vpow.pop %v607
        %v609 = vmul.f32 %v536, 1.442695
        %v610 = vpow.pop %v609
        %v611 = vmul.f32 %v537, 1.442695
        %v612 = vpow.pop %v611
        %v613 = vmul.f32 %v538, 1.442695
        %v614 = vpow.pop %v613
        %v615 = vmul.f32 %v539, 1.442695
        %v616 = vpow.pop %v615
        %v617 = vmul.f32 %v540, 1.442695
        %v618 = vpow.pop %v617
        %v619 = vmul.f32 %v541, 1.442695
        %v620 = vpow.pop %v619
        %v621 = vmul.f32 %v542, 1.442695
        %v622 = vpow.pop %v621
        %v623 = vmul.f32 %v543, 1.442695
        %v624 = vpow.pop %v623
        %v625 = vmul.f32 %v544, 1.442695
        %v626 = vpow.pop %v625
        %v627 = vmul.f32 %v545, 1.442695
        %v628 = vpow.pop %v627
        %v629 = vmul.f32 %v546, 1.442695
        %v630 = vpow.pop %v629
        %v631 = vmul.f32 %v547, 1.442695
        %v632 = vpow.pop %v631
        %v633 = vmul.f32 %v548, 1.442695
        %v634 = vpow.pop %v633
        %v635 = vmul.f32 %v549, 1.442695
        %v636 = vpow.pop %v635
        %v637 = vmul.f32 %v550, 1.442695
        %v638 = vpow.pop %v637
        %v639 = vmul.f32 %v551, 1.442695
        %v640 = vpow.pop %v639
        %v641 = vmul.f32 %v552, 1.442695
        %v642 = vpow.pop %v641
        %v643 = vmul.f32 %v553, 1.442695
        %v644 = vpow.pop %v643
        %v645 = vmul.f32 %v554, 1.442695
        %v646 = vpow.pop %v645
        %v647 = vmul.f32 %v555, 1.442695
        %v648 = vpow.pop %v647
        %v649 = vmul.f32 %v556, 1.442695
        %v650 = vpow.pop %v649
        %v651 = vmul.f32 %v557, 1.442695
        %v652 = vpow.pop %v651
        %v653 = vmul.f32 %v558, 1.442695
        %v654 = vpow.pop %v653
        %v655 = vmul.f32 %v559, 1.442695
        %v656 = vpow.pop %v655
        %v657 = vmul.f32 %v560, 1.442695
        %v658 = vpow.pop %v657
        %v659 = vmul.f32 %v561, 1.442695
        %v660 = vpow.pop %v659
        %v661 = vmul.f32 %v562, 1.442695
        %v662 = vpow.pop %v661
        %v663 = vmul.f32 %v563, 1.442695
        %v664 = vpow.pop %v663
        %v665 = vmul.f32 %v564, 1.442695
        %v666 = vpow.pop %v665
        %v667 = vmul.f32 %v565, 1.442695
        %v668 = vpow.pop %v667
        %v669 = vmul.f32 %v566, 1.442695
        %v670 = vpow.pop %v669
        %v671 = vmul.f32 %v567, 1.442695
        %v672 = vpow.pop %v671
        %v673 = vmul.f32 %v568, 1.442695
        %v674 = vpow.pop %v673
        %v675 = vmul.f32 %v569, 1.442695
        %v676 = vpow.pop %v675
        %v677 = vmul.f32 %v570, 1.442695
        %v678 = vpow.pop %v677
        %v679 = vmul.f32 %v571, 1.442695
        %v680 = vpow.pop %v679
        %v681 = vmul.f32 %v572, 1.442695
        %v682 = vpow.pop %v681
        %v683 = vmul.f32 %v573, 1.442695
        %v684 = vpow.pop %v683
        %v685 = vmul.f32 %v574, 1.442695
        %v686 = vpow.pop %v685
        %v687 = vmul.f32 %v575, 1.442695
        %v688 = vpow.pop %v687
        %v689 = vmul.f32 %v576, 1.442695
        %v690 = vpow.pop %v689
        %v691 = vmul.f32 %v577, 1.442695
        %v692 = vpow.pop %v691
        %v693 = vmul.f32 %v578, 1.442695
        %v694 = vpow.pop %v693
        %v695 = vmul.f32 %v579, 1.442695
        %v696 = vpow.pop %v695
        %v697 = vmul.f32 %v580, 1.442695
        %v698 = vpow.pop %v697
        %v699 = vmul.f32 %v581, 1.442695
        %v700 = vpow.pop %v699
        %v701 = vmul.f32 %v582, 1.442695
        %v702 = vpow.pop %v701
        %v703 = vmul.f32 %v583, 1.442695
        %v704 = vpow.pop %v703
        %v705 = vmul.f32 %v584, 1.442695
        %v706 = vpow.pop %v705
        %v707 = vmul.f32 %v585, 1.442695
        %v708 = vpow.pop %v707
        %v709 = vmul.f32 %v586, 1.442695
        %v710 = vpow.pop %v709
        %v711 = vmul.f32 %v587, 1.442695
        %v712 = vpow.pop %v711
        %v713 = vmul.f32 %v588, 1.442695
        %v714 = vpow.pop %v713
        %v715 = vmul.f32 %v589, 1.442695
        %v716 = vpow.pop %v715
        %v717 = vmul.f32 %v590, 1.442695
        %v718 = vpow.pop %v717
        %v719 = vsel %vm414, %v592, 0.0
        %v720 = vsel %vm414, %v608, 0.0
        %v721 = vadd.f32 %v719, %v720
        %v722 = vsel %vm414, %v624, 0.0
        %v723 = vadd.f32 %v721, %v722
        %v724 = vsel %vm414, %v640, 0.0
        %v725 = vadd.f32 %v723, %v724
        %v726 = vsel %vm414, %v594, 0.0
        %v727 = vsel %vm414, %v610, 0.0
        %v728 = vadd.f32 %v726, %v727
        %v729 = vsel %vm414, %v626, 0.0
        %v730 = vadd.f32 %v728, %v729
        %v731 = vsel %vm414, %v642, 0.0
        %v732 = vadd.f32 %v730, %v731
        %v733 = vsel %vm414, %v596, 0.0
        %v734 = vsel %vm414, %v612, 0.0
        %v735 = vadd.f32 %v733, %v734
        %v736 = vsel %vm414, %v628, 0.0
        %v737 = vadd.f32 %v735, %v736
        %v738 = vsel %vm414, %v644, 0.0
        %v739 = vadd.f32 %v737, %v738
        %v740 = vsel %vm414, %v598, 0.0
        %v741 = vsel %vm414, %v614, 0.0
        %v742 = vadd.f32 %v740, %v741
        %v743 = vsel %vm414, %v630, 0.0
        %v744 = vadd.f32 %v742, %v743
        %v745 = vsel %vm414, %v646, 0.0
        %v746 = vadd.f32 %v744, %v745
        %v747 = vsel %vm414, %v600, 0.0
        %v748 = vsel %vm414, %v616, 0.0
        %v749 = vadd.f32 %v747, %v748
        %v750 = vsel %vm414, %v632, 0.0
        %v751 = vadd.f32 %v749, %v750
        %v752 = vsel %vm414, %v648, 0.0
        %v753 = vadd.f32 %v751, %v752
        %v754 = vsel %vm414, %v602, 0.0
        %v755 = vsel %vm414, %v618, 0.0
        %v756 = vadd.f32 %v754, %v755
        %v757 = vsel %vm414, %v634, 0.0
        %v758 = vadd.f32 %v756, %v757
        %v759 = vsel %vm414, %v650, 0.0
        %v760 = vadd.f32 %v758, %v759
        %v761 = vsel %vm414, %v604, 0.0
        %v762 = vsel %vm414, %v620, 0.0
        %v763 = vadd.f32 %v761, %v762
        %v764 = vsel %vm414, %v636, 0.0
        %v765 = vadd.f32 %v763, %v764
        %v766 = vsel %vm414, %v652, 0.0
        %v767 = vadd.f32 %v765, %v766
        %v768 = vsel %vm414, %v606, 0.0
        %v769 = vsel %vm414, %v622, 0.0
        %v770 = vadd.f32 %v768, %v769
        %v771 = vsel %vm414, %v638, 0.0
        %v772 = vadd.f32 %v770, %v771
        %v773 = vsel %vm414, %v654, 0.0
        %v774 = vadd.f32 %v772, %v773
        %v775 = vsel %vm414, %v656, 0.0
        %v776 = vsel %vm414, %v672, 0.0
        %v777 = vadd.f32 %v775, %v776
        %v778 = vsel %vm414, %v688, 0.0
        %v779 = vadd.f32 %v777, %v778
        %v780 = vsel %vm414, %v704, 0.0
        %v781 = vadd.f32 %v779, %v780
        %v782 = vsel %vm414, %v658, 0.0
        %v783 = vsel %vm414, %v674, 0.0
        %v784 = vadd.f32 %v782, %v783
        %v785 = vsel %vm414, %v690, 0.0
        %v786 = vadd.f32 %v784, %v785
        %v787 = vsel %vm414, %v706, 0.0
        %v788 = vadd.f32 %v786, %v787
        %v789 = vsel %vm414, %v660, 0.0
        %v790 = vsel %vm414, %v676, 0.0
        %v791 = vadd.f32 %v789, %v790
        %v792 = vsel %vm414, %v692, 0.0
        %v793 = vadd.f32 %v791, %v792
        %v794 = vsel %vm414, %v708, 0.0
        %v795 = vadd.f32 %v793, %v794
        %v796 = vsel %vm414, %v662, 0.0
        %v797 = vsel %vm414, %v678, 0.0
        %v798 = vadd.f32 %v796, %v797
        %v799 = vsel %vm414, %v694, 0.0
        %v800 = vadd.f32 %v798, %v799
        %v801 = vsel %vm414, %v710, 0.0
        %v802 = vadd.f32 %v800, %v801
        %v803 = vsel %vm414, %v664, 0.0
        %v804 = vsel %vm414, %v680, 0.0
        %v805 = vadd.f32 %v803, %v804
        %v806 = vsel %vm414, %v696, 0.0
        %v807 = vadd.f32 %v805, %v806
        %v808 = vsel %vm414, %v712, 0.0
        %v809 = vadd.f32 %v807, %v808
        %v810 = vsel %vm414, %v666, 0.0
        %v811 = vsel %vm414, %v682, 0.0
        %v812 = vadd.f32 %v810, %v811
        %v813 = vsel %vm414, %v698, 0.0
        %v814 = vadd.f32 %v812, %v813
        %v815 = vsel %vm414, %v714, 0.0
        %v816 = vadd.f32 %v814, %v815
        %v817 = vsel %vm414, %v668, 0.0
        %v818 = vsel %vm414, %v684, 0.0
        %v819 = vadd.f32 %v817, %v818
        %v820 = vsel %vm414, %v700, 0.0
        %v821 = vadd.f32 %v819, %v820
        %v822 = vsel %vm414, %v716, 0.0
        %v823 = vadd.f32 %v821, %v822
        %v824 = vsel %vm414, %v670, 0.0
        %v825 = vsel %vm414, %v686, 0.0
        %v826 = vadd.f32 %v824, %v825
        %v827 = vsel %vm414, %v702, 0.0
        %v828 = vadd.f32 %v826, %v827
        %v829 = vsel %vm414, %v718, 0.0
        %v830 = vadd.f32 %v828, %v829
        %v831 = vrcp.pop %v725
        %v832 = vmul.f32 1.0, %v831
        %v833 = vrcp.pop %v732
        %v834 = vmul.f32 1.0, %v833
        %v835 = vrcp.pop %v739
        %v836 = vmul.f32 1.0, %v835
        %v837 = vrcp.pop %v746
        %v838 = vmul.f32 1.0, %v837
        %v839 = vrcp.pop %v753
        %v840 = vmul.f32 1.0, %v839
        %v841 = vrcp.pop %v760
        %v842 = vmul.f32 1.0, %v841
        %v843 = vrcp.pop %v767
        %v844 = vmul.f32 1.0, %v843
        %v845 = vrcp.pop %v774
        %v846 = vmul.f32 1.0, %v845
        %v847 = vrcp.pop %v781
        %v848 = vmul.f32 1.0, %v847
        %v849 = vrcp.pop %v788
        %v850 = vmul.f32 1.0, %v849
        %v851 = vrcp.pop %v795
        %v852 = vmul.f32 1.0, %v851
        %v853 = vrcp.pop %v802
        %v854 = vmul.f32 1.0, %v853
        %v855 = vrcp.pop %v809
        %v856 = vmul.f32 1.0, %v855
        %v857 = vrcp.pop %v816
        %v858 = vmul.f32 1.0, %v857
        %v859 = vrcp.pop %v823
        %v860 = vmul.f32 1.0, %v859
        %v861 = vrcp.pop %v830
        %v862 = vmul.f32 1.0, %v861
        %vm863 = vcmp.lt.s32.totalorder %v290, 0
        %vm864 = vcmp.lt.s32.totalorder %v291, 0
        %vm865 = vcmp.lt.s32.totalorder %v292, 0
        %vm866 = vcmp.lt.s32.totalorder %v293, 0
        %vm867 = vcmp.lt.s32.totalorder %v294, 0
        %vm868 = vcmp.lt.s32.totalorder %v295, 0
        %vm869 = vcmp.lt.s32.totalorder %v296, 0
        %vm870 = vcmp.lt.s32.totalorder %v297, 0
        %vm871 = vcmp.lt.s32.totalorder %v298, 0
        %vm872 = vcmp.lt.s32.totalorder %v299, 0
        %vm873 = vcmp.lt.s32.totalorder %v300, 0
        %vm874 = vcmp.lt.s32.totalorder %v301, 0
        %vm875 = vcmp.lt.s32.totalorder %v302, 0
        %vm876 = vcmp.lt.s32.totalorder %v303, 0
        %vm877 = vcmp.lt.s32.totalorder %v304, 0
        %vm878 = vcmp.lt.s32.totalorder %v305, 0
        %vm879 = vcmp.lt.s32.totalorder %v306, 0
        %vm880 = vcmp.lt.s32.totalorder %v307, 0
        %vm881 = vcmp.lt.s32.totalorder %v308, 0
        %vm882 = vcmp.lt.s32.totalorder %v309, 0
        %vm883 = vcmp.lt.s32.totalorder %v310, 0
        %vm884 = vcmp.lt.s32.totalorder %v311, 0
        %vm885 = vcmp.lt.s32.totalorder %v312, 0
        %vm886 = vcmp.lt.s32.totalorder %v313, 0
        %vm887 = vcmp.lt.s32.totalorder %v314, 0
        %vm888 = vcmp.lt.s32.totalorder %v315, 0
        %vm889 = vcmp.lt.s32.totalorder %v316, 0
        %vm890 = vcmp.lt.s32.totalorder %v317, 0
        %vm891 = vcmp.lt.s32.totalorder %v318, 0
        %vm892 = vcmp.lt.s32.totalorder %v319, 0
        %vm893 = vcmp.lt.s32.totalorder %v320, 0
        %vm894 = vcmp.lt.s32.totalorder %v321, 0
        %vm895 = vcmp.lt.s32.totalorder %v322, 0
        %vm896 = vcmp.lt.s32.totalorder %v323, 0
        %vm897 = vcmp.lt.s32.totalorder %v324, 0
        %vm898 = vcmp.lt.s32.totalorder %v325, 0
        %vm899 = vcmp.lt.s32.totalorder %v326, 0
        %vm900 = vcmp.lt.s32.totalorder %v327, 0
        %vm901 = vcmp.lt.s32.totalorder %v328, 0
        %vm902 = vcmp.lt.s32.totalorder %v329, 0
        %vm903 = vcmp.lt.s32.totalorder %v330, 0
        %vm904 = vcmp.lt.s32.totalorder %v331, 0
        %vm905 = vcmp.lt.s32.totalorder %v332, 0
        %vm906 = vcmp.lt.s32.totalorder %v333, 0
        %vm907 = vcmp.lt.s32.totalorder %v334, 0
        %vm908 = vcmp.lt.s32.totalorder %v335, 0
        %vm909 = vcmp.lt.s32.totalorder %v336, 0
        %vm910 = vcmp.lt.s32.totalorder %v337, 0
        %vm911 = vcmp.lt.s32.totalorder %v338, 0
        %vm912 = vcmp.lt.s32.totalorder %v339, 0
        %vm913 = vcmp.lt.s32.totalorder %v340, 0
        %vm914 = vcmp.lt.s32.totalorder %v341, 0
        %vm915 = vcmp.lt.s32.totalorder %v342, 0
        %vm916 = vcmp.lt.s32.totalorder %v343, 0
        %vm917 = vcmp.lt.s32.totalorder %v344, 0
        %vm918 = vcmp.lt.s32.totalorder %v345, 0
        %vm919 = vcmp.lt.s32.totalorder %v346, 0
        %vm920 = vcmp.lt.s32.totalorder %v347, 0
        %vm921 = vcmp.lt.s32.totalorder %v348, 0
        %vm922 = vcmp.lt.s32.totalorder %v349, 0
        %v923 = vsel %vm863, 1048576, %v290
        %v924 = vsel %vm864, 1048576, %v291
        %v925 = vsel %vm865, 1048576, %v292
        %v926 = vsel %vm866, 1048576, %v293
        %v927 = vsel %vm867, 1048576, %v294
        %v928 = vsel %vm868, 1048576, %v295
        %v929 = vsel %vm869, 1048576, %v296
        %v930 = vsel %vm870, 1048576, %v297
        %v931 = vsel %vm871, 1048576, %v298
        %v932 = vsel %vm872, 1048576, %v299
        %v933 = vsel %vm873, 1048576, %v300
        %v934 = vsel %vm874, 1048576, %v301
        %v935 = vsel %vm875, 1048576, %v302
        %v936 = vsel %vm876, 1048576, %v303
        %v937 = vsel %vm877, 1048576, %v304
        %v938 = vsel %vm878, 1048576, %v305
        %v939 = vsel %vm879, 1048576, %v306
        %v940 = vsel %vm880, 1048576, %v307
        %v941 = vsel %vm881, 1048576, %v308
        %v942 = vsel %vm882, 1048576, %v309
        %v943 = vsel %vm883, 1048576, %v310
        %v944 = vsel %vm884, 1048576, %v311
        %v945 = vsel %vm885, 1048576, %v312
        %v946 = vsel %vm886, 1048576, %v313
        %v947 = vsel %vm887, 1048576, %v314
        %v948 = vsel %vm888, 1048576, %v315
        %v949 = vsel %vm889, 1048576, %v316
        %v950 = vsel %vm890, 1048576, %v317
        %v951 = vsel %vm891, 1048576, %v318
        %v952 = vsel %vm892, 1048576, %v319
        %v953 = vsel %vm893, 1048576, %v320
        %v954 = vsel %vm894, 1048576, %v321
        %v955 = vsel %vm895, 1048576, %v322
        %v956 = vsel %vm896, 1048576, %v323
        %v957 = vsel %vm897, 1048576, %v324
        %v958 = vsel %vm898, 1048576, %v325
        %v959 = vsel %vm899, 1048576, %v326
        %v960 = vsel %vm900, 1048576, %v327
        %v961 = vsel %vm901, 1048576, %v328
        %v962 = vsel %vm902, 1048576, %v329
        %v963 = vsel %vm903, 1048576, %v330
        %v964 = vsel %vm904, 1048576, %v331
        %v965 = vsel %vm905, 1048576, %v332
        %v966 = vsel %vm906, 1048576, %v333
        %v967 = vsel %vm907, 1048576, %v334
        %v968 = vsel %vm908, 1048576, %v335
        %v969 = vsel %vm909, 1048576, %v336
        %v970 = vsel %vm910, 1048576, %v337
        %v971 = vsel %vm911, 1048576, %v338
        %v972 = vsel %vm912, 1048576, %v339
        %v973 = vsel %vm913, 1048576, %v340
        %v974 = vsel %vm914, 1048576, %v341
        %v975 = vsel %vm915, 1048576, %v342
        %v976 = vsel %vm916, 1048576, %v343
        %v977 = vsel %vm917, 1048576, %v344
        %v978 = vsel %vm918, 1048576, %v345
        %v979 = vsel %vm919, 1048576, %v346
        %v980 = vsel %vm920, 1048576, %v347
        %v981 = vsel %vm921, 1048576, %v348
        %v982 = vsel %vm922, 1048576, %v349
        %vm983 = vcmp.gt.s32.totalorder %v290, %v293
        %v984 = vsel %vm983, %v290, %v293
        %vm985 = vcmp.gt.s32.totalorder %v291, %v294
        %v986 = vsel %vm985, %v291, %v294
        %vm987 = vcmp.gt.s32.totalorder %v292, %v295
        %v988 = vsel %vm987, %v292, %v295
        %vm989 = vcmp.gt.s32.totalorder %v293, %v296
        %v990 = vsel %vm989, %v293, %v296
        %vm991 = vcmp.gt.s32.totalorder %v294, %v297
        %v992 = vsel %vm991, %v294, %v297
        %vm993 = vcmp.gt.s32.totalorder %v295, %v298
        %v994 = vsel %vm993, %v295, %v298
        %vm995 = vcmp.gt.s32.totalorder %v296, %v299
        %v996 = vsel %vm995, %v296, %v299
        %vm997 = vcmp.gt.s32.totalorder %v297, %v300
        %v998 = vsel %vm997, %v297, %v300
        %vm999 = vcmp.gt.s32.totalorder %v298, %v301
        %v1000 = vsel %vm999, %v298, %v301
        %vm1001 = vcmp.gt.s32.totalorder %v299, %v302
        %v1002 = vsel %vm1001, %v299, %v302
        %vm1003 = vcmp.gt.s32.totalorder %v300, %v303
        %v1004 = vsel %vm1003, %v300, %v303
        %vm1005 = vcmp.gt.s32.totalorder %v301, %v304
        %v1006 = vsel %vm1005, %v301, %v304
        %vm1007 = vcmp.gt.s32.totalorder %v302, %v305
        %v1008 = vsel %vm1007, %v302, %v305
        %vm1009 = vcmp.gt.s32.totalorder %v303, %v306
        %v1010 = vsel %vm1009, %v303, %v306
        %vm1011 = vcmp.gt.s32.totalorder %v304, %v307
        %v1012 = vsel %vm1011, %v304, %v307
        %vm1013 = vcmp.gt.s32.totalorder %v305, %v308
        %v1014 = vsel %vm1013, %v305, %v308
        %vm1015 = vcmp.gt.s32.totalorder %v306, %v309
        %v1016 = vsel %vm1015, %v306, %v309
        %vm1017 = vcmp.gt.s32.totalorder %v307, %v310
        %v1018 = vsel %vm1017, %v307, %v310
        %vm1019 = vcmp.gt.s32.totalorder %v308, %v311
        %v1020 = vsel %vm1019, %v308, %v311
        %vm1021 = vcmp.gt.s32.totalorder %v309, %v312
        %v1022 = vsel %vm1021, %v309, %v312
        %vm1023 = vcmp.gt.s32.totalorder %v310, %v313
        %v1024 = vsel %vm1023, %v310, %v313
        %vm1025 = vcmp.gt.s32.totalorder %v311, %v314
        %v1026 = vsel %vm1025, %v311, %v314
        %vm1027 = vcmp.gt.s32.totalorder %v312, %v315
        %v1028 = vsel %vm1027, %v312, %v315
        %vm1029 = vcmp.gt.s32.totalorder %v313, %v316
        %v1030 = vsel %vm1029, %v313, %v316
        %vm1031 = vcmp.gt.s32.totalorder %v314, %v317
        %v1032 = vsel %vm1031, %v314, %v317
        %vm1033 = vcmp.gt.s32.totalorder %v315, %v318
        %v1034 = vsel %vm1033, %v315, %v318
        %vm1035 = vcmp.gt.s32.totalorder %v316, %v319
        %v1036 = vsel %vm1035, %v316, %v319
        %vm1037 = vcmp.gt.s32.totalorder %v320, %v323
        %v1038 = vsel %vm1037, %v320, %v323
        %vm1039 = vcmp.gt.s32.totalorder %v321, %v324
        %v1040 = vsel %vm1039, %v321, %v324
        %vm1041 = vcmp.gt.s32.totalorder %v322, %v325
        %v1042 = vsel %vm1041, %v322, %v325
        %vm1043 = vcmp.gt.s32.totalorder %v323, %v326
        %v1044 = vsel %vm1043, %v323, %v326
        %vm1045 = vcmp.gt.s32.totalorder %v324, %v327
        %v1046 = vsel %vm1045, %v324, %v327
        %vm1047 = vcmp.gt.s32.totalorder %v325, %v328
        %v1048 = vsel %vm1047, %v325, %v328
        %vm1049 = vcmp.gt.s32.totalorder %v326, %v329
        %v1050 = vsel %vm1049, %v326, %v329
        %vm1051 = vcmp.gt.s32.totalorder %v327, %v330
        %v1052 = vsel %vm1051, %v327, %v330
        %vm1053 = vcmp.gt.s32.totalorder %v328, %v331
        %v1054 = vsel %vm1053, %v328, %v331
        %vm1055 = vcmp.gt.s32.totalorder %v329, %v332
        %v1056 = vsel %vm1055, %v329, %v332
        %vm1057 = vcmp.gt.s32.totalorder %v330, %v333
        %v1058 = vsel %vm1057, %v330, %v333
        %vm1059 = vcmp.gt.s32.totalorder %v331, %v334
        %v1060 = vsel %vm1059, %v331, %v334
        %vm1061 = vcmp.gt.s32.totalorder %v332, %v335
        %v1062 = vsel %vm1061, %v332, %v335
        %vm1063 = vcmp.gt.s32.totalorder %v333, %v336
        %v1064 = vsel %vm1063, %v333, %v336
        %vm1065 = vcmp.gt.s32.totalorder %v334, %v337
        %v1066 = vsel %vm1065, %v334, %v337
        %vm1067 = vcmp.gt.s32.totalorder %v335, %v338
        %v1068 = vsel %vm1067, %v335, %v338
        %vm1069 = vcmp.gt.s32.totalorder %v336, %v339
        %v1070 = vsel %vm1069, %v336, %v339
        %vm1071 = vcmp.gt.s32.totalorder %v337, %v340
        %v1072 = vsel %vm1071, %v337, %v340
        %vm1073 = vcmp.gt.s32.totalorder %v338, %v341
        %v1074 = vsel %vm1073, %v338, %v341
        %vm1075 = vcmp.gt.s32.totalorder %v339, %v342
        %v1076 = vsel %vm1075, %v339, %v342
        %vm1077 = vcmp.gt.s32.totalorder %v340, %v343
        %v1078 = vsel %vm1077, %v340, %v343
        %vm1079 = vcmp.gt.s32.totalorder %v341, %v344
        %v1080 = vsel %vm1079, %v341, %v344
        %vm1081 = vcmp.gt.s32.totalorder %v342, %v345
        %v1082 = vsel %vm1081, %v342, %v345
        %vm1083 = vcmp.gt.s32.totalorder %v343, %v346
        %v1084 = vsel %vm1083, %v343, %v346
        %vm1085 = vcmp.gt.s32.totalorder %v344, %v347
        %v1086 = vsel %vm1085, %v344, %v347
        %vm1087 = vcmp.gt.s32.totalorder %v345, %v348
        %v1088 = vsel %vm1087, %v345, %v348
        %vm1089 = vcmp.gt.s32.totalorder %v346, %v349
        %v1090 = vsel %vm1089, %v346, %v349
        %vm1091 = vcmp.gt.s32.totalorder %v984, %v996
        %v1092 = vsel %vm1091, %v984, %v996
        %vm1093 = vcmp.gt.s32.totalorder %v986, %v998
        %v1094 = vsel %vm1093, %v986, %v998
        %vm1095 = vcmp.gt.s32.totalorder %v988, %v1000
        %v1096 = vsel %vm1095, %v988, %v1000
        %vm1097 = vcmp.gt.s32.totalorder %v990, %v1002
        %v1098 = vsel %vm1097, %v990, %v1002
        %vm1099 = vcmp.gt.s32.totalorder %v992, %v1004
        %v1100 = vsel %vm1099, %v992, %v1004
        %vm1101 = vcmp.gt.s32.totalorder %v994, %v1006
        %v1102 = vsel %vm1101, %v994, %v1006
        %vm1103 = vcmp.gt.s32.totalorder %v996, %v1008
        %v1104 = vsel %vm1103, %v996, %v1008
        %vm1105 = vcmp.gt.s32.totalorder %v998, %v1010
        %v1106 = vsel %vm1105, %v998, %v1010
        %vm1107 = vcmp.gt.s32.totalorder %v1000, %v1012
        %v1108 = vsel %vm1107, %v1000, %v1012
        %vm1109 = vcmp.gt.s32.totalorder %v1002, %v1014
        %v1110 = vsel %vm1109, %v1002, %v1014
        %vm1111 = vcmp.gt.s32.totalorder %v1004, %v1016
        %v1112 = vsel %vm1111, %v1004, %v1016
        %vm1113 = vcmp.gt.s32.totalorder %v1006, %v1018
        %v1114 = vsel %vm1113, %v1006, %v1018
        %vm1115 = vcmp.gt.s32.totalorder %v1008, %v1020
        %v1116 = vsel %vm1115, %v1008, %v1020
        %vm1117 = vcmp.gt.s32.totalorder %v1010, %v1022
        %v1118 = vsel %vm1117, %v1010, %v1022
        %vm1119 = vcmp.gt.s32.totalorder %v1012, %v1024
        %v1120 = vsel %vm1119, %v1012, %v1024
        %vm1121 = vcmp.gt.s32.totalorder %v1014, %v1026
        %v1122 = vsel %vm1121, %v1014, %v1026
        %vm1123 = vcmp.gt.s32.totalorder %v1016, %v1028
        %v1124 = vsel %vm1123, %v1016, %v1028
        %vm1125 = vcmp.gt.s32.totalorder %v1018, %v1030
        %v1126 = vsel %vm1125, %v1018, %v1030
        %vm1127 = vcmp.gt.s32.totalorder %v1020, %v1032
        %v1128 = vsel %vm1127, %v1020, %v1032
        %vm1129 = vcmp.gt.s32.totalorder %v1022, %v1034
        %v1130 = vsel %vm1129, %v1022, %v1034
        %vm1131 = vcmp.gt.s32.totalorder %v1024, %v1036
        %v1132 = vsel %vm1131, %v1024, %v1036
        %vm1133 = vcmp.gt.s32.totalorder %v1038, %v1050
        %v1134 = vsel %vm1133, %v1038, %v1050
        %vm1135 = vcmp.gt.s32.totalorder %v1040, %v1052
        %v1136 = vsel %vm1135, %v1040, %v1052
        %vm1137 = vcmp.gt.s32.totalorder %v1042, %v1054
        %v1138 = vsel %vm1137, %v1042, %v1054
        %vm1139 = vcmp.gt.s32.totalorder %v1044, %v1056
        %v1140 = vsel %vm1139, %v1044, %v1056
        %vm1141 = vcmp.gt.s32.totalorder %v1046, %v1058
        %v1142 = vsel %vm1141, %v1046, %v1058
        %vm1143 = vcmp.gt.s32.totalorder %v1048, %v1060
        %v1144 = vsel %vm1143, %v1048, %v1060
        %vm1145 = vcmp.gt.s32.totalorder %v1050, %v1062
        %v1146 = vsel %vm1145, %v1050, %v1062
        %vm1147 = vcmp.gt.s32.totalorder %v1052, %v1064
        %v1148 = vsel %vm1147, %v1052, %v1064
        %vm1149 = vcmp.gt.s32.totalorder %v1054, %v1066
        %v1150 = vsel %vm1149, %v1054, %v1066
        %vm1151 = vcmp.gt.s32.totalorder %v1056, %v1068
        %v1152 = vsel %vm1151, %v1056, %v1068
        %vm1153 = vcmp.gt.s32.totalorder %v1058, %v1070
        %v1154 = vsel %vm1153, %v1058, %v1070
        %vm1155 = vcmp.gt.s32.totalorder %v1060, %v1072
        %v1156 = vsel %vm1155, %v1060, %v1072
        %vm1157 = vcmp.gt.s32.totalorder %v1062, %v1074
        %v1158 = vsel %vm1157, %v1062, %v1074
        %vm1159 = vcmp.gt.s32.totalorder %v1064, %v1076
        %v1160 = vsel %vm1159, %v1064, %v1076
        %vm1161 = vcmp.gt.s32.totalorder %v1066, %v1078
        %v1162 = vsel %vm1161, %v1066, %v1078
        %vm1163 = vcmp.gt.s32.totalorder %v1068, %v1080
        %v1164 = vsel %vm1163, %v1068, %v1080
        %vm1165 = vcmp.gt.s32.totalorder %v1070, %v1082
        %v1166 = vsel %vm1165, %v1070, %v1082
        %vm1167 = vcmp.gt.s32.totalorder %v1072, %v1084
        %v1168 = vsel %vm1167, %v1072, %v1084
        %vm1169 = vcmp.gt.s32.totalorder %v1074, %v1086
        %v1170 = vsel %vm1169, %v1074, %v1086
        %vm1171 = vcmp.gt.s32.totalorder %v1076, %v1088
        %v1172 = vsel %vm1171, %v1076, %v1088
        %vm1173 = vcmp.gt.s32.totalorder %v1078, %v1090
        %v1174 = vsel %vm1173, %v1078, %v1090
        %vm1175 = vcmp.gt.s32.totalorder %v1092, %v1110
        %v1176 = vsel %vm1175, %v1092, %v1110
        %vm1177 = vcmp.gt.s32.totalorder %v1094, %v1112
        %v1178 = vsel %vm1177, %v1094, %v1112
        %vm1179 = vcmp.gt.s32.totalorder %v1096, %v1114
        %v1180 = vsel %vm1179, %v1096, %v1114
        %vm1181 = vcmp.gt.s32.totalorder %v1098, %v1116
        %v1182 = vsel %vm1181, %v1098, %v1116
        %vm1183 = vcmp.gt.s32.totalorder %v1100, %v1118
        %v1184 = vsel %vm1183, %v1100, %v1118
        %vm1185 = vcmp.gt.s32.totalorder %v1102, %v1120
        %v1186 = vsel %vm1185, %v1102, %v1120
        %vm1187 = vcmp.gt.s32.totalorder %v1104, %v1122
        %v1188 = vsel %vm1187, %v1104, %v1122
        %vm1189 = vcmp.gt.s32.totalorder %v1106, %v1124
        %v1190 = vsel %vm1189, %v1106, %v1124
        %vm1191 = vcmp.gt.s32.totalorder %v1108, %v1126
        %v1192 = vsel %vm1191, %v1108, %v1126
        %vm1193 = vcmp.gt.s32.totalorder %v1110, %v1128
        %v1194 = vsel %vm1193, %v1110, %v1128
        %vm1195 = vcmp.gt.s32.totalorder %v1112, %v1130
        %v1196 = vsel %vm1195, %v1112, %v1130
        %vm1197 = vcmp.gt.s32.totalorder %v1114, %v1132
        %v1198 = vsel %vm1197, %v1114, %v1132
        %vm1199 = vcmp.gt.s32.totalorder %v1134, %v1152
        %v1200 = vsel %vm1199, %v1134, %v1152
        %vm1201 = vcmp.gt.s32.totalorder %v1136, %v1154
        %v1202 = vsel %vm1201, %v1136, %v1154
        %vm1203 = vcmp.gt.s32.totalorder %v1138, %v1156
        %v1204 = vsel %vm1203, %v1138, %v1156
        %vm1205 = vcmp.gt.s32.totalorder %v1140, %v1158
        %v1206 = vsel %vm1205, %v1140, %v1158
        %vm1207 = vcmp.gt.s32.totalorder %v1142, %v1160
        %v1208 = vsel %vm1207, %v1142, %v1160
        %vm1209 = vcmp.gt.s32.totalorder %v1144, %v1162
        %v1210 = vsel %vm1209, %v1144, %v1162
        %vm1211 = vcmp.gt.s32.totalorder %v1146, %v1164
        %v1212 = vsel %vm1211, %v1146, %v1164
        %vm1213 = vcmp.gt.s32.totalorder %v1148, %v1166
        %v1214 = vsel %vm1213, %v1148, %v1166
        %vm1215 = vcmp.gt.s32.totalorder %v1150, %v1168
        %v1216 = vsel %vm1215, %v1150, %v1168
        %vm1217 = vcmp.gt.s32.totalorder %v1152, %v1170
        %v1218 = vsel %vm1217, %v1152, %v1170
        %vm1219 = vcmp.gt.s32.totalorder %v1154, %v1172
        %v1220 = vsel %vm1219, %v1154, %v1172
        %vm1221 = vcmp.gt.s32.totalorder %v1156, %v1174
        %v1222 = vsel %vm1221, %v1156, %v1174
        %vm1223 = vcmask 1046528
        %v1224 = vrot.slane %v1176, 1
        %v1225 = vrot.slane %v1178, 1
        %v1226 = vsel %vm1223, %v1224, %v1225
        %v1227 = vrot.slane %v1180, 1
        %v1228 = vsel %vm1223, %v1225, %v1227
        %v1229 = vrot.slane %v1182, 1
        %v1230 = vrot.slane %v1184, 1
        %v1231 = vsel %vm1223, %v1229, %v1230
        %v1232 = vrot.slane %v1186, 1
        %v1233 = vsel %vm1223, %v1230, %v1232
        %v1234 = vrot.slane %v1188, 1
        %v1235 = vrot.slane %v1190, 1
        %v1236 = vsel %vm1223, %v1234, %v1235
        %v1237 = vrot.slane %v1192, 1
        %v1238 = vsel %vm1223, %v1235, %v1237
        %v1239 = vrot.slane %v1194, 1
        %v1240 = vrot.slane %v1196, 1
        %v1241 = vsel %vm1223, %v1239, %v1240
        %v1242 = vrot.slane %v1198, 1
        %v1243 = vsel %vm1223, %v1240, %v1242
        %v1244 = vrot.slane %v1200, 1
        %v1245 = vrot.slane %v1202, 1
        %v1246 = vsel %vm1223, %v1244, %v1245
        %v1247 = vrot.slane %v1204, 1
        %v1248 = vsel %vm1223, %v1245, %v1247
        %v1249 = vrot.slane %v1206, 1
        %v1250 = vrot.slane %v1208, 1
        %v1251 = vsel %vm1223, %v1249, %v1250
        %v1252 = vrot.slane %v1210, 1
        %v1253 = vsel %vm1223, %v1250, %v1252
        %v1254 = vrot.slane %v1212, 1
        %v1255 = vrot.slane %v1214, 1
        %v1256 = vsel %vm1223, %v1254, %v1255
        %v1257 = vrot.slane %v1216, 1
        %v1258 = vsel %vm1223, %v1255, %v1257
        %v1259 = vrot.slane %v1218, 1
        %v1260 = vrot.slane %v1220, 1
        %v1261 = vsel %vm1223, %v1259, %v1260
        %v1262 = vrot.slane %v1222, 1
        %v1263 = vsel %vm1223, %v1260, %v1262
        %vm1264 = vcmp.gt.s32.totalorder %v1176, %v1226
        %v1265 = vsel %vm1264, %v1176, %v1226
        %vm1266 = vcmp.gt.s32.totalorder %v1178, %v1228
        %v1267 = vsel %vm1266, %v1178, %v1228
        %vm1268 = vcmp.gt.s32.totalorder %v1180, %v1227
        %v1269 = vsel %vm1268, %v1180, %v1227
        %vm1270 = vcmp.gt.s32.totalorder %v1182, %v1231
        %v1271 = vsel %vm1270, %v1182, %v1231
        %vm1272 = vcmp.gt.s32.totalorder %v1184, %v1233
        %v1273 = vsel %vm1272, %v1184, %v1233
        %vm1274 = vcmp.gt.s32.totalorder %v1186, %v1232
        %v1275 = vsel %vm1274, %v1186, %v1232
        %vm1276 = vcmp.gt.s32.totalorder %v1188, %v1236
        %v1277 = vsel %vm1276, %v1188, %v1236
        %vm1278 = vcmp.gt.s32.totalorder %v1190, %v1238
        %v1279 = vsel %vm1278, %v1190, %v1238
        %vm1280 = vcmp.gt.s32.totalorder %v1192, %v1237
        %v1281 = vsel %vm1280, %v1192, %v1237
        %vm1282 = vcmp.gt.s32.totalorder %v1194, %v1241
        %v1283 = vsel %vm1282, %v1194, %v1241
        %vm1284 = vcmp.gt.s32.totalorder %v1196, %v1243
        %v1285 = vsel %vm1284, %v1196, %v1243
        %vm1286 = vcmp.gt.s32.totalorder %v1198, %v1242
        %v1287 = vsel %vm1286, %v1198, %v1242
        %vm1288 = vcmp.gt.s32.totalorder %v1200, %v1246
        %v1289 = vsel %vm1288, %v1200, %v1246
        %vm1290 = vcmp.gt.s32.totalorder %v1202, %v1248
        %v1291 = vsel %vm1290, %v1202, %v1248
        %vm1292 = vcmp.gt.s32.totalorder %v1204, %v1247
        %v1293 = vsel %vm1292, %v1204, %v1247
        %vm1294 = vcmp.gt.s32.totalorder %v1206, %v1251
        %v1295 = vsel %vm1294, %v1206, %v1251
        %vm1296 = vcmp.gt.s32.totalorder %v1208, %v1253
        %v1297 = vsel %vm1296, %v1208, %v1253
        %vm1298 = vcmp.gt.s32.totalorder %v1210, %v1252
        %v1299 = vsel %vm1298, %v1210, %v1252
        %vm1300 = vcmp.gt.s32.totalorder %v1212, %v1256
        %v1301 = vsel %vm1300, %v1212, %v1256
        %vm1302 = vcmp.gt.s32.totalorder %v1214, %v1258
        %v1303 = vsel %vm1302, %v1214, %v1258
        %vm1304 = vcmp.gt.s32.totalorder %v1216, %v1257
        %v1305 = vsel %vm1304, %v1216, %v1257
        %vm1306 = vcmp.gt.s32.totalorder %v1218, %v1261
        %v1307 = vsel %vm1306, %v1218, %v1261
        %vm1308 = vcmp.gt.s32.totalorder %v1220, %v1263
        %v1309 = vsel %vm1308, %v1220, %v1263
        %vm1310 = vcmp.gt.s32.totalorder %v1222, %v1262
        %v1311 = vsel %vm1310, %v1222, %v1262
        %vm1312 = vcmask 1045504
        %v1313 = vrot.slane %v1265, 2
        %v1314 = vrot.slane %v1267, 2
        %v1315 = vsel %vm1312, %v1313, %v1314
        %v1316 = vrot.slane %v1269, 2
        %v1317 = vsel %vm1312, %v1314, %v1316
        %v1318 = vrot.slane %v1271, 2
        %v1319 = vrot.slane %v1273, 2
        %v1320 = vsel %vm1312, %v1318, %v1319
        %v1321 = vrot.slane %v1275, 2
        %v1322 = vsel %vm1312, %v1319, %v1321
        %v1323 = vrot.slane %v1277, 2
        %v1324 = vrot.slane %v1279, 2
        %v1325 = vsel %vm1312, %v1323, %v1324
        %v1326 = vrot.slane %v1281, 2
        %v1327 = vsel %vm1312, %v1324, %v1326
        %v1328 = vrot.slane %v1283, 2
        %v1329 = vrot.slane %v1285, 2
        %v1330 = vsel %vm1312, %v1328, %v1329
        %v1331 = vrot.slane %v1287, 2
        %v1332 = vsel %vm1312, %v1329, %v1331
        %v1333 = vrot.slane %v1289, 2
        %v1334 = vrot.slane %v1291, 2
        %v1335 = vsel %vm1312, %v1333, %v1334
        %v1336 = vrot.slane %v1293, 2
        %v1337 = vsel %vm1312, %v1334, %v1336
        %v1338 = vrot.slane %v1295, 2
        %v1339 = vrot.slane %v1297, 2
        %v1340 = vsel %vm1312, %v1338, %v1339
        %v1341 = vrot.slane %v1299, 2
        %v1342 = vsel %vm1312, %v1339, %v1341
        %v1343 = vrot.slane %v1301, 2
        %v1344 = vrot.slane %v1303, 2
        %v1345 = vsel %vm1312, %v1343, %v1344
        %v1346 = vrot.slane %v1305, 2
        %v1347 = vsel %vm1312, %v1344, %v1346
        %v1348 = vrot.slane %v1307, 2
        %v1349 = vrot.slane %v1309, 2
        %v1350 = vsel %vm1312, %v1348, %v1349
        %v1351 = vrot.slane %v1311, 2
        %v1352 = vsel %vm1312, %v1349, %v1351
        %vm1353 = vcmp.gt.s32.totalorder %v1265, %v1315
        %v1354 = vsel %vm1353, %v1265, %v1315
        %vm1355 = vcmp.gt.s32.totalorder %v1267, %v1317
        %v1356 = vsel %vm1355, %v1267, %v1317
        %vm1357 = vcmp.gt.s32.totalorder %v1269, %v1316
        %v1358 = vsel %vm1357, %v1269, %v1316
        %vm1359 = vcmp.gt.s32.totalorder %v1271, %v1320
        %v1360 = vsel %vm1359, %v1271, %v1320
        %vm1361 = vcmp.gt.s32.totalorder %v1273, %v1322
        %v1362 = vsel %vm1361, %v1273, %v1322
        %vm1363 = vcmp.gt.s32.totalorder %v1275, %v1321
        %v1364 = vsel %vm1363, %v1275, %v1321
        %vm1365 = vcmp.gt.s32.totalorder %v1277, %v1325
        %v1366 = vsel %vm1365, %v1277, %v1325
        %vm1367 = vcmp.gt.s32.totalorder %v1279, %v1327
        %v1368 = vsel %vm1367, %v1279, %v1327
        %vm1369 = vcmp.gt.s32.totalorder %v1281, %v1326
        %v1370 = vsel %vm1369, %v1281, %v1326
        %vm1371 = vcmp.gt.s32.totalorder %v1283, %v1330
        %v1372 = vsel %vm1371, %v1283, %v1330
        %vm1373 = vcmp.gt.s32.totalorder %v1285, %v1332
        %v1374 = vsel %vm1373, %v1285, %v1332
        %vm1375 = vcmp.gt.s32.totalorder %v1287, %v1331
        %v1376 = vsel %vm1375, %v1287, %v1331
        %vm1377 = vcmp.gt.s32.totalorder %v1289, %v1335
        %v1378 = vsel %vm1377, %v1289, %v1335
        %vm1379 = vcmp.gt.s32.totalorder %v1291, %v1337
        %v1380 = vsel %vm1379, %v1291, %v1337
        %vm1381 = vcmp.gt.s32.totalorder %v1293, %v1336
        %v1382 = vsel %vm1381, %v1293, %v1336
        %vm1383 = vcmp.gt.s32.totalorder %v1295, %v1340
        %v1384 = vsel %vm1383, %v1295, %v1340
        %vm1385 = vcmp.gt.s32.totalorder %v1297, %v1342
        %v1386 = vsel %vm1385, %v1297, %v1342
        %vm1387 = vcmp.gt.s32.totalorder %v1299, %v1341
        %v1388 = vsel %vm1387, %v1299, %v1341
        %vm1389 = vcmp.gt.s32.totalorder %v1301, %v1345
        %v1390 = vsel %vm1389, %v1301, %v1345
        %vm1391 = vcmp.gt.s32.totalorder %v1303, %v1347
        %v1392 = vsel %vm1391, %v1303, %v1347
        %vm1393 = vcmp.gt.s32.totalorder %v1305, %v1346
        %v1394 = vsel %vm1393, %v1305, %v1346
        %vm1395 = vcmp.gt.s32.totalorder %v1307, %v1350
        %v1396 = vsel %vm1395, %v1307, %v1350
        %vm1397 = vcmp.gt.s32.totalorder %v1309, %v1352
        %v1398 = vsel %vm1397, %v1309, %v1352
        %vm1399 = vcmp.gt.s32.totalorder %v1311, %v1351
        %v1400 = vsel %vm1399, %v1311, %v1351
        %vm1401 = vcmask 1044480
        %v1402 = vrot.slane %v1354, 3
        %v1403 = vrot.slane %v1356, 3
        %v1404 = vsel %vm1401, %v1402, %v1403
        %v1405 = vrot.slane %v1358, 3
        %v1406 = vsel %vm1401, %v1403, %v1405
        %v1407 = vrot.slane %v1360, 3
        %v1408 = vrot.slane %v1362, 3
        %v1409 = vsel %vm1401, %v1407, %v1408
        %v1410 = vrot.slane %v1364, 3
        %v1411 = vsel %vm1401, %v1408, %v1410
        %v1412 = vrot.slane %v1366, 3
        %v1413 = vrot.slane %v1368, 3
        %v1414 = vsel %vm1401, %v1412, %v1413
        %v1415 = vrot.slane %v1370, 3
        %v1416 = vsel %vm1401, %v1413, %v1415
        %v1417 = vrot.slane %v1372, 3
        %v1418 = vrot.slane %v1374, 3
        %v1419 = vsel %vm1401, %v1417, %v1418
        %v1420 = vrot.slane %v1376, 3
        %v1421 = vsel %vm1401, %v1418, %v1420
        %v1422 = vrot.slane %v1378, 3
        %v1423 = vrot.slane %v1380, 3
        %v1424 = vsel %vm1401, %v1422, %v1423
        %v1425 = vrot.slane %v1382, 3
        %v1426 = vsel %vm1401, %v1423, %v1425
        %v1427 = vrot.slane %v1384, 3
        %v1428 = vrot.slane %v1386, 3
        %v1429 = vsel %vm1401, %v1427, %v1428
        %v1430 = vrot.slane %v1388, 3
        %v1431 = vsel %vm1401, %v1428, %v1430
        %v1432 = vrot.slane %v1390, 3
        %v1433 = vrot.slane %v1392, 3
        %v1434 = vsel %vm1401, %v1432, %v1433
        %v1435 = vrot.slane %v1394, 3
        %v1436 = vsel %vm1401, %v1433, %v1435
        %v1437 = vrot.slane %v1396, 3
        %v1438 = vrot.slane %v1398, 3
        %v1439 = vsel %vm1401, %v1437, %v1438
        %v1440 = vrot.slane %v1400, 3
        %v1441 = vsel %vm1401, %v1438, %v1440
        %vm1442 = vcmp.gt.s32.totalorder %v1354, %v1404
        %v1443 = vsel %vm1442, %v1354, %v1404
        %vm1444 = vcmp.gt.s32.totalorder %v1356, %v1406
        %v1445 = vsel %vm1444, %v1356, %v1406
        %vm1446 = vcmp.gt.s32.totalorder %v1360, %v1409
        %v1447 = vsel %vm1446, %v1360, %v1409
        %vm1448 = vcmp.gt.s32.totalorder %v1362, %v1411
        %v1449 = vsel %vm1448, %v1362, %v1411
        %vm1450 = vcmp.gt.s32.totalorder %v1366, %v1414
        %v1451 = vsel %vm1450, %v1366, %v1414
        %vm1452 = vcmp.gt.s32.totalorder %v1368, %v1416
        %v1453 = vsel %vm1452, %v1368, %v1416
        %vm1454 = vcmp.gt.s32.totalorder %v1372, %v1419
        %v1455 = vsel %vm1454, %v1372, %v1419
        %vm1456 = vcmp.gt.s32.totalorder %v1374, %v1421
        %v1457 = vsel %vm1456, %v1374, %v1421
        %vm1458 = vcmp.gt.s32.totalorder %v1378, %v1424
        %v1459 = vsel %vm1458, %v1378, %v1424
        %vm1460 = vcmp.gt.s32.totalorder %v1380, %v1426
        %v1461 = vsel %vm1460, %v1380, %v1426
        %vm1462 = vcmp.gt.s32.totalorder %v1384, %v1429
        %v1463 = vsel %vm1462, %v1384, %v1429
        %vm1464 = vcmp.gt.s32.totalorder %v1386, %v1431
        %v1465 = vsel %vm1464, %v1386, %v1431
        %vm1466 = vcmp.gt.s32.totalorder %v1390, %v1434
        %v1467 = vsel %vm1466, %v1390, %v1434
        %vm1468 = vcmp.gt.s32.totalorder %v1392, %v1436
        %v1469 = vsel %vm1468, %v1392, %v1436
        %vm1470 = vcmp.gt.s32.totalorder %v1396, %v1439
        %v1471 = vsel %vm1470, %v1396, %v1439
        %vm1472 = vcmp.gt.s32.totalorder %v1398, %v1441
        %v1473 = vsel %vm1472, %v1398, %v1441
        %1474 = vrot.lane.b32.xlu0 %v1443, 127
        %v1475 = vpop.permute.xlu0 %1474
        %1476 = vrot.lane.b32.xlu0 %v1445, 127
        %v1477 = vpop.permute.xlu0 %1476
        %1478 = vrot.lane.b32.xlu0 %v1447, 127
        %v1479 = vpop.permute.xlu0 %1478
        %1480 = vrot.lane.b32.xlu0 %v1449, 127
        %v1481 = vpop.permute.xlu0 %1480
        %1482 = vrot.lane.b32.xlu0 %v1451, 127
        %v1483 = vpop.permute.xlu0 %1482
        %1484 = vrot.lane.b32.xlu0 %v1453, 127
        %v1485 = vpop.permute.xlu0 %1484
        %1486 = vrot.lane.b32.xlu0 %v1455, 127
        %v1487 = vpop.permute.xlu0 %1486
        %1488 = vrot.lane.b32.xlu0 %v1457, 127
        %v1489 = vpop.permute.xlu0 %1488
        %1490 = vrot.lane.b32.xlu0 %v1459, 127
        %v1491 = vpop.permute.xlu0 %1490
        %1492 = vrot.lane.b32.xlu0 %v1461, 127
        %v1493 = vpop.permute.xlu0 %1492
        %1494 = vrot.lane.b32.xlu0 %v1463, 127
        %v1495 = vpop.permute.xlu0 %1494
        %1496 = vrot.lane.b32.xlu0 %v1465, 127
        %v1497 = vpop.permute.xlu0 %1496
        %1498 = vrot.lane.b32.xlu0 %v1467, 127
        %v1499 = vpop.permute.xlu0 %1498
        %1500 = vrot.lane.b32.xlu0 %v1469, 127
        %v1501 = vpop.permute.xlu0 %1500
        %1502 = vrot.lane.b32.xlu0 %v1471, 127
        %v1503 = vpop.permute.xlu0 %1502
        %1504 = vrot.lane.b32.xlu0 %v1473, 127
        %v1505 = vpop.permute.xlu0 %1504
        %vm1506 = vcmp.gt.s32.totalorder %v1443, %v1475
        %v1507 = vsel %vm1506, %v1443, %v1475
        %vm1508 = vcmp.gt.s32.totalorder %v1445, %v1477
        %v1509 = vsel %vm1508, %v1445, %v1477
        %vm1510 = vcmp.gt.s32.totalorder %v1447, %v1479
        %v1511 = vsel %vm1510, %v1447, %v1479
        %vm1512 = vcmp.gt.s32.totalorder %v1449, %v1481
        %v1513 = vsel %vm1512, %v1449, %v1481
        %vm1514 = vcmp.gt.s32.totalorder %v1451, %v1483
        %v1515 = vsel %vm1514, %v1451, %v1483
        %vm1516 = vcmp.gt.s32.totalorder %v1453, %v1485
        %v1517 = vsel %vm1516, %v1453, %v1485
        %vm1518 = vcmp.gt.s32.totalorder %v1455, %v1487
        %v1519 = vsel %vm1518, %v1455, %v1487
        %vm1520 = vcmp.gt.s32.totalorder %v1457, %v1489
        %v1521 = vsel %vm1520, %v1457, %v1489
        %vm1522 = vcmp.gt.s32.totalorder %v1459, %v1491
        %v1523 = vsel %vm1522, %v1459, %v1491
        %vm1524 = vcmp.gt.s32.totalorder %v1461, %v1493
        %v1525 = vsel %vm1524, %v1461, %v1493
        %vm1526 = vcmp.gt.s32.totalorder %v1463, %v1495
        %v1527 = vsel %vm1526, %v1463, %v1495
        %vm1528 = vcmp.gt.s32.totalorder %v1465, %v1497
        %v1529 = vsel %vm1528, %v1465, %v1497
        %vm1530 = vcmp.gt.s32.totalorder %v1467, %v1499
        %v1531 = vsel %vm1530, %v1467, %v1499
        %vm1532 = vcmp.gt.s32.totalorder %v1469, %v1501
        %v1533 = vsel %vm1532, %v1469, %v1501
        %vm1534 = vcmp.gt.s32.totalorder %v1471, %v1503
        %v1535 = vsel %vm1534, %v1471, %v1503
        %vm1536 = vcmp.gt.s32.totalorder %v1473, %v1505
        %v1537 = vsel %vm1536, %v1473, %v1505
        %1538 = vrot.lane.b32.xlu0 %v1507, 126
        %v1539 = vpop.permute.xlu0 %1538
        %1540 = vrot.lane.b32.xlu0 %v1509, 126
        %v1541 = vpop.permute.xlu0 %1540
        %1542 = vrot.lane.b32.xlu0 %v1511, 126
        %v1543 = vpop.permute.xlu0 %1542
        %1544 = vrot.lane.b32.xlu0 %v1513, 126
        %v1545 = vpop.permute.xlu0 %1544
        %1546 = vrot.lane.b32.xlu0 %v1515, 126
        %v1547 = vpop.permute.xlu0 %1546
        %1548 = vrot.lane.b32.xlu0 %v1517, 126
        %v1549 = vpop.permute.xlu0 %1548
        %1550 = vrot.lane.b32.xlu0 %v1519, 126
        %v1551 = vpop.permute.xlu0 %1550
        %1552 = vrot.lane.b32.xlu0 %v1521, 126
        %v1553 = vpop.permute.xlu0 %1552
        %1554 = vrot.lane.b32.xlu0 %v1523, 126
        %v1555 = vpop.permute.xlu0 %1554
        %1556 = vrot.lane.b32.xlu0 %v1525, 126
        %v1557 = vpop.permute.xlu0 %1556
        %1558 = vrot.lane.b32.xlu0 %v1527, 126
        %v1559 = vpop.permute.xlu0 %1558
        %1560 = vrot.lane.b32.xlu0 %v1529, 126
        %v1561 = vpop.permute.xlu0 %1560
        %1562 = vrot.lane.b32.xlu0 %v1531, 126
        %v1563 = vpop.permute.xlu0 %1562
        %1564 = vrot.lane.b32.xlu0 %v1533, 126
        %v1565 = vpop.permute.xlu0 %1564
        %1566 = vrot.lane.b32.xlu0 %v1535, 126
        %v1567 = vpop.permute.xlu0 %1566
        %1568 = vrot.lane.b32.xlu0 %v1537, 126
        %v1569 = vpop.permute.xlu0 %1568
        %vm1570 = vcmp.gt.s32.totalorder %v1507, %v1539
        %v1571 = vsel %vm1570, %v1507, %v1539
        %vm1572 = vcmp.gt.s32.totalorder %v1509, %v1541
        %v1573 = vsel %vm1572, %v1509, %v1541
        %vm1574 = vcmp.gt.s32.totalorder %v1511, %v1543
        %v1575 = vsel %vm1574, %v1511, %v1543
        %vm1576 = vcmp.gt.s32.totalorder %v1513, %v1545
        %v1577 = vsel %vm1576, %v1513, %v1545
        %vm1578 = vcmp.gt.s32.totalorder %v1515, %v1547
        %v1579 = vsel %vm1578, %v1515, %v1547
        %vm1580 = vcmp.gt.s32.totalorder %v1517, %v1549
        %v1581 = vsel %vm1580, %v1517, %v1549
        %vm1582 = vcmp.gt.s32.totalorder %v1519, %v1551
        %v1583 = vsel %vm1582, %v1519, %v1551
        %vm1584 = vcmp.gt.s32.totalorder %v1521, %v1553
        %v1585 = vsel %vm1584, %v1521, %v1553
        %vm1586 = vcmp.gt.s32.totalorder %v1523, %v1555
        %v1587 = vsel %vm1586, %v1523, %v1555
        %vm1588 = vcmp.gt.s32.totalorder %v1525, %v1557
        %v1589 = vsel %vm1588, %v1525, %v1557
        %vm1590 = vcmp.gt.s32.totalorder %v1527, %v1559
        %v1591 = vsel %vm1590, %v1527, %v1559
        %vm1592 = vcmp.gt.s32.totalorder %v1529, %v1561
        %v1593 = vsel %vm1592, %v1529, %v1561
        %vm1594 = vcmp.gt.s32.totalorder %v1531, %v1563
        %v1595 = vsel %vm1594, %v1531, %v1563
        %vm1596 = vcmp.gt.s32.totalorder %v1533, %v1565
        %v1597 = vsel %vm1596, %v1533, %v1565
        %vm1598 = vcmp.gt.s32.totalorder %v1535, %v1567
        %v1599 = vsel %vm1598, %v1535, %v1567
        %vm1600 = vcmp.gt.s32.totalorder %v1537, %v1569
        %v1601 = vsel %vm1600, %v1537, %v1569
        %1602 = vrot.lane.b32.xlu0 %v1571, 125
        %v1603 = vpop.permute.xlu0 %1602
        %1604 = vrot.lane.b32.xlu0 %v1573, 125
        %v1605 = vpop.permute.xlu0 %1604
        %1606 = vrot.lane.b32.xlu0 %v1575, 125
        %v1607 = vpop.permute.xlu0 %1606
        %1608 = vrot.lane.b32.xlu0 %v1577, 125
        %v1609 = vpop.permute.xlu0 %1608
        %1610 = vrot.lane.b32.xlu0 %v1579, 125
        %v1611 = vpop.permute.xlu0 %1610
        %1612 = vrot.lane.b32.xlu0 %v1581, 125
        %v1613 = vpop.permute.xlu0 %1612
        %1614 = vrot.lane.b32.xlu0 %v1583, 125
        %v1615 = vpop.permute.xlu0 %1614
        %1616 = vrot.lane.b32.xlu0 %v1585, 125
        %v1617 = vpop.permute.xlu0 %1616
        %1618 = vrot.lane.b32.xlu0 %v1587, 125
        %v1619 = vpop.permute.xlu0 %1618
        %1620 = vrot.lane.b32.xlu0 %v1589, 125
        %v1621 = vpop.permute.xlu0 %1620
        %1622 = vrot.lane.b32.xlu0 %v1591, 125
        %v1623 = vpop.permute.xlu0 %1622
        %1624 = vrot.lane.b32.xlu0 %v1593, 125
        %v1625 = vpop.permute.xlu0 %1624
        %1626 = vrot.lane.b32.xlu0 %v1595, 125
        %v1627 = vpop.permute.xlu0 %1626
        %1628 = vrot.lane.b32.xlu0 %v1597, 125
        %v1629 = vpop.permute.xlu0 %1628
        %1630 = vrot.lane.b32.xlu0 %v1599, 125
        %v1631 = vpop.permute.xlu0 %1630
        %1632 = vrot.lane.b32.xlu0 %v1601, 125
        %v1633 = vpop.permute.xlu0 %1632
        %vm1634 = vcmp.gt.s32.totalorder %v1571, %v1603
        %v1635 = vsel %vm1634, %v1571, %v1603
        %vm1636 = vcmp.gt.s32.totalorder %v1573, %v1605
        %v1637 = vsel %vm1636, %v1573, %v1605
        %vm1638 = vcmp.gt.s32.totalorder %v1575, %v1607
        %v1639 = vsel %vm1638, %v1575, %v1607
        %vm1640 = vcmp.gt.s32.totalorder %v1577, %v1609
        %v1641 = vsel %vm1640, %v1577, %v1609
        %vm1642 = vcmp.gt.s32.totalorder %v1579, %v1611
        %v1643 = vsel %vm1642, %v1579, %v1611
        %vm1644 = vcmp.gt.s32.totalorder %v1581, %v1613
        %v1645 = vsel %vm1644, %v1581, %v1613
        %vm1646 = vcmp.gt.s32.totalorder %v1583, %v1615
        %v1647 = vsel %vm1646, %v1583, %v1615
        %vm1648 = vcmp.gt.s32.totalorder %v1585, %v1617
        %v1649 = vsel %vm1648, %v1585, %v1617
        %vm1650 = vcmp.gt.s32.totalorder %v1587, %v1619
        %v1651 = vsel %vm1650, %v1587, %v1619
        %vm1652 = vcmp.gt.s32.totalorder %v1589, %v1621
        %v1653 = vsel %vm1652, %v1589, %v1621
        %vm1654 = vcmp.gt.s32.totalorder %v1591, %v1623
        %v1655 = vsel %vm1654, %v1591, %v1623
        %vm1656 = vcmp.gt.s32.totalorder %v1593, %v1625
        %v1657 = vsel %vm1656, %v1593, %v1625
        %vm1658 = vcmp.gt.s32.totalorder %v1595, %v1627
        %v1659 = vsel %vm1658, %v1595, %v1627
        %vm1660 = vcmp.gt.s32.totalorder %v1597, %v1629
        %v1661 = vsel %vm1660, %v1597, %v1629
        %vm1662 = vcmp.gt.s32.totalorder %v1599, %v1631
        %v1663 = vsel %vm1662, %v1599, %v1631
        %vm1664 = vcmp.gt.s32.totalorder %v1601, %v1633
        %v1665 = vsel %vm1664, %v1601, %v1633
        %vm1666 = vcmp.lt.s32.totalorder %v923, %v926
        %v1667 = vsel %vm1666, %v923, %v926
        %vm1668 = vcmp.lt.s32.totalorder %v924, %v927
        %v1669 = vsel %vm1668, %v924, %v927
        %vm1670 = vcmp.lt.s32.totalorder %v925, %v928
        %v1671 = vsel %vm1670, %v925, %v928
        %vm1672 = vcmp.lt.s32.totalorder %v926, %v929
        %v1673 = vsel %vm1672, %v926, %v929
        %vm1674 = vcmp.lt.s32.totalorder %v927, %v930
        %v1675 = vsel %vm1674, %v927, %v930
        %vm1676 = vcmp.lt.s32.totalorder %v928, %v931
        %v1677 = vsel %vm1676, %v928, %v931
        %vm1678 = vcmp.lt.s32.totalorder %v929, %v932
        %v1679 = vsel %vm1678, %v929, %v932
        %vm1680 = vcmp.lt.s32.totalorder %v930, %v933
        %v1681 = vsel %vm1680, %v930, %v933
        %vm1682 = vcmp.lt.s32.totalorder %v931, %v934
        %v1683 = vsel %vm1682, %v931, %v934
        %vm1684 = vcmp.lt.s32.totalorder %v932, %v935
        %v1685 = vsel %vm1684, %v932, %v935
        %vm1686 = vcmp.lt.s32.totalorder %v933, %v936
        %v1687 = vsel %vm1686, %v933, %v936
        %vm1688 = vcmp.lt.s32.totalorder %v934, %v937
        %v1689 = vsel %vm1688, %v934, %v937
        %vm1690 = vcmp.lt.s32.totalorder %v935, %v938
        %v1691 = vsel %vm1690, %v935, %v938
        %vm1692 = vcmp.lt.s32.totalorder %v936, %v939
        %v1693 = vsel %vm1692, %v936, %v939
        %vm1694 = vcmp.lt.s32.totalorder %v937, %v940
        %v1695 = vsel %vm1694, %v937, %v940
        %vm1696 = vcmp.lt.s32.totalorder %v938, %v941
        %v1697 = vsel %vm1696, %v938, %v941
        %vm1698 = vcmp.lt.s32.totalorder %v939, %v942
        %v1699 = vsel %vm1698, %v939, %v942
        %vm1700 = vcmp.lt.s32.totalorder %v940, %v943
        %v1701 = vsel %vm1700, %v940, %v943
        %vm1702 = vcmp.lt.s32.totalorder %v941, %v944
        %v1703 = vsel %vm1702, %v941, %v944
        %vm1704 = vcmp.lt.s32.totalorder %v942, %v945
        %v1705 = vsel %vm1704, %v942, %v945
        %vm1706 = vcmp.lt.s32.totalorder %v943, %v946
        %v1707 = vsel %vm1706, %v943, %v946
        %vm1708 = vcmp.lt.s32.totalorder %v944, %v947
        %v1709 = vsel %vm1708, %v944, %v947
        %vm1710 = vcmp.lt.s32.totalorder %v945, %v948
        %v1711 = vsel %vm1710, %v945, %v948
        %vm1712 = vcmp.lt.s32.totalorder %v946, %v949
        %v1713 = vsel %vm1712, %v946, %v949
        %vm1714 = vcmp.lt.s32.totalorder %v947, %v950
        %v1715 = vsel %vm1714, %v947, %v950
        %vm1716 = vcmp.lt.s32.totalorder %v948, %v951
        %v1717 = vsel %vm1716, %v948, %v951
        %vm1718 = vcmp.lt.s32.totalorder %v949, %v952
        %v1719 = vsel %vm1718, %v949, %v952
        %vm1720 = vcmp.lt.s32.totalorder %v953, %v956
        %v1721 = vsel %vm1720, %v953, %v956
        %vm1722 = vcmp.lt.s32.totalorder %v954, %v957
        %v1723 = vsel %vm1722, %v954, %v957
        %vm1724 = vcmp.lt.s32.totalorder %v955, %v958
        %v1725 = vsel %vm1724, %v955, %v958
        %vm1726 = vcmp.lt.s32.totalorder %v956, %v959
        %v1727 = vsel %vm1726, %v956, %v959
        %vm1728 = vcmp.lt.s32.totalorder %v957, %v960
        %v1729 = vsel %vm1728, %v957, %v960
        %vm1730 = vcmp.lt.s32.totalorder %v958, %v961
        %v1731 = vsel %vm1730, %v958, %v961
        %vm1732 = vcmp.lt.s32.totalorder %v959, %v962
        %v1733 = vsel %vm1732, %v959, %v962
        %vm1734 = vcmp.lt.s32.totalorder %v960, %v963
        %v1735 = vsel %vm1734, %v960, %v963
        %vm1736 = vcmp.lt.s32.totalorder %v961, %v964
        %v1737 = vsel %vm1736, %v961, %v964
        %vm1738 = vcmp.lt.s32.totalorder %v962, %v965
        %v1739 = vsel %vm1738, %v962, %v965
        %vm1740 = vcmp.lt.s32.totalorder %v963, %v966
        %v1741 = vsel %vm1740, %v963, %v966
        %vm1742 = vcmp.lt.s32.totalorder %v964, %v967
        %v1743 = vsel %vm1742, %v964, %v967
        %vm1744 = vcmp.lt.s32.totalorder %v965, %v968
        %v1745 = vsel %vm1744, %v965, %v968
        %vm1746 = vcmp.lt.s32.totalorder %v966, %v969
        %v1747 = vsel %vm1746, %v966, %v969
        %vm1748 = vcmp.lt.s32.totalorder %v967, %v970
        %v1749 = vsel %vm1748, %v967, %v970
        %vm1750 = vcmp.lt.s32.totalorder %v968, %v971
        %v1751 = vsel %vm1750, %v968, %v971
        %vm1752 = vcmp.lt.s32.totalorder %v969, %v972
        %v1753 = vsel %vm1752, %v969, %v972
        %vm1754 = vcmp.lt.s32.totalorder %v970, %v973
        %v1755 = vsel %vm1754, %v970, %v973
        %vm1756 = vcmp.lt.s32.totalorder %v971, %v974
        %v1757 = vsel %vm1756, %v971, %v974
        %vm1758 = vcmp.lt.s32.totalorder %v972, %v975
        %v1759 = vsel %vm1758, %v972, %v975
        %vm1760 = vcmp.lt.s32.totalorder %v973, %v976
        %v1761 = vsel %vm1760, %v973, %v976
        %vm1762 = vcmp.lt.s32.totalorder %v974, %v977
        %v1763 = vsel %vm1762, %v974, %v977
        %vm1764 = vcmp.lt.s32.totalorder %v975, %v978
        %v1765 = vsel %vm1764, %v975, %v978
        %vm1766 = vcmp.lt.s32.totalorder %v976, %v979
        %v1767 = vsel %vm1766, %v976, %v979
        %vm1768 = vcmp.lt.s32.totalorder %v977, %v980
        %v1769 = vsel %vm1768, %v977, %v980
        %vm1770 = vcmp.lt.s32.totalorder %v978, %v981
        %v1771 = vsel %vm1770, %v978, %v981
        %vm1772 = vcmp.lt.s32.totalorder %v979, %v982
        %v1773 = vsel %vm1772, %v979, %v982
        %vm1774 = vcmp.lt.s32.totalorder %v1667, %v1679
        %v1775 = vsel %vm1774, %v1667, %v1679
        %vm1776 = vcmp.lt.s32.totalorder %v1669, %v1681
        %v1777 = vsel %vm1776, %v1669, %v1681
        %vm1778 = vcmp.lt.s32.totalorder %v1671, %v1683
        %v1779 = vsel %vm1778, %v1671, %v1683
        %vm1780 = vcmp.lt.s32.totalorder %v1673, %v1685
        %v1781 = vsel %vm1780, %v1673, %v1685
        %vm1782 = vcmp.lt.s32.totalorder %v1675, %v1687
        %v1783 = vsel %vm1782, %v1675, %v1687
        %vm1784 = vcmp.lt.s32.totalorder %v1677, %v1689
        %v1785 = vsel %vm1784, %v1677, %v1689
        %vm1786 = vcmp.lt.s32.totalorder %v1679, %v1691
        %v1787 = vsel %vm1786, %v1679, %v1691
        %vm1788 = vcmp.lt.s32.totalorder %v1681, %v1693
        %v1789 = vsel %vm1788, %v1681, %v1693
        %vm1790 = vcmp.lt.s32.totalorder %v1683, %v1695
        %v1791 = vsel %vm1790, %v1683, %v1695
        %vm1792 = vcmp.lt.s32.totalorder %v1685, %v1697
        %v1793 = vsel %vm1792, %v1685, %v1697
        %vm1794 = vcmp.lt.s32.totalorder %v1687, %v1699
        %v1795 = vsel %vm1794, %v1687, %v1699
        %vm1796 = vcmp.lt.s32.totalorder %v1689, %v1701
        %v1797 = vsel %vm1796, %v1689, %v1701
        %vm1798 = vcmp.lt.s32.totalorder %v1691, %v1703
        %v1799 = vsel %vm1798, %v1691, %v1703
        %vm1800 = vcmp.lt.s32.totalorder %v1693, %v1705
        %v1801 = vsel %vm1800, %v1693, %v1705
        %vm1802 = vcmp.lt.s32.totalorder %v1695, %v1707
        %v1803 = vsel %vm1802, %v1695, %v1707
        %vm1804 = vcmp.lt.s32.totalorder %v1697, %v1709
        %v1805 = vsel %vm1804, %v1697, %v1709
        %vm1806 = vcmp.lt.s32.totalorder %v1699, %v1711
        %v1807 = vsel %vm1806, %v1699, %v1711
        %vm1808 = vcmp.lt.s32.totalorder %v1701, %v1713
        %v1809 = vsel %vm1808, %v1701, %v1713
        %vm1810 = vcmp.lt.s32.totalorder %v1703, %v1715
        %v1811 = vsel %vm1810, %v1703, %v1715
        %vm1812 = vcmp.lt.s32.totalorder %v1705, %v1717
        %v1813 = vsel %vm1812, %v1705, %v1717
        %vm1814 = vcmp.lt.s32.totalorder %v1707, %v1719
        %v1815 = vsel %vm1814, %v1707, %v1719
        %vm1816 = vcmp.lt.s32.totalorder %v1721, %v1733
        %v1817 = vsel %vm1816, %v1721, %v1733
        %vm1818 = vcmp.lt.s32.totalorder %v1723, %v1735
        %v1819 = vsel %vm1818, %v1723, %v1735
        %vm1820 = vcmp.lt.s32.totalorder %v1725, %v1737
        %v1821 = vsel %vm1820, %v1725, %v1737
        %vm1822 = vcmp.lt.s32.totalorder %v1727, %v1739
        %v1823 = vsel %vm1822, %v1727, %v1739
        %vm1824 = vcmp.lt.s32.totalorder %v1729, %v1741
        %v1825 = vsel %vm1824, %v1729, %v1741
        %vm1826 = vcmp.lt.s32.totalorder %v1731, %v1743
        %v1827 = vsel %vm1826, %v1731, %v1743
        %vm1828 = vcmp.lt.s32.totalorder %v1733, %v1745
        %v1829 = vsel %vm1828, %v1733, %v1745
        %vm1830 = vcmp.lt.s32.totalorder %v1735, %v1747
        %v1831 = vsel %vm1830, %v1735, %v1747
        %vm1832 = vcmp.lt.s32.totalorder %v1737, %v1749
        %v1833 = vsel %vm1832, %v1737, %v1749
        %vm1834 = vcmp.lt.s32.totalorder %v1739, %v1751
        %v1835 = vsel %vm1834, %v1739, %v1751
        %vm1836 = vcmp.lt.s32.totalorder %v1741, %v1753
        %v1837 = vsel %vm1836, %v1741, %v1753
        %vm1838 = vcmp.lt.s32.totalorder %v1743, %v1755
        %v1839 = vsel %vm1838, %v1743, %v1755
        %vm1840 = vcmp.lt.s32.totalorder %v1745, %v1757
        %v1841 = vsel %vm1840, %v1745, %v1757
        %vm1842 = vcmp.lt.s32.totalorder %v1747, %v1759
        %v1843 = vsel %vm1842, %v1747, %v1759
        %vm1844 = vcmp.lt.s32.totalorder %v1749, %v1761
        %v1845 = vsel %vm1844, %v1749, %v1761
        %vm1846 = vcmp.lt.s32.totalorder %v1751, %v1763
        %v1847 = vsel %vm1846, %v1751, %v1763
        %vm1848 = vcmp.lt.s32.totalorder %v1753, %v1765
        %v1849 = vsel %vm1848, %v1753, %v1765
        %vm1850 = vcmp.lt.s32.totalorder %v1755, %v1767
        %v1851 = vsel %vm1850, %v1755, %v1767
        %vm1852 = vcmp.lt.s32.totalorder %v1757, %v1769
        %v1853 = vsel %vm1852, %v1757, %v1769
        %vm1854 = vcmp.lt.s32.totalorder %v1759, %v1771
        %v1855 = vsel %vm1854, %v1759, %v1771
        %vm1856 = vcmp.lt.s32.totalorder %v1761, %v1773
        %v1857 = vsel %vm1856, %v1761, %v1773
        %vm1858 = vcmp.lt.s32.totalorder %v1775, %v1793
        %v1859 = vsel %vm1858, %v1775, %v1793
        %vm1860 = vcmp.lt.s32.totalorder %v1777, %v1795
        %v1861 = vsel %vm1860, %v1777, %v1795
        %vm1862 = vcmp.lt.s32.totalorder %v1779, %v1797
        %v1863 = vsel %vm1862, %v1779, %v1797
        %vm1864 = vcmp.lt.s32.totalorder %v1781, %v1799
        %v1865 = vsel %vm1864, %v1781, %v1799
        %vm1866 = vcmp.lt.s32.totalorder %v1783, %v1801
        %v1867 = vsel %vm1866, %v1783, %v1801
        %vm1868 = vcmp.lt.s32.totalorder %v1785, %v1803
        %v1869 = vsel %vm1868, %v1785, %v1803
        %vm1870 = vcmp.lt.s32.totalorder %v1787, %v1805
        %v1871 = vsel %vm1870, %v1787, %v1805
        %vm1872 = vcmp.lt.s32.totalorder %v1789, %v1807
        %v1873 = vsel %vm1872, %v1789, %v1807
        %vm1874 = vcmp.lt.s32.totalorder %v1791, %v1809
        %v1875 = vsel %vm1874, %v1791, %v1809
        %vm1876 = vcmp.lt.s32.totalorder %v1793, %v1811
        %v1877 = vsel %vm1876, %v1793, %v1811
        %vm1878 = vcmp.lt.s32.totalorder %v1795, %v1813
        %v1879 = vsel %vm1878, %v1795, %v1813
        %vm1880 = vcmp.lt.s32.totalorder %v1797, %v1815
        %v1881 = vsel %vm1880, %v1797, %v1815
        %vm1882 = vcmp.lt.s32.totalorder %v1817, %v1835
        %v1883 = vsel %vm1882, %v1817, %v1835
        %vm1884 = vcmp.lt.s32.totalorder %v1819, %v1837
        %v1885 = vsel %vm1884, %v1819, %v1837
        %vm1886 = vcmp.lt.s32.totalorder %v1821, %v1839
        %v1887 = vsel %vm1886, %v1821, %v1839
        %vm1888 = vcmp.lt.s32.totalorder %v1823, %v1841
        %v1889 = vsel %vm1888, %v1823, %v1841
        %vm1890 = vcmp.lt.s32.totalorder %v1825, %v1843
        %v1891 = vsel %vm1890, %v1825, %v1843
        %vm1892 = vcmp.lt.s32.totalorder %v1827, %v1845
        %v1893 = vsel %vm1892, %v1827, %v1845
        %vm1894 = vcmp.lt.s32.totalorder %v1829, %v1847
        %v1895 = vsel %vm1894, %v1829, %v1847
        %vm1896 = vcmp.lt.s32.totalorder %v1831, %v1849
        %v1897 = vsel %vm1896, %v1831, %v1849
        %vm1898 = vcmp.lt.s32.totalorder %v1833, %v1851
        %v1899 = vsel %vm1898, %v1833, %v1851
        %vm1900 = vcmp.lt.s32.totalorder %v1835, %v1853
        %v1901 = vsel %vm1900, %v1835, %v1853
        %vm1902 = vcmp.lt.s32.totalorder %v1837, %v1855
        %v1903 = vsel %vm1902, %v1837, %v1855
        %vm1904 = vcmp.lt.s32.totalorder %v1839, %v1857
        %v1905 = vsel %vm1904, %v1839, %v1857
        %v1906 = vrot.slane %v1859, 1
        %v1907 = vrot.slane %v1861, 1
        %v1908 = vsel %vm1223, %v1906, %v1907
        %v1909 = vrot.slane %v1863, 1
        %v1910 = vsel %vm1223, %v1907, %v1909
        %v1911 = vrot.slane %v1865, 1
        %v1912 = vrot.slane %v1867, 1
        %v1913 = vsel %vm1223, %v1911, %v1912
        %v1914 = vrot.slane %v1869, 1
        %v1915 = vsel %vm1223, %v1912, %v1914
        %v1916 = vrot.slane %v1871, 1
        %v1917 = vrot.slane %v1873, 1
        %v1918 = vsel %vm1223, %v1916, %v1917
        %v1919 = vrot.slane %v1875, 1
        %v1920 = vsel %vm1223, %v1917, %v1919
        %v1921 = vrot.slane %v1877, 1
        %v1922 = vrot.slane %v1879, 1
        %v1923 = vsel %vm1223, %v1921, %v1922
        %v1924 = vrot.slane %v1881, 1
        %v1925 = vsel %vm1223, %v1922, %v1924
        %v1926 = vrot.slane %v1883, 1
        %v1927 = vrot.slane %v1885, 1
        %v1928 = vsel %vm1223, %v1926, %v1927
        %v1929 = vrot.slane %v1887, 1
        %v1930 = vsel %vm1223, %v1927, %v1929
        %v1931 = vrot.slane %v1889, 1
        %v1932 = vrot.slane %v1891, 1
        %v1933 = vsel %vm1223, %v1931, %v1932
        %v1934 = vrot.slane %v1893, 1
        %v1935 = vsel %vm1223, %v1932, %v1934
        %v1936 = vrot.slane %v1895, 1
        %v1937 = vrot.slane %v1897, 1
        %v1938 = vsel %vm1223, %v1936, %v1937
        %v1939 = vrot.slane %v1899, 1
        %v1940 = vsel %vm1223, %v1937, %v1939
        %v1941 = vrot.slane %v1901, 1
        %v1942 = vrot.slane %v1903, 1
        %v1943 = vsel %vm1223, %v1941, %v1942
        %v1944 = vrot.slane %v1905, 1
        %v1945 = vsel %vm1223, %v1942, %v1944
        %vm1946 = vcmp.lt.s32.totalorder %v1859, %v1908
        %v1947 = vsel %vm1946, %v1859, %v1908
        %vm1948 = vcmp.lt.s32.totalorder %v1861, %v1910
        %v1949 = vsel %vm1948, %v1861, %v1910
        %vm1950 = vcmp.lt.s32.totalorder %v1863, %v1909
        %v1951 = vsel %vm1950, %v1863, %v1909
        %vm1952 = vcmp.lt.s32.totalorder %v1865, %v1913
        %v1953 = vsel %vm1952, %v1865, %v1913
        %vm1954 = vcmp.lt.s32.totalorder %v1867, %v1915
        %v1955 = vsel %vm1954, %v1867, %v1915
        %vm1956 = vcmp.lt.s32.totalorder %v1869, %v1914
        %v1957 = vsel %vm1956, %v1869, %v1914
        %vm1958 = vcmp.lt.s32.totalorder %v1871, %v1918
        %v1959 = vsel %vm1958, %v1871, %v1918
        %vm1960 = vcmp.lt.s32.totalorder %v1873, %v1920
        %v1961 = vsel %vm1960, %v1873, %v1920
        %vm1962 = vcmp.lt.s32.totalorder %v1875, %v1919
        %v1963 = vsel %vm1962, %v1875, %v1919
        %vm1964 = vcmp.lt.s32.totalorder %v1877, %v1923
        %v1965 = vsel %vm1964, %v1877, %v1923
        %vm1966 = vcmp.lt.s32.totalorder %v1879, %v1925
        %v1967 = vsel %vm1966, %v1879, %v1925
        %vm1968 = vcmp.lt.s32.totalorder %v1881, %v1924
        %v1969 = vsel %vm1968, %v1881, %v1924
        %vm1970 = vcmp.lt.s32.totalorder %v1883, %v1928
        %v1971 = vsel %vm1970, %v1883, %v1928
        %vm1972 = vcmp.lt.s32.totalorder %v1885, %v1930
        %v1973 = vsel %vm1972, %v1885, %v1930
        %vm1974 = vcmp.lt.s32.totalorder %v1887, %v1929
        %v1975 = vsel %vm1974, %v1887, %v1929
        %vm1976 = vcmp.lt.s32.totalorder %v1889, %v1933
        %v1977 = vsel %vm1976, %v1889, %v1933
        %vm1978 = vcmp.lt.s32.totalorder %v1891, %v1935
        %v1979 = vsel %vm1978, %v1891, %v1935
        %vm1980 = vcmp.lt.s32.totalorder %v1893, %v1934
        %v1981 = vsel %vm1980, %v1893, %v1934
        %vm1982 = vcmp.lt.s32.totalorder %v1895, %v1938
        %v1983 = vsel %vm1982, %v1895, %v1938
        %vm1984 = vcmp.lt.s32.totalorder %v1897, %v1940
        %v1985 = vsel %vm1984, %v1897, %v1940
        %vm1986 = vcmp.lt.s32.totalorder %v1899, %v1939
        %v1987 = vsel %vm1986, %v1899, %v1939
        %vm1988 = vcmp.lt.s32.totalorder %v1901, %v1943
        %v1989 = vsel %vm1988, %v1901, %v1943
        %vm1990 = vcmp.lt.s32.totalorder %v1903, %v1945
        %v1991 = vsel %vm1990, %v1903, %v1945
        %vm1992 = vcmp.lt.s32.totalorder %v1905, %v1944
        %v1993 = vsel %vm1992, %v1905, %v1944
        %v1994 = vrot.slane %v1947, 2
        %v1995 = vrot.slane %v1949, 2
        %v1996 = vsel %vm1312, %v1994, %v1995
        %v1997 = vrot.slane %v1951, 2
        %v1998 = vsel %vm1312, %v1995, %v1997
        %v1999 = vrot.slane %v1953, 2
        %v2000 = vrot.slane %v1955, 2
        %v2001 = vsel %vm1312, %v1999, %v2000
        %v2002 = vrot.slane %v1957, 2
        %v2003 = vsel %vm1312, %v2000, %v2002
        %v2004 = vrot.slane %v1959, 2
        %v2005 = vrot.slane %v1961, 2
        %v2006 = vsel %vm1312, %v2004, %v2005
        %v2007 = vrot.slane %v1963, 2
        %v2008 = vsel %vm1312, %v2005, %v2007
        %v2009 = vrot.slane %v1965, 2
        %v2010 = vrot.slane %v1967, 2
        %v2011 = vsel %vm1312, %v2009, %v2010
        %v2012 = vrot.slane %v1969, 2
        %v2013 = vsel %vm1312, %v2010, %v2012
        %v2014 = vrot.slane %v1971, 2
        %v2015 = vrot.slane %v1973, 2
        %v2016 = vsel %vm1312, %v2014, %v2015
        %v2017 = vrot.slane %v1975, 2
        %v2018 = vsel %vm1312, %v2015, %v2017
        %v2019 = vrot.slane %v1977, 2
        %v2020 = vrot.slane %v1979, 2
        %v2021 = vsel %vm1312, %v2019, %v2020
        %v2022 = vrot.slane %v1981, 2
        %v2023 = vsel %vm1312, %v2020, %v2022
        %v2024 = vrot.slane %v1983, 2
        %v2025 = vrot.slane %v1985, 2
        %v2026 = vsel %vm1312, %v2024, %v2025
        %v2027 = vrot.slane %v1987, 2
        %v2028 = vsel %vm1312, %v2025, %v2027
        %v2029 = vrot.slane %v1989, 2
        %v2030 = vrot.slane %v1991, 2
        %v2031 = vsel %vm1312, %v2029, %v2030
        %v2032 = vrot.slane %v1993, 2
        %v2033 = vsel %vm1312, %v2030, %v2032
        %vm2034 = vcmp.lt.s32.totalorder %v1947, %v1996
        %v2035 = vsel %vm2034, %v1947, %v1996
        %vm2036 = vcmp.lt.s32.totalorder %v1949, %v1998
        %v2037 = vsel %vm2036, %v1949, %v1998
        %vm2038 = vcmp.lt.s32.totalorder %v1951, %v1997
        %v2039 = vsel %vm2038, %v1951, %v1997
        %vm2040 = vcmp.lt.s32.totalorder %v1953, %v2001
        %v2041 = vsel %vm2040, %v1953, %v2001
        %vm2042 = vcmp.lt.s32.totalorder %v1955, %v2003
        %v2043 = vsel %vm2042, %v1955, %v2003
        %vm2044 = vcmp.lt.s32.totalorder %v1957, %v2002
        %v2045 = vsel %vm2044, %v1957, %v2002
        %vm2046 = vcmp.lt.s32.totalorder %v1959, %v2006
        %v2047 = vsel %vm2046, %v1959, %v2006
        %vm2048 = vcmp.lt.s32.totalorder %v1961, %v2008
        %v2049 = vsel %vm2048, %v1961, %v2008
        %vm2050 = vcmp.lt.s32.totalorder %v1963, %v2007
        %v2051 = vsel %vm2050, %v1963, %v2007
        %vm2052 = vcmp.lt.s32.totalorder %v1965, %v2011
        %v2053 = vsel %vm2052, %v1965, %v2011
        %vm2054 = vcmp.lt.s32.totalorder %v1967, %v2013
        %v2055 = vsel %vm2054, %v1967, %v2013
        %vm2056 = vcmp.lt.s32.totalorder %v1969, %v2012
        %v2057 = vsel %vm2056, %v1969, %v2012
        %vm2058 = vcmp.lt.s32.totalorder %v1971, %v2016
        %v2059 = vsel %vm2058, %v1971, %v2016
        %vm2060 = vcmp.lt.s32.totalorder %v1973, %v2018
        %v2061 = vsel %vm2060, %v1973, %v2018
        %vm2062 = vcmp.lt.s32.totalorder %v1975, %v2017
        %v2063 = vsel %vm2062, %v1975, %v2017
        %vm2064 = vcmp.lt.s32.totalorder %v1977, %v2021
        %v2065 = vsel %vm2064, %v1977, %v2021
        %vm2066 = vcmp.lt.s32.totalorder %v1979, %v2023
        %v2067 = vsel %vm2066, %v1979, %v2023
        %vm2068 = vcmp.lt.s32.totalorder %v1981, %v2022
        %v2069 = vsel %vm2068, %v1981, %v2022
        %vm2070 = vcmp.lt.s32.totalorder %v1983, %v2026
        %v2071 = vsel %vm2070, %v1983, %v2026
        %vm2072 = vcmp.lt.s32.totalorder %v1985, %v2028
        %v2073 = vsel %vm2072, %v1985, %v2028
        %vm2074 = vcmp.lt.s32.totalorder %v1987, %v2027
        %v2075 = vsel %vm2074, %v1987, %v2027
        %vm2076 = vcmp.lt.s32.totalorder %v1989, %v2031
        %v2077 = vsel %vm2076, %v1989, %v2031
        %vm2078 = vcmp.lt.s32.totalorder %v1991, %v2033
        %v2079 = vsel %vm2078, %v1991, %v2033
        %vm2080 = vcmp.lt.s32.totalorder %v1993, %v2032
        %v2081 = vsel %vm2080, %v1993, %v2032
        %v2082 = vrot.slane %v2035, 3
        %v2083 = vrot.slane %v2037, 3
        %v2084 = vsel %vm1401, %v2082, %v2083
        %v2085 = vrot.slane %v2039, 3
        %v2086 = vsel %vm1401, %v2083, %v2085
        %v2087 = vrot.slane %v2041, 3
        %v2088 = vrot.slane %v2043, 3
        %v2089 = vsel %vm1401, %v2087, %v2088
        %v2090 = vrot.slane %v2045, 3
        %v2091 = vsel %vm1401, %v2088, %v2090
        %v2092 = vrot.slane %v2047, 3
        %v2093 = vrot.slane %v2049, 3
        %v2094 = vsel %vm1401, %v2092, %v2093
        %v2095 = vrot.slane %v2051, 3
        %v2096 = vsel %vm1401, %v2093, %v2095
        %v2097 = vrot.slane %v2053, 3
        %v2098 = vrot.slane %v2055, 3
        %v2099 = vsel %vm1401, %v2097, %v2098
        %v2100 = vrot.slane %v2057, 3
        %v2101 = vsel %vm1401, %v2098, %v2100
        %v2102 = vrot.slane %v2059, 3
        %v2103 = vrot.slane %v2061, 3
        %v2104 = vsel %vm1401, %v2102, %v2103
        %v2105 = vrot.slane %v2063, 3
        %v2106 = vsel %vm1401, %v2103, %v2105
        %v2107 = vrot.slane %v2065, 3
        %v2108 = vrot.slane %v2067, 3
        %v2109 = vsel %vm1401, %v2107, %v2108
        %v2110 = vrot.slane %v2069, 3
        %v2111 = vsel %vm1401, %v2108, %v2110
        %v2112 = vrot.slane %v2071, 3
        %v2113 = vrot.slane %v2073, 3
        %v2114 = vsel %vm1401, %v2112, %v2113
        %v2115 = vrot.slane %v2075, 3
        %v2116 = vsel %vm1401, %v2113, %v2115
        %v2117 = vrot.slane %v2077, 3
        %v2118 = vrot.slane %v2079, 3
        %v2119 = vsel %vm1401, %v2117, %v2118
        %v2120 = vrot.slane %v2081, 3
        %v2121 = vsel %vm1401, %v2118, %v2120
        %vm2122 = vcmp.lt.s32.totalorder %v2035, %v2084
        %v2123 = vsel %vm2122, %v2035, %v2084
        %vm2124 = vcmp.lt.s32.totalorder %v2037, %v2086
        %v2125 = vsel %vm2124, %v2037, %v2086
        %vm2126 = vcmp.lt.s32.totalorder %v2041, %v2089
        %v2127 = vsel %vm2126, %v2041, %v2089
        %vm2128 = vcmp.lt.s32.totalorder %v2043, %v2091
        %v2129 = vsel %vm2128, %v2043, %v2091
        %vm2130 = vcmp.lt.s32.totalorder %v2047, %v2094
        %v2131 = vsel %vm2130, %v2047, %v2094
        %vm2132 = vcmp.lt.s32.totalorder %v2049, %v2096
        %v2133 = vsel %vm2132, %v2049, %v2096
        %vm2134 = vcmp.lt.s32.totalorder %v2053, %v2099
        %v2135 = vsel %vm2134, %v2053, %v2099
        %vm2136 = vcmp.lt.s32.totalorder %v2055, %v2101
        %v2137 = vsel %vm2136, %v2055, %v2101
        %vm2138 = vcmp.lt.s32.totalorder %v2059, %v2104
        %v2139 = vsel %vm2138, %v2059, %v2104
        %vm2140 = vcmp.lt.s32.totalorder %v2061, %v2106
        %v2141 = vsel %vm2140, %v2061, %v2106
        %vm2142 = vcmp.lt.s32.totalorder %v2065, %v2109
        %v2143 = vsel %vm2142, %v2065, %v2109
        %vm2144 = vcmp.lt.s32.totalorder %v2067, %v2111
        %v2145 = vsel %vm2144, %v2067, %v2111
        %vm2146 = vcmp.lt.s32.totalorder %v2071, %v2114
        %v2147 = vsel %vm2146, %v2071, %v2114
        %vm2148 = vcmp.lt.s32.totalorder %v2073, %v2116
        %v2149 = vsel %vm2148, %v2073, %v2116
        %vm2150 = vcmp.lt.s32.totalorder %v2077, %v2119
        %v2151 = vsel %vm2150, %v2077, %v2119
        %vm2152 = vcmp.lt.s32.totalorder %v2079, %v2121
        %v2153 = vsel %vm2152, %v2079, %v2121
        %2154 = vrot.lane.b32.xlu0 %v2123, 127
        %v2155 = vpop.permute.xlu0 %2154
        %2156 = vrot.lane.b32.xlu0 %v2125, 127
        %v2157 = vpop.permute.xlu0 %2156
        %2158 = vrot.lane.b32.xlu0 %v2127, 127
        %v2159 = vpop.permute.xlu0 %2158
        %2160 = vrot.lane.b32.xlu0 %v2129, 127
        %v2161 = vpop.permute.xlu0 %2160
        %2162 = vrot.lane.b32.xlu0 %v2131, 127
        %v2163 = vpop.permute.xlu0 %2162
        %2164 = vrot.lane.b32.xlu0 %v2133, 127
        %v2165 = vpop.permute.xlu0 %2164
        %2166 = vrot.lane.b32.xlu0 %v2135, 127
        %v2167 = vpop.permute.xlu0 %2166
        %2168 = vrot.lane.b32.xlu0 %v2137, 127
        %v2169 = vpop.permute.xlu0 %2168
        %2170 = vrot.lane.b32.xlu0 %v2139, 127
        %v2171 = vpop.permute.xlu0 %2170
        %2172 = vrot.lane.b32.xlu0 %v2141, 127
        %v2173 = vpop.permute.xlu0 %2172
        %2174 = vrot.lane.b32.xlu0 %v2143, 127
        %v2175 = vpop.permute.xlu0 %2174
        %2176 = vrot.lane.b32.xlu0 %v2145, 127
        %v2177 = vpop.permute.xlu0 %2176
        %2178 = vrot.lane.b32.xlu0 %v2147, 127
        %v2179 = vpop.permute.xlu0 %2178
        %2180 = vrot.lane.b32.xlu0 %v2149, 127
        %v2181 = vpop.permute.xlu0 %2180
        %2182 = vrot.lane.b32.xlu0 %v2151, 127
        %v2183 = vpop.permute.xlu0 %2182
        %2184 = vrot.lane.b32.xlu0 %v2153, 127
        %v2185 = vpop.permute.xlu0 %2184
        %vm2186 = vcmp.lt.s32.totalorder %v2123, %v2155
        %v2187 = vsel %vm2186, %v2123, %v2155
        %vm2188 = vcmp.lt.s32.totalorder %v2125, %v2157
        %v2189 = vsel %vm2188, %v2125, %v2157
        %vm2190 = vcmp.lt.s32.totalorder %v2127, %v2159
        %v2191 = vsel %vm2190, %v2127, %v2159
        %vm2192 = vcmp.lt.s32.totalorder %v2129, %v2161
        %v2193 = vsel %vm2192, %v2129, %v2161
        %vm2194 = vcmp.lt.s32.totalorder %v2131, %v2163
        %v2195 = vsel %vm2194, %v2131, %v2163
        %vm2196 = vcmp.lt.s32.totalorder %v2133, %v2165
        %v2197 = vsel %vm2196, %v2133, %v2165
        %vm2198 = vcmp.lt.s32.totalorder %v2135, %v2167
        %v2199 = vsel %vm2198, %v2135, %v2167
        %vm2200 = vcmp.lt.s32.totalorder %v2137, %v2169
        %v2201 = vsel %vm2200, %v2137, %v2169
        %vm2202 = vcmp.lt.s32.totalorder %v2139, %v2171
        %v2203 = vsel %vm2202, %v2139, %v2171
        %vm2204 = vcmp.lt.s32.totalorder %v2141, %v2173
        %v2205 = vsel %vm2204, %v2141, %v2173
        %vm2206 = vcmp.lt.s32.totalorder %v2143, %v2175
        %v2207 = vsel %vm2206, %v2143, %v2175
        %vm2208 = vcmp.lt.s32.totalorder %v2145, %v2177
        %v2209 = vsel %vm2208, %v2145, %v2177
        %vm2210 = vcmp.lt.s32.totalorder %v2147, %v2179
        %v2211 = vsel %vm2210, %v2147, %v2179
        %vm2212 = vcmp.lt.s32.totalorder %v2149, %v2181
        %v2213 = vsel %vm2212, %v2149, %v2181
        %vm2214 = vcmp.lt.s32.totalorder %v2151, %v2183
        %v2215 = vsel %vm2214, %v2151, %v2183
        %vm2216 = vcmp.lt.s32.totalorder %v2153, %v2185
        %v2217 = vsel %vm2216, %v2153, %v2185
        %2218 = vrot.lane.b32.xlu0 %v2187, 126
        %v2219 = vpop.permute.xlu0 %2218
        %2220 = vrot.lane.b32.xlu0 %v2189, 126
        %v2221 = vpop.permute.xlu0 %2220
        %2222 = vrot.lane.b32.xlu0 %v2191, 126
        %v2223 = vpop.permute.xlu0 %2222
        %2224 = vrot.lane.b32.xlu0 %v2193, 126
        %v2225 = vpop.permute.xlu0 %2224
        %2226 = vrot.lane.b32.xlu0 %v2195, 126
        %v2227 = vpop.permute.xlu0 %2226
        %2228 = vrot.lane.b32.xlu0 %v2197, 126
        %v2229 = vpop.permute.xlu0 %2228
        %2230 = vrot.lane.b32.xlu0 %v2199, 126
        %v2231 = vpop.permute.xlu0 %2230
        %2232 = vrot.lane.b32.xlu0 %v2201, 126
        %v2233 = vpop.permute.xlu0 %2232
        %2234 = vrot.lane.b32.xlu0 %v2203, 126
        %v2235 = vpop.permute.xlu0 %2234
        %2236 = vrot.lane.b32.xlu0 %v2205, 126
        %v2237 = vpop.permute.xlu0 %2236
        %2238 = vrot.lane.b32.xlu0 %v2207, 126
        %v2239 = vpop.permute.xlu0 %2238
        %2240 = vrot.lane.b32.xlu0 %v2209, 126
        %v2241 = vpop.permute.xlu0 %2240
        %2242 = vrot.lane.b32.xlu0 %v2211, 126
        %v2243 = vpop.permute.xlu0 %2242
        %2244 = vrot.lane.b32.xlu0 %v2213, 126
        %v2245 = vpop.permute.xlu0 %2244
        %2246 = vrot.lane.b32.xlu0 %v2215, 126
        %v2247 = vpop.permute.xlu0 %2246
        %2248 = vrot.lane.b32.xlu0 %v2217, 126
        %v2249 = vpop.permute.xlu0 %2248
        %vm2250 = vcmp.lt.s32.totalorder %v2187, %v2219
        %v2251 = vsel %vm2250, %v2187, %v2219
        %vm2252 = vcmp.lt.s32.totalorder %v2189, %v2221
        %v2253 = vsel %vm2252, %v2189, %v2221
        %vm2254 = vcmp.lt.s32.totalorder %v2191, %v2223
        %v2255 = vsel %vm2254, %v2191, %v2223
        %vm2256 = vcmp.lt.s32.totalorder %v2193, %v2225
        %v2257 = vsel %vm2256, %v2193, %v2225
        %vm2258 = vcmp.lt.s32.totalorder %v2195, %v2227
        %v2259 = vsel %vm2258, %v2195, %v2227
        %vm2260 = vcmp.lt.s32.totalorder %v2197, %v2229
        %v2261 = vsel %vm2260, %v2197, %v2229
        %vm2262 = vcmp.lt.s32.totalorder %v2199, %v2231
        %v2263 = vsel %vm2262, %v2199, %v2231
        %vm2264 = vcmp.lt.s32.totalorder %v2201, %v2233
        %v2265 = vsel %vm2264, %v2201, %v2233
        %vm2266 = vcmp.lt.s32.totalorder %v2203, %v2235
        %v2267 = vsel %vm2266, %v2203, %v2235
        %vm2268 = vcmp.lt.s32.totalorder %v2205, %v2237
        %v2269 = vsel %vm2268, %v2205, %v2237
        %vm2270 = vcmp.lt.s32.totalorder %v2207, %v2239
        %v2271 = vsel %vm2270, %v2207, %v2239
        %vm2272 = vcmp.lt.s32.totalorder %v2209, %v2241
        %v2273 = vsel %vm2272, %v2209, %v2241
        %vm2274 = vcmp.lt.s32.totalorder %v2211, %v2243
        %v2275 = vsel %vm2274, %v2211, %v2243
        %vm2276 = vcmp.lt.s32.totalorder %v2213, %v2245
        %v2277 = vsel %vm2276, %v2213, %v2245
        %vm2278 = vcmp.lt.s32.totalorder %v2215, %v2247
        %v2279 = vsel %vm2278, %v2215, %v2247
        %vm2280 = vcmp.lt.s32.totalorder %v2217, %v2249
        %v2281 = vsel %vm2280, %v2217, %v2249
        %2282 = vrot.lane.b32.xlu0 %v2251, 125
        %v2283 = vpop.permute.xlu0 %2282
        %2284 = vrot.lane.b32.xlu0 %v2253, 125
        %v2285 = vpop.permute.xlu0 %2284
        %2286 = vrot.lane.b32.xlu0 %v2255, 125
        %v2287 = vpop.permute.xlu0 %2286
        %2288 = vrot.lane.b32.xlu0 %v2257, 125
        %v2289 = vpop.permute.xlu0 %2288
        %2290 = vrot.lane.b32.xlu0 %v2259, 125
        %v2291 = vpop.permute.xlu0 %2290
        %2292 = vrot.lane.b32.xlu0 %v2261, 125
        %v2293 = vpop.permute.xlu0 %2292
        %2294 = vrot.lane.b32.xlu0 %v2263, 125
        %v2295 = vpop.permute.xlu0 %2294
        %2296 = vrot.lane.b32.xlu0 %v2265, 125
        %v2297 = vpop.permute.xlu0 %2296
        %2298 = vrot.lane.b32.xlu0 %v2267, 125
        %v2299 = vpop.permute.xlu0 %2298
        %2300 = vrot.lane.b32.xlu0 %v2269, 125
        %v2301 = vpop.permute.xlu0 %2300
        %2302 = vrot.lane.b32.xlu0 %v2271, 125
        %v2303 = vpop.permute.xlu0 %2302
        %2304 = vrot.lane.b32.xlu0 %v2273, 125
        %v2305 = vpop.permute.xlu0 %2304
        %2306 = vrot.lane.b32.xlu0 %v2275, 125
        %v2307 = vpop.permute.xlu0 %2306
        %2308 = vrot.lane.b32.xlu0 %v2277, 125
        %v2309 = vpop.permute.xlu0 %2308
        %2310 = vrot.lane.b32.xlu0 %v2279, 125
        %v2311 = vpop.permute.xlu0 %2310
        %2312 = vrot.lane.b32.xlu0 %v2281, 125
        %v2313 = vpop.permute.xlu0 %2312
        %vm2314 = vcmp.lt.s32.totalorder %v2251, %v2283
        %v2315 = vsel %vm2314, %v2251, %v2283
        %vm2316 = vcmp.lt.s32.totalorder %v2253, %v2285
        %v2317 = vsel %vm2316, %v2253, %v2285
        %vm2318 = vcmp.lt.s32.totalorder %v2255, %v2287
        %v2319 = vsel %vm2318, %v2255, %v2287
        %vm2320 = vcmp.lt.s32.totalorder %v2257, %v2289
        %v2321 = vsel %vm2320, %v2257, %v2289
        %vm2322 = vcmp.lt.s32.totalorder %v2259, %v2291
        %v2323 = vsel %vm2322, %v2259, %v2291
        %vm2324 = vcmp.lt.s32.totalorder %v2261, %v2293
        %v2325 = vsel %vm2324, %v2261, %v2293
        %vm2326 = vcmp.lt.s32.totalorder %v2263, %v2295
        %v2327 = vsel %vm2326, %v2263, %v2295
        %vm2328 = vcmp.lt.s32.totalorder %v2265, %v2297
        %v2329 = vsel %vm2328, %v2265, %v2297
        %vm2330 = vcmp.lt.s32.totalorder %v2267, %v2299
        %v2331 = vsel %vm2330, %v2267, %v2299
        %vm2332 = vcmp.lt.s32.totalorder %v2269, %v2301
        %v2333 = vsel %vm2332, %v2269, %v2301
        %vm2334 = vcmp.lt.s32.totalorder %v2271, %v2303
        %v2335 = vsel %vm2334, %v2271, %v2303
        %vm2336 = vcmp.lt.s32.totalorder %v2273, %v2305
        %v2337 = vsel %vm2336, %v2273, %v2305
        %vm2338 = vcmp.lt.s32.totalorder %v2275, %v2307
        %v2339 = vsel %vm2338, %v2275, %v2307
        %vm2340 = vcmp.lt.s32.totalorder %v2277, %v2309
        %v2341 = vsel %vm2340, %v2277, %v2309
        %vm2342 = vcmp.lt.s32.totalorder %v2279, %v2311
        %v2343 = vsel %vm2342, %v2279, %v2311
        %vm2344 = vcmp.lt.s32.totalorder %v2281, %v2313
        %v2345 = vsel %vm2344, %v2281, %v2313
        %v2346 = vmul.f32 %v608, %v832
        %v2347 = vmul.f32 %v610, %v834
        %v2348 = vmul.f32 %v612, %v836
        %v2349 = vmul.f32 %v614, %v838
        %v2350 = vmul.f32 %v616, %v840
        %v2351 = vmul.f32 %v618, %v842
        %v2352 = vmul.f32 %v620, %v844
        %v2353 = vmul.f32 %v622, %v846
        %v2354 = vmul.f32 %v672, %v848
        %v2355 = vmul.f32 %v674, %v850
        %v2356 = vmul.f32 %v676, %v852
        %v2357 = vmul.f32 %v678, %v854
        %v2358 = vmul.f32 %v680, %v856
        %v2359 = vmul.f32 %v682, %v858
        %v2360 = vmul.f32 %v684, %v860
        %v2361 = vmul.f32 %v686, %v862
        %vm2362 = vcmp.eq.s32.totalorder %v299, 1
        %vm2363 = vcmp.eq.s32.totalorder %v300, 1
        %vm2364 = vcmp.eq.s32.totalorder %v301, 1
        %vm2365 = vcmp.eq.s32.totalorder %v302, 1
        %vm2366 = vcmp.eq.s32.totalorder %v303, 1
        %vm2367 = vcmp.eq.s32.totalorder %v304, 1
        %vm2368 = vcmp.eq.s32.totalorder %v305, 1
        %vm2369 = vcmp.eq.s32.totalorder %v306, 1
        %vm2370 = vcmp.eq.s32.totalorder %v307, 1
        %vm2371 = vcmp.eq.s32.totalorder %v308, 1
        %vm2372 = vcmp.eq.s32.totalorder %v309, 1
        %vm2373 = vcmp.eq.s32.totalorder %v310, 1
        %vm2374 = vcmp.eq.s32.totalorder %v329, 1
        %vm2375 = vcmp.eq.s32.totalorder %v330, 1
        %vm2376 = vcmp.eq.s32.totalorder %v331, 1
        %vm2377 = vcmp.eq.s32.totalorder %v332, 1
        %vm2378 = vcmp.eq.s32.totalorder %v333, 1
        %vm2379 = vcmp.eq.s32.totalorder %v334, 1
        %vm2380 = vcmp.eq.s32.totalorder %v335, 1
        %vm2381 = vcmp.eq.s32.totalorder %v336, 1
        %vm2382 = vcmp.eq.s32.totalorder %v337, 1
        %vm2383 = vcmp.eq.s32.totalorder %v338, 1
        %vm2384 = vcmp.eq.s32.totalorder %v339, 1
        %vm2385 = vcmp.eq.s32.totalorder %v340, 1
        %vm2386 = vcmp.eq.s32.totalorder %v2315, 1
        %vm2387 = vcmp.eq.s32.totalorder %v2317, 1
        %vm2388 = vcmp.eq.s32.totalorder %v2319, 1
        %vm2389 = vcmp.eq.s32.totalorder %v2321, 1
        %vm2390 = vcmp.eq.s32.totalorder %v2323, 1
        %vm2391 = vcmp.eq.s32.totalorder %v2325, 1
        %vm2392 = vcmp.eq.s32.totalorder %v2327, 1
        %vm2393 = vcmp.eq.s32.totalorder %v2329, 1
        %vm2394 = vcmp.eq.s32.totalorder %v2331, 1
        %vm2395 = vcmp.eq.s32.totalorder %v2333, 1
        %vm2396 = vcmp.eq.s32.totalorder %v2335, 1
        %vm2397 = vcmp.eq.s32.totalorder %v2337, 1
        %vm2398 = vcmp.eq.s32.totalorder %v2339, 1
        %vm2399 = vcmp.eq.s32.totalorder %v2341, 1
        %vm2400 = vcmp.eq.s32.totalorder %v2343, 1
        %vm2401 = vcmp.eq.s32.totalorder %v2345, 1
        %vm2402 = vcmp.eq.s32.totalorder %v1635, 1
        %vm2403 = vcmp.eq.s32.totalorder %v1637, 1
        %vm2404 = vcmp.eq.s32.totalorder %v1639, 1
        %vm2405 = vcmp.eq.s32.totalorder %v1641, 1
        %vm2406 = vcmp.eq.s32.totalorder %v1643, 1
        %vm2407 = vcmp.eq.s32.totalorder %v1645, 1
        %vm2408 = vcmp.eq.s32.totalorder %v1647, 1
        %vm2409 = vcmp.eq.s32.totalorder %v1649, 1
        %vm2410 = vcmp.eq.s32.totalorder %v1651, 1
        %vm2411 = vcmp.eq.s32.totalorder %v1653, 1
        %vm2412 = vcmp.eq.s32.totalorder %v1655, 1
        %vm2413 = vcmp.eq.s32.totalorder %v1657, 1
        %vm2414 = vcmp.eq.s32.totalorder %v1659, 1
        %vm2415 = vcmp.eq.s32.totalorder %v1661, 1
        %vm2416 = vcmp.eq.s32.totalorder %v1663, 1
        %vm2417 = vcmp.eq.s32.totalorder %v1665, 1
        %vm2418 = vmand %vm2386, %vm2402
        %vm2419 = vmand %vm2387, %vm2403
        %vm2420 = vmand %vm2388, %vm2404
        %vm2421 = vmand %vm2389, %vm2405
        %vm2422 = vmand %vm2390, %vm2406
        %vm2423 = vmand %vm2391, %vm2407
        %vm2424 = vmand %vm2392, %vm2408
        %vm2425 = vmand %vm2393, %vm2409
        %vm2426 = vmand %vm2394, %vm2410
        %vm2427 = vmand %vm2395, %vm2411
        %vm2428 = vmand %vm2396, %vm2412
        %vm2429 = vmand %vm2397, %vm2413
        %vm2430 = vmand %vm2398, %vm2414
        %vm2431 = vmand %vm2399, %vm2415
        %vm2432 = vmand %vm2400, %vm2416
        %vm2433 = vmand %vm2401, %vm2417
        %v2434 = vsel %vm2418, 1.0, 0.7788008
        %v2435 = vsel %vm2419, 1.0, 0.7788008
        %v2436 = vsel %vm2420, 1.0, 0.7788008
        %v2437 = vsel %vm2421, 1.0, 0.7788008
        %v2438 = vsel %vm2422, 1.0, 0.7788008
        %v2439 = vsel %vm2423, 1.0, 0.7788008
        %v2440 = vsel %vm2424, 1.0, 0.7788008
        %v2441 = vsel %vm2425, 1.0, 0.7788008
        %v2442 = vsel %vm2426, 1.0, 0.7788008
        %v2443 = vsel %vm2427, 1.0, 0.7788008
        %v2444 = vsel %vm2428, 1.0, 0.7788008
        %v2445 = vsel %vm2429, 1.0, 0.7788008
        %v2446 = vsel %vm2430, 1.0, 0.7788008
        %v2447 = vsel %vm2431, 1.0, 0.7788008
        %v2448 = vsel %vm2432, 1.0, 0.7788008
        %v2449 = vsel %vm2433, 1.0, 0.7788008
        %v2450 = vsel %vm2418, 1.0, 0.60653067
        %v2451 = vsel %vm2419, 1.0, 0.60653067
        %v2452 = vsel %vm2420, 1.0, 0.60653067
        %v2453 = vsel %vm2421, 1.0, 0.60653067
        %v2454 = vsel %vm2422, 1.0, 0.60653067
        %v2455 = vsel %vm2423, 1.0, 0.60653067
        %v2456 = vsel %vm2424, 1.0, 0.60653067
        %v2457 = vsel %vm2425, 1.0, 0.60653067
        %v2458 = vsel %vm2426, 1.0, 0.60653067
        %v2459 = vsel %vm2427, 1.0, 0.60653067
        %v2460 = vsel %vm2428, 1.0, 0.60653067
        %v2461 = vsel %vm2429, 1.0, 0.60653067
        %v2462 = vsel %vm2430, 1.0, 0.60653067
        %v2463 = vsel %vm2431, 1.0, 0.60653067
        %v2464 = vsel %vm2432, 1.0, 0.60653067
        %v2465 = vsel %vm2433, 1.0, 0.60653067
        %v2466 = vmul.f32 %v2346, %v2434
        %v2467 = vmul.f32 %v2347, %v2435
        %v2468 = vmul.f32 %v2348, %v2436
        %v2469 = vmul.f32 %v2349, %v2437
        %v2470 = vmul.f32 %v2350, %v2438
        %v2471 = vmul.f32 %v2351, %v2439
        %v2472 = vmul.f32 %v2352, %v2440
        %v2473 = vmul.f32 %v2353, %v2441
        %v2474 = vmul.f32 %v2354, %v2442
        %v2475 = vmul.f32 %v2355, %v2443
        %v2476 = vmul.f32 %v2356, %v2444
        %v2477 = vmul.f32 %v2357, %v2445
        %v2478 = vmul.f32 %v2358, %v2446
        %v2479 = vmul.f32 %v2359, %v2447
        %v2480 = vmul.f32 %v2360, %v2448
        %v2481 = vmul.f32 %v2361, %v2449
        %vm2498 = vcmask 1042432
        %v2499 = vrot.slane %v2434, 5
        %v2500 = vrot.slane %v2435, 5
        %v2501 = vsel %vm2498, %v2499, %v2500
        %v2502 = vrot.slane %v2436, 5
        %v2503 = vrot.slane %v2437, 5
        %v2504 = vsel %vm2498, %v2502, %v2503
        %v2505 = vrot.slane %v2438, 5
        %v2506 = vrot.slane %v2439, 5
        %v2507 = vsel %vm2498, %v2505, %v2506
        %v2508 = vrot.slane %v2440, 5
        %v2509 = vrot.slane %v2441, 5
        %v2510 = vsel %vm2498, %v2508, %v2509
        %v2511 = vrot.slane %v2442, 5
        %v2512 = vrot.slane %v2443, 5
        %v2513 = vsel %vm2498, %v2511, %v2512
        %v2514 = vrot.slane %v2444, 5
        %v2515 = vrot.slane %v2445, 5
        %v2516 = vsel %vm2498, %v2514, %v2515
        %v2517 = vrot.slane %v2446, 5
        %v2518 = vrot.slane %v2447, 5
        %v2519 = vsel %vm2498, %v2517, %v2518
        %v2520 = vrot.slane %v2448, 5
        %v2521 = vrot.slane %v2449, 5
        %v2522 = vsel %vm2498, %v2520, %v2521
        %2523 = vrot.lane.b32.xlu0 %v2499, 3
        %v2524 = vpop.permute.xlu0 %2523
        %2525 = vrot.lane.b32.xlu0 %v2501, 3
        %v2526 = vpop.permute.xlu0 %2525
        %2527 = vrot.lane.b32.xlu0 %v2500, 3
        %v2528 = vpop.permute.xlu0 %2527
        %2529 = vrot.lane.b32.xlu0 %v2502, 3
        %v2530 = vpop.permute.xlu0 %2529
        %2531 = vrot.lane.b32.xlu0 %v2504, 3
        %v2532 = vpop.permute.xlu0 %2531
        %2533 = vrot.lane.b32.xlu0 %v2503, 3
        %v2534 = vpop.permute.xlu0 %2533
        %2535 = vrot.lane.b32.xlu0 %v2505, 3
        %v2536 = vpop.permute.xlu0 %2535
        %2537 = vrot.lane.b32.xlu0 %v2507, 3
        %v2538 = vpop.permute.xlu0 %2537
        %2539 = vrot.lane.b32.xlu0 %v2506, 3
        %v2540 = vpop.permute.xlu0 %2539
        %2541 = vrot.lane.b32.xlu0 %v2508, 3
        %v2542 = vpop.permute.xlu0 %2541
        %2543 = vrot.lane.b32.xlu0 %v2510, 3
        %v2544 = vpop.permute.xlu0 %2543
        %2545 = vrot.lane.b32.xlu0 %v2509, 3
        %v2546 = vpop.permute.xlu0 %2545
        %2547 = vrot.lane.b32.xlu0 %v2511, 3
        %v2548 = vpop.permute.xlu0 %2547
        %2549 = vrot.lane.b32.xlu0 %v2513, 3
        %v2550 = vpop.permute.xlu0 %2549
        %2551 = vrot.lane.b32.xlu0 %v2512, 3
        %v2552 = vpop.permute.xlu0 %2551
        %2553 = vrot.lane.b32.xlu0 %v2514, 3
        %v2554 = vpop.permute.xlu0 %2553
        %2555 = vrot.lane.b32.xlu0 %v2516, 3
        %v2556 = vpop.permute.xlu0 %2555
        %2557 = vrot.lane.b32.xlu0 %v2515, 3
        %v2558 = vpop.permute.xlu0 %2557
        %2559 = vrot.lane.b32.xlu0 %v2517, 3
        %v2560 = vpop.permute.xlu0 %2559
        %2561 = vrot.lane.b32.xlu0 %v2519, 3
        %v2562 = vpop.permute.xlu0 %2561
        %2563 = vrot.lane.b32.xlu0 %v2518, 3
        %v2564 = vpop.permute.xlu0 %2563
        %2565 = vrot.lane.b32.xlu0 %v2520, 3
        %v2566 = vpop.permute.xlu0 %2565
        %2567 = vrot.lane.b32.xlu0 %v2522, 3
        %v2568 = vpop.permute.xlu0 %2567
        %2569 = vrot.lane.b32.xlu0 %v2521, 3
        %v2570 = vpop.permute.xlu0 %2569
        %v2595 = vsel %vm2362, %v2524, 0.0
        %v2596 = vsel %vm2363, %v2526, 0.0
        %v2597 = vsel %vm2364, %v2528, 0.0
        %v2598 = vsel %vm2365, %v2530, 0.0
        %v2599 = vsel %vm2366, %v2532, 0.0
        %v2600 = vsel %vm2367, %v2534, 0.0
        %v2601 = vsel %vm2368, %v2536, 0.0
        %v2602 = vsel %vm2369, %v2538, 0.0
        %v2603 = vsel %vm2370, %v2540, 0.0
        %v2604 = vsel %vm2371, %v2542, 0.0
        %v2605 = vsel %vm2372, %v2544, 0.0
        %v2606 = vsel %vm2373, %v2546, 0.0
        %v2607 = vsel %vm2374, %v2548, 0.0
        %v2608 = vsel %vm2375, %v2550, 0.0
        %v2609 = vsel %vm2376, %v2552, 0.0
        %v2610 = vsel %vm2377, %v2554, 0.0
        %v2611 = vsel %vm2378, %v2556, 0.0
        %v2612 = vsel %vm2379, %v2558, 0.0
        %v2613 = vsel %vm2380, %v2560, 0.0
        %v2614 = vsel %vm2381, %v2562, 0.0
        %v2615 = vsel %vm2382, %v2564, 0.0
        %v2616 = vsel %vm2383, %v2566, 0.0
        %v2617 = vsel %vm2384, %v2568, 0.0
        %v2618 = vsel %vm2385, %v2570, 0.0
        %v2619 = vsub.f32 1.0, %v2346
        %v2620 = vsub.f32 1.0, %v2347
        %v2621 = vsub.f32 1.0, %v2348
        %v2622 = vsub.f32 1.0, %v2349
        %v2623 = vsub.f32 1.0, %v2350
        %v2624 = vsub.f32 1.0, %v2351
        %v2625 = vsub.f32 1.0, %v2352
        %v2626 = vsub.f32 1.0, %v2353
        %v2627 = vsub.f32 1.0, %v2354
        %v2628 = vsub.f32 1.0, %v2355
        %v2629 = vsub.f32 1.0, %v2356
        %v2630 = vsub.f32 1.0, %v2357
        %v2631 = vsub.f32 1.0, %v2358
        %v2632 = vsub.f32 1.0, %v2359
        %v2633 = vsub.f32 1.0, %v2360
        %v2634 = vsub.f32 1.0, %v2361
        %v2635 = vmul.f32 %v2619, %v2450
        %v2636 = vmul.f32 %v2620, %v2451
        %v2637 = vmul.f32 %v2621, %v2452
        %v2638 = vmul.f32 %v2622, %v2453
        %v2639 = vmul.f32 %v2623, %v2454
        %v2640 = vmul.f32 %v2624, %v2455
        %v2641 = vmul.f32 %v2625, %v2456
        %v2642 = vmul.f32 %v2626, %v2457
        %v2643 = vmul.f32 %v2627, %v2458
        %v2644 = vmul.f32 %v2628, %v2459
        %v2645 = vmul.f32 %v2629, %v2460
        %v2646 = vmul.f32 %v2630, %v2461
        %v2647 = vmul.f32 %v2631, %v2462
        %v2648 = vmul.f32 %v2632, %v2463
        %v2649 = vmul.f32 %v2633, %v2464
        %v2650 = vmul.f32 %v2634, %v2465
        %v2667 = vrot.slane %v2635, 5
        %v2668 = vrot.slane %v2636, 5
        %v2669 = vsel %vm2498, %v2667, %v2668
        %v2670 = vrot.slane %v2637, 5
        %v2671 = vrot.slane %v2638, 5
        %v2672 = vsel %vm2498, %v2670, %v2671
        %v2673 = vrot.slane %v2639, 5
        %v2674 = vrot.slane %v2640, 5
        %v2675 = vsel %vm2498, %v2673, %v2674
        %v2676 = vrot.slane %v2641, 5
        %v2677 = vrot.slane %v2642, 5
        %v2678 = vsel %vm2498, %v2676, %v2677
        %v2679 = vrot.slane %v2643, 5
        %v2680 = vrot.slane %v2644, 5
        %v2681 = vsel %vm2498, %v2679, %v2680
        %v2682 = vrot.slane %v2645, 5
        %v2683 = vrot.slane %v2646, 5
        %v2684 = vsel %vm2498, %v2682, %v2683
        %v2685 = vrot.slane %v2647, 5
        %v2686 = vrot.slane %v2648, 5
        %v2687 = vsel %vm2498, %v2685, %v2686
        %v2688 = vrot.slane %v2649, 5
        %v2689 = vrot.slane %v2650, 5
        %v2690 = vsel %vm2498, %v2688, %v2689
        %2691 = vrot.lane.b32.xlu0 %v2667, 3
        %v2692 = vpop.permute.xlu0 %2691
        %2693 = vrot.lane.b32.xlu0 %v2669, 3
        %v2694 = vpop.permute.xlu0 %2693
        %2695 = vrot.lane.b32.xlu0 %v2668, 3
        %v2696 = vpop.permute.xlu0 %2695
        %2697 = vrot.lane.b32.xlu0 %v2670, 3
        %v2698 = vpop.permute.xlu0 %2697
        %2699 = vrot.lane.b32.xlu0 %v2672, 3
        %v2700 = vpop.permute.xlu0 %2699
        %2701 = vrot.lane.b32.xlu0 %v2671, 3
        %v2702 = vpop.permute.xlu0 %2701
        %2703 = vrot.lane.b32.xlu0 %v2673, 3
        %v2704 = vpop.permute.xlu0 %2703
        %2705 = vrot.lane.b32.xlu0 %v2675, 3
        %v2706 = vpop.permute.xlu0 %2705
        %2707 = vrot.lane.b32.xlu0 %v2674, 3
        %v2708 = vpop.permute.xlu0 %2707
        %2709 = vrot.lane.b32.xlu0 %v2676, 3
        %v2710 = vpop.permute.xlu0 %2709
        %2711 = vrot.lane.b32.xlu0 %v2678, 3
        %v2712 = vpop.permute.xlu0 %2711
        %2713 = vrot.lane.b32.xlu0 %v2677, 3
        %v2714 = vpop.permute.xlu0 %2713
        %2715 = vrot.lane.b32.xlu0 %v2679, 3
        %v2716 = vpop.permute.xlu0 %2715
        %2717 = vrot.lane.b32.xlu0 %v2681, 3
        %v2718 = vpop.permute.xlu0 %2717
        %2719 = vrot.lane.b32.xlu0 %v2680, 3
        %v2720 = vpop.permute.xlu0 %2719
        %2721 = vrot.lane.b32.xlu0 %v2682, 3
        %v2722 = vpop.permute.xlu0 %2721
        %2723 = vrot.lane.b32.xlu0 %v2684, 3
        %v2724 = vpop.permute.xlu0 %2723
        %2725 = vrot.lane.b32.xlu0 %v2683, 3
        %v2726 = vpop.permute.xlu0 %2725
        %2727 = vrot.lane.b32.xlu0 %v2685, 3
        %v2728 = vpop.permute.xlu0 %2727
        %2729 = vrot.lane.b32.xlu0 %v2687, 3
        %v2730 = vpop.permute.xlu0 %2729
        %2731 = vrot.lane.b32.xlu0 %v2686, 3
        %v2732 = vpop.permute.xlu0 %2731
        %2733 = vrot.lane.b32.xlu0 %v2688, 3
        %v2734 = vpop.permute.xlu0 %2733
        %2735 = vrot.lane.b32.xlu0 %v2690, 3
        %v2736 = vpop.permute.xlu0 %2735
        %2737 = vrot.lane.b32.xlu0 %v2689, 3
        %v2738 = vpop.permute.xlu0 %2737
        %v2763 = vsel %vm2362, 0.0, %v2692
        %v2764 = vsel %vm2363, 0.0, %v2694
        %v2765 = vsel %vm2364, 0.0, %v2696
        %v2766 = vsel %vm2365, 0.0, %v2698
        %v2767 = vsel %vm2366, 0.0, %v2700
        %v2768 = vsel %vm2367, 0.0, %v2702
        %v2769 = vsel %vm2368, 0.0, %v2704
        %v2770 = vsel %vm2369, 0.0, %v2706
        %v2771 = vsel %vm2370, 0.0, %v2708
        %v2772 = vsel %vm2371, 0.0, %v2710
        %v2773 = vsel %vm2372, 0.0, %v2712
        %v2774 = vsel %vm2373, 0.0, %v2714
        %v2775 = vsel %vm2374, 0.0, %v2716
        %v2776 = vsel %vm2375, 0.0, %v2718
        %v2777 = vsel %vm2376, 0.0, %v2720
        %v2778 = vsel %vm2377, 0.0, %v2722
        %v2779 = vsel %vm2378, 0.0, %v2724
        %v2780 = vsel %vm2379, 0.0, %v2726
        %v2781 = vsel %vm2380, 0.0, %v2728
        %v2782 = vsel %vm2381, 0.0, %v2730
        %v2783 = vsel %vm2382, 0.0, %v2732
        %v2784 = vsel %vm2383, 0.0, %v2734
        %v2785 = vsel %vm2384, 0.0, %v2736
        %v2786 = vsel %vm2385, 0.0, %v2738
        %s2787 = sld [smem:[#allocation7]]
        %v2812 = vrot.slane %v2595, 3
        %v2813 = vrot.slane %v2596, 3
        %v2814 = vsel %vm1401, %v2812, %v2813
        %v2815 = vrot.slane %v2597, 3
        %v2816 = vsel %vm1401, %v2813, %v2815
        %v2817 = vrot.slane %v2598, 3
        %v2818 = vrot.slane %v2599, 3
        %v2819 = vsel %vm1401, %v2817, %v2818
        %v2820 = vrot.slane %v2600, 3
        %v2821 = vsel %vm1401, %v2818, %v2820
        %v2822 = vrot.slane %v2601, 3
        %v2823 = vrot.slane %v2602, 3
        %v2824 = vsel %vm1401, %v2822, %v2823
        %v2825 = vrot.slane %v2603, 3
        %v2826 = vsel %vm1401, %v2823, %v2825
        %v2827 = vrot.slane %v2604, 3
        %v2828 = vrot.slane %v2605, 3
        %v2829 = vsel %vm1401, %v2827, %v2828
        %v2830 = vrot.slane %v2606, 3
        %v2831 = vsel %vm1401, %v2828, %v2830
        %v2832 = vrot.slane %v2607, 3
        %v2833 = vrot.slane %v2608, 3
        %v2834 = vsel %vm1401, %v2832, %v2833
        %v2835 = vrot.slane %v2609, 3
        %v2836 = vsel %vm1401, %v2833, %v2835
        %v2837 = vrot.slane %v2610, 3
        %v2838 = vrot.slane %v2611, 3
        %v2839 = vsel %vm1401, %v2837, %v2838
        %v2840 = vrot.slane %v2612, 3
        %v2841 = vsel %vm1401, %v2838, %v2840
        %v2842 = vrot.slane %v2613, 3
        %v2843 = vrot.slane %v2614, 3
        %v2844 = vsel %vm1401, %v2842, %v2843
        %v2845 = vrot.slane %v2615, 3
        %v2846 = vsel %vm1401, %v2843, %v2845
        %v2847 = vrot.slane %v2616, 3
        %v2848 = vrot.slane %v2617, 3
        %v2849 = vsel %vm1401, %v2847, %v2848
        %v2850 = vrot.slane %v2618, 3
        %v2851 = vsel %vm1401, %v2848, %v2850
        %2852 = vrot.lane.b32.xlu0 %v2814, 125
        %v2853 = vpop.permute.xlu0 %2852
        %2854 = vrot.lane.b32.xlu0 %v2816, 125
        %v2855 = vpop.permute.xlu0 %2854
        %2856 = vrot.lane.b32.xlu0 %v2819, 125
        %v2857 = vpop.permute.xlu0 %2856
        %2858 = vrot.lane.b32.xlu0 %v2821, 125
        %v2859 = vpop.permute.xlu0 %2858
        %2860 = vrot.lane.b32.xlu0 %v2824, 125
        %v2861 = vpop.permute.xlu0 %2860
        %2862 = vrot.lane.b32.xlu0 %v2826, 125
        %v2863 = vpop.permute.xlu0 %2862
        %2864 = vrot.lane.b32.xlu0 %v2829, 125
        %v2865 = vpop.permute.xlu0 %2864
        %2866 = vrot.lane.b32.xlu0 %v2831, 125
        %v2867 = vpop.permute.xlu0 %2866
        %2868 = vrot.lane.b32.xlu0 %v2834, 125
        %v2869 = vpop.permute.xlu0 %2868
        %2870 = vrot.lane.b32.xlu0 %v2836, 125
        %v2871 = vpop.permute.xlu0 %2870
        %2872 = vrot.lane.b32.xlu0 %v2839, 125
        %v2873 = vpop.permute.xlu0 %2872
        %2874 = vrot.lane.b32.xlu0 %v2841, 125
        %v2875 = vpop.permute.xlu0 %2874
        %2876 = vrot.lane.b32.xlu0 %v2844, 125
        %v2877 = vpop.permute.xlu0 %2876
        %2878 = vrot.lane.b32.xlu0 %v2846, 125
        %v2879 = vpop.permute.xlu0 %2878
        %2880 = vrot.lane.b32.xlu0 %v2849, 125
        %v2881 = vpop.permute.xlu0 %2880
        %2882 = vrot.lane.b32.xlu0 %v2851, 125
        %v2883 = vpop.permute.xlu0 %2882
        %v2900 = vmul.f32 %v2466, %v2853
        %v2901 = vmul.f32 %v2467, %v2855
        %v2902 = vmul.f32 %v2468, %v2857
        %v2903 = vmul.f32 %v2469, %v2859
        %v2904 = vmul.f32 %v2470, %v2861
        %v2905 = vmul.f32 %v2471, %v2863
        %v2906 = vmul.f32 %v2472, %v2865
        %v2907 = vmul.f32 %v2473, %v2867
        %v2908 = vmul.f32 %v2474, %v2869
        %v2909 = vmul.f32 %v2475, %v2871
        %v2910 = vmul.f32 %v2476, %v2873
        %v2911 = vmul.f32 %v2477, %v2875
        %v2912 = vmul.f32 %v2478, %v2877
        %v2913 = vmul.f32 %v2479, %v2879
        %v2914 = vmul.f32 %v2480, %v2881
        %v2915 = vmul.f32 %v2481, %v2883
        %v2916 = vsel %vm414, %v2900, 0.0
        %v2917 = vsel %vm414, %v2901, 0.0
        %v2918 = vadd.f32 %v2916, %v2917
        %v2919 = vsel %vm414, %v2902, 0.0
        %v2920 = vadd.f32 %v2918, %v2919
        %v2921 = vsel %vm414, %v2903, 0.0
        %v2922 = vadd.f32 %v2920, %v2921
        %v2923 = vsel %vm414, %v2904, 0.0
        %v2924 = vadd.f32 %v2922, %v2923
        %v2925 = vsel %vm414, %v2905, 0.0
        %v2926 = vadd.f32 %v2924, %v2925
        %v2927 = vsel %vm414, %v2906, 0.0
        %v2928 = vadd.f32 %v2926, %v2927
        %v2929 = vsel %vm414, %v2907, 0.0
        %v2930 = vadd.f32 %v2928, %v2929
        %v2931 = vsel %vm414, %v2908, 0.0
        %v2932 = vadd.f32 %v2930, %v2931
        %v2933 = vsel %vm414, %v2909, 0.0
        %v2934 = vadd.f32 %v2932, %v2933
        %v2935 = vsel %vm414, %v2910, 0.0
        %v2936 = vadd.f32 %v2934, %v2935
        %v2937 = vsel %vm414, %v2911, 0.0
        %v2938 = vadd.f32 %v2936, %v2937
        %v2939 = vsel %vm414, %v2912, 0.0
        %v2940 = vadd.f32 %v2938, %v2939
        %v2941 = vsel %vm414, %v2913, 0.0
        %v2942 = vadd.f32 %v2940, %v2941
        %v2943 = vsel %vm414, %v2914, 0.0
        %v2944 = vadd.f32 %v2942, %v2943
        %v2945 = vsel %vm414, %v2915, 0.0
        %v2946 = vadd.f32 %v2944, %v2945
        %2947 = vadd.xlane.f32.xlu0 %v2946
        %v2948 = vpop.xlane.xlu0 %2947
        %v2949 = vrot.slane %v2948, 4
        %v2950 = vadd.f32 %v2948, %v2949
        %v2951 = vrot.slane %v2950, 2
        %v2952 = vadd.f32 %v2950, %v2951
        %v2953 = vrot.slane %v2952, 1
        %v2954 = vadd.f32 %v2952, %v2953
        %s2955 = vtos %v2954
        %s2956 = sadd.f32 %s2787, %s2955
        %s2957 = scalar_lea.smem [#allocation7], 0
        %2958 = sst [smem:[%s2957]] %s2956
        %s2959 = sld [smem:[#allocation7 + $0x1]]
        %v2960 = vsel %vm414, %v2466, 0.0
        %v2961 = vsel %vm414, %v2467, 0.0
        %v2962 = vadd.f32 %v2960, %v2961
        %v2963 = vsel %vm414, %v2468, 0.0
        %v2964 = vadd.f32 %v2962, %v2963
        %v2965 = vsel %vm414, %v2469, 0.0
        %v2966 = vadd.f32 %v2964, %v2965
        %v2967 = vsel %vm414, %v2470, 0.0
        %v2968 = vadd.f32 %v2966, %v2967
        %v2969 = vsel %vm414, %v2471, 0.0
        %v2970 = vadd.f32 %v2968, %v2969
        %v2971 = vsel %vm414, %v2472, 0.0
        %v2972 = vadd.f32 %v2970, %v2971
        %v2973 = vsel %vm414, %v2473, 0.0
        %v2974 = vadd.f32 %v2972, %v2973
        %v2975 = vsel %vm414, %v2474, 0.0
        %v2976 = vadd.f32 %v2974, %v2975
        %v2977 = vsel %vm414, %v2475, 0.0
        %v2978 = vadd.f32 %v2976, %v2977
        %v2979 = vsel %vm414, %v2476, 0.0
        %v2980 = vadd.f32 %v2978, %v2979
        %v2981 = vsel %vm414, %v2477, 0.0
        %v2982 = vadd.f32 %v2980, %v2981
        %v2983 = vsel %vm414, %v2478, 0.0
        %v2984 = vadd.f32 %v2982, %v2983
        %v2985 = vsel %vm414, %v2479, 0.0
        %v2986 = vadd.f32 %v2984, %v2985
        %v2987 = vsel %vm414, %v2480, 0.0
        %v2988 = vadd.f32 %v2986, %v2987
        %v2989 = vsel %vm414, %v2481, 0.0
        %v2990 = vadd.f32 %v2988, %v2989
        %2991 = vadd.xlane.f32.xlu0 %v2990
        %v2992 = vpop.xlane.xlu0 %2991
        %v2993 = vrot.slane %v2992, 4
        %v2994 = vadd.f32 %v2992, %v2993
        %v2995 = vrot.slane %v2994, 2
        %v2996 = vadd.f32 %v2994, %v2995
        %v2997 = vrot.slane %v2996, 1
        %v2998 = vadd.f32 %v2996, %v2997
        %s2999 = vtos %v2998
        %s3000 = sadd.f32 %s2959, %s2999
        %s3001 = scalar_lea.smem [#allocation7], 1
        %3002 = sst [smem:[%s3001]] %s3000
        %s3003 = sld [smem:[#allocation7 + $0x2]]
        %v3004 = vsel %vm414, %v2853, 0.0
        %v3005 = vsel %vm414, %v2855, 0.0
        %v3006 = vadd.f32 %v3004, %v3005
        %v3007 = vsel %vm414, %v2857, 0.0
        %v3008 = vadd.f32 %v3006, %v3007
        %v3009 = vsel %vm414, %v2859, 0.0
        %v3010 = vadd.f32 %v3008, %v3009
        %v3011 = vsel %vm414, %v2861, 0.0
        %v3012 = vadd.f32 %v3010, %v3011
        %v3013 = vsel %vm414, %v2863, 0.0
        %v3014 = vadd.f32 %v3012, %v3013
        %v3015 = vsel %vm414, %v2865, 0.0
        %v3016 = vadd.f32 %v3014, %v3015
        %v3017 = vsel %vm414, %v2867, 0.0
        %v3018 = vadd.f32 %v3016, %v3017
        %v3019 = vsel %vm414, %v2869, 0.0
        %v3020 = vadd.f32 %v3018, %v3019
        %v3021 = vsel %vm414, %v2871, 0.0
        %v3022 = vadd.f32 %v3020, %v3021
        %v3023 = vsel %vm414, %v2873, 0.0
        %v3024 = vadd.f32 %v3022, %v3023
        %v3025 = vsel %vm414, %v2875, 0.0
        %v3026 = vadd.f32 %v3024, %v3025
        %v3027 = vsel %vm414, %v2877, 0.0
        %v3028 = vadd.f32 %v3026, %v3027
        %v3029 = vsel %vm414, %v2879, 0.0
        %v3030 = vadd.f32 %v3028, %v3029
        %v3031 = vsel %vm414, %v2881, 0.0
        %v3032 = vadd.f32 %v3030, %v3031
        %v3033 = vsel %vm414, %v2883, 0.0
        %v3034 = vadd.f32 %v3032, %v3033
        %3035 = vadd.xlane.f32.xlu0 %v3034
        %v3036 = vpop.xlane.xlu0 %3035
        %v3037 = vrot.slane %v3036, 4
        %v3038 = vadd.f32 %v3036, %v3037
        %v3039 = vrot.slane %v3038, 2
        %v3040 = vadd.f32 %v3038, %v3039
        %v3041 = vrot.slane %v3040, 1
        %v3042 = vadd.f32 %v3040, %v3041
        %s3043 = vtos %v3042
        %s3044 = sadd.f32 %s3003, %s3043
        %s3045 = scalar_lea.smem [#allocation7], 2
        %3046 = sst [smem:[%s3045]] %s3044
        %s3047 = sld [smem:[#allocation7 + $0x3]]
        %v3048 = vsel %vm414, %v2434, 0.0
        %v3049 = vsel %vm414, %v2435, 0.0
        %v3050 = vadd.f32 %v3048, %v3049
        %v3051 = vsel %vm414, %v2436, 0.0
        %v3052 = vadd.f32 %v3050, %v3051
        %v3053 = vsel %vm414, %v2437, 0.0
        %v3054 = vadd.f32 %v3052, %v3053
        %v3055 = vsel %vm414, %v2438, 0.0
        %v3056 = vadd.f32 %v3054, %v3055
        %v3057 = vsel %vm414, %v2439, 0.0
        %v3058 = vadd.f32 %v3056, %v3057
        %v3059 = vsel %vm414, %v2440, 0.0
        %v3060 = vadd.f32 %v3058, %v3059
        %v3061 = vsel %vm414, %v2441, 0.0
        %v3062 = vadd.f32 %v3060, %v3061
        %v3063 = vsel %vm414, %v2442, 0.0
        %v3064 = vadd.f32 %v3062, %v3063
        %v3065 = vsel %vm414, %v2443, 0.0
        %v3066 = vadd.f32 %v3064, %v3065
        %v3067 = vsel %vm414, %v2444, 0.0
        %v3068 = vadd.f32 %v3066, %v3067
        %v3069 = vsel %vm414, %v2445, 0.0
        %v3070 = vadd.f32 %v3068, %v3069
        %v3071 = vsel %vm414, %v2446, 0.0
        %v3072 = vadd.f32 %v3070, %v3071
        %v3073 = vsel %vm414, %v2447, 0.0
        %v3074 = vadd.f32 %v3072, %v3073
        %v3075 = vsel %vm414, %v2448, 0.0
        %v3076 = vadd.f32 %v3074, %v3075
        %v3077 = vsel %vm414, %v2449, 0.0
        %v3078 = vadd.f32 %v3076, %v3077
        %3079 = vadd.xlane.f32.xlu0 %v3078
        %v3080 = vpop.xlane.xlu0 %3079
        %v3081 = vrot.slane %v3080, 4
        %v3082 = vadd.f32 %v3080, %v3081
        %v3083 = vrot.slane %v3082, 2
        %v3084 = vadd.f32 %v3082, %v3083
        %v3085 = vrot.slane %v3084, 1
        %v3086 = vadd.f32 %v3084, %v3085
        %s3087 = vtos %v3086
        %s3088 = sadd.f32 %s3047, %s3087
        %s3089 = scalar_lea.smem [#allocation7], 3
        %3090 = sst [smem:[%s3089]] %s3088
        %s3091 = sld [smem:[#allocation7 + $0x4]]
        %v3116 = vrot.slane %v2763, 3
        %v3117 = vrot.slane %v2764, 3
        %v3118 = vsel %vm1401, %v3116, %v3117
        %v3119 = vrot.slane %v2765, 3
        %v3120 = vsel %vm1401, %v3117, %v3119
        %v3121 = vrot.slane %v2766, 3
        %v3122 = vrot.slane %v2767, 3
        %v3123 = vsel %vm1401, %v3121, %v3122
        %v3124 = vrot.slane %v2768, 3
        %v3125 = vsel %vm1401, %v3122, %v3124
        %v3126 = vrot.slane %v2769, 3
        %v3127 = vrot.slane %v2770, 3
        %v3128 = vsel %vm1401, %v3126, %v3127
        %v3129 = vrot.slane %v2771, 3
        %v3130 = vsel %vm1401, %v3127, %v3129
        %v3131 = vrot.slane %v2772, 3
        %v3132 = vrot.slane %v2773, 3
        %v3133 = vsel %vm1401, %v3131, %v3132
        %v3134 = vrot.slane %v2774, 3
        %v3135 = vsel %vm1401, %v3132, %v3134
        %v3136 = vrot.slane %v2775, 3
        %v3137 = vrot.slane %v2776, 3
        %v3138 = vsel %vm1401, %v3136, %v3137
        %v3139 = vrot.slane %v2777, 3
        %v3140 = vsel %vm1401, %v3137, %v3139
        %v3141 = vrot.slane %v2778, 3
        %v3142 = vrot.slane %v2779, 3
        %v3143 = vsel %vm1401, %v3141, %v3142
        %v3144 = vrot.slane %v2780, 3
        %v3145 = vsel %vm1401, %v3142, %v3144
        %v3146 = vrot.slane %v2781, 3
        %v3147 = vrot.slane %v2782, 3
        %v3148 = vsel %vm1401, %v3146, %v3147
        %v3149 = vrot.slane %v2783, 3
        %v3150 = vsel %vm1401, %v3147, %v3149
        %v3151 = vrot.slane %v2784, 3
        %v3152 = vrot.slane %v2785, 3
        %v3153 = vsel %vm1401, %v3151, %v3152
        %v3154 = vrot.slane %v2786, 3
        %v3155 = vsel %vm1401, %v3152, %v3154
        %3156 = vrot.lane.b32.xlu0 %v3118, 125
        %v3157 = vpop.permute.xlu0 %3156
        %3158 = vrot.lane.b32.xlu0 %v3120, 125
        %v3159 = vpop.permute.xlu0 %3158
        %3160 = vrot.lane.b32.xlu0 %v3123, 125
        %v3161 = vpop.permute.xlu0 %3160
        %3162 = vrot.lane.b32.xlu0 %v3125, 125
        %v3163 = vpop.permute.xlu0 %3162
        %3164 = vrot.lane.b32.xlu0 %v3128, 125
        %v3165 = vpop.permute.xlu0 %3164
        %3166 = vrot.lane.b32.xlu0 %v3130, 125
        %v3167 = vpop.permute.xlu0 %3166
        %3168 = vrot.lane.b32.xlu0 %v3133, 125
        %v3169 = vpop.permute.xlu0 %3168
        %3170 = vrot.lane.b32.xlu0 %v3135, 125
        %v3171 = vpop.permute.xlu0 %3170
        %3172 = vrot.lane.b32.xlu0 %v3138, 125
        %v3173 = vpop.permute.xlu0 %3172
        %3174 = vrot.lane.b32.xlu0 %v3140, 125
        %v3175 = vpop.permute.xlu0 %3174
        %3176 = vrot.lane.b32.xlu0 %v3143, 125
        %v3177 = vpop.permute.xlu0 %3176
        %3178 = vrot.lane.b32.xlu0 %v3145, 125
        %v3179 = vpop.permute.xlu0 %3178
        %3180 = vrot.lane.b32.xlu0 %v3148, 125
        %v3181 = vpop.permute.xlu0 %3180
        %3182 = vrot.lane.b32.xlu0 %v3150, 125
        %v3183 = vpop.permute.xlu0 %3182
        %3184 = vrot.lane.b32.xlu0 %v3153, 125
        %v3185 = vpop.permute.xlu0 %3184
        %3186 = vrot.lane.b32.xlu0 %v3155, 125
        %v3187 = vpop.permute.xlu0 %3186
        %v3204 = vsel %vm414, %v3157, 0.0
        %v3205 = vsel %vm414, %v3159, 0.0
        %v3206 = vadd.f32 %v3204, %v3205
        %v3207 = vsel %vm414, %v3161, 0.0
        %v3208 = vadd.f32 %v3206, %v3207
        %v3209 = vsel %vm414, %v3163, 0.0
        %v3210 = vadd.f32 %v3208, %v3209
        %v3211 = vsel %vm414, %v3165, 0.0
        %v3212 = vadd.f32 %v3210, %v3211
        %v3213 = vsel %vm414, %v3167, 0.0
        %v3214 = vadd.f32 %v3212, %v3213
        %v3215 = vsel %vm414, %v3169, 0.0
        %v3216 = vadd.f32 %v3214, %v3215
        %v3217 = vsel %vm414, %v3171, 0.0
        %v3218 = vadd.f32 %v3216, %v3217
        %v3219 = vsel %vm414, %v3173, 0.0
        %v3220 = vadd.f32 %v3218, %v3219
        %v3221 = vsel %vm414, %v3175, 0.0
        %v3222 = vadd.f32 %v3220, %v3221
        %v3223 = vsel %vm414, %v3177, 0.0
        %v3224 = vadd.f32 %v3222, %v3223
        %v3225 = vsel %vm414, %v3179, 0.0
        %v3226 = vadd.f32 %v3224, %v3225
        %v3227 = vsel %vm414, %v3181, 0.0
        %v3228 = vadd.f32 %v3226, %v3227
        %v3229 = vsel %vm414, %v3183, 0.0
        %v3230 = vadd.f32 %v3228, %v3229
        %v3231 = vsel %vm414, %v3185, 0.0
        %v3232 = vadd.f32 %v3230, %v3231
        %v3233 = vsel %vm414, %v3187, 0.0
        %v3234 = vadd.f32 %v3232, %v3233
        %3235 = vadd.xlane.f32.xlu0 %v3234
        %v3236 = vpop.xlane.xlu0 %3235
        %v3237 = vrot.slane %v3236, 4
        %v3238 = vadd.f32 %v3236, %v3237
        %v3239 = vrot.slane %v3238, 2
        %v3240 = vadd.f32 %v3238, %v3239
        %v3241 = vrot.slane %v3240, 1
        %v3242 = vadd.f32 %v3240, %v3241
        %s3243 = vtos %v3242
        %s3244 = sadd.f32 %s3091, %s3243
        %s3245 = scalar_lea.smem [#allocation7], 4
        %3246 = sst [smem:[%s3245]] %s3244
        %v3247 = vmul.f32 %v624, %v832
        %v3248 = vmul.f32 %v626, %v834
        %v3249 = vmul.f32 %v628, %v836
        %v3250 = vmul.f32 %v630, %v838
        %v3251 = vmul.f32 %v632, %v840
        %v3252 = vmul.f32 %v634, %v842
        %v3253 = vmul.f32 %v636, %v844
        %v3254 = vmul.f32 %v638, %v846
        %v3255 = vmul.f32 %v688, %v848
        %v3256 = vmul.f32 %v690, %v850
        %v3257 = vmul.f32 %v692, %v852
        %v3258 = vmul.f32 %v694, %v854
        %v3259 = vmul.f32 %v696, %v856
        %v3260 = vmul.f32 %v698, %v858
        %v3261 = vmul.f32 %v700, %v860
        %v3262 = vmul.f32 %v702, %v862
        %vm3263 = vcmp.eq.s32.totalorder %v299, 2
        %vm3264 = vcmp.eq.s32.totalorder %v300, 2
        %vm3265 = vcmp.eq.s32.totalorder %v301, 2
        %vm3266 = vcmp.eq.s32.totalorder %v302, 2
        %vm3267 = vcmp.eq.s32.totalorder %v303, 2
        %vm3268 = vcmp.eq.s32.totalorder %v304, 2
        %vm3269 = vcmp.eq.s32.totalorder %v305, 2
        %vm3270 = vcmp.eq.s32.totalorder %v306, 2
        %vm3271 = vcmp.eq.s32.totalorder %v307, 2
        %vm3272 = vcmp.eq.s32.totalorder %v308, 2
        %vm3273 = vcmp.eq.s32.totalorder %v309, 2
        %vm3274 = vcmp.eq.s32.totalorder %v310, 2
        %vm3275 = vcmp.eq.s32.totalorder %v329, 2
        %vm3276 = vcmp.eq.s32.totalorder %v330, 2
        %vm3277 = vcmp.eq.s32.totalorder %v331, 2
        %vm3278 = vcmp.eq.s32.totalorder %v332, 2
        %vm3279 = vcmp.eq.s32.totalorder %v333, 2
        %vm3280 = vcmp.eq.s32.totalorder %v334, 2
        %vm3281 = vcmp.eq.s32.totalorder %v335, 2
        %vm3282 = vcmp.eq.s32.totalorder %v336, 2
        %vm3283 = vcmp.eq.s32.totalorder %v337, 2
        %vm3284 = vcmp.eq.s32.totalorder %v338, 2
        %vm3285 = vcmp.eq.s32.totalorder %v339, 2
        %vm3286 = vcmp.eq.s32.totalorder %v340, 2
        %vm3287 = vcmp.eq.s32.totalorder %v2315, 2
        %vm3288 = vcmp.eq.s32.totalorder %v2317, 2
        %vm3289 = vcmp.eq.s32.totalorder %v2319, 2
        %vm3290 = vcmp.eq.s32.totalorder %v2321, 2
        %vm3291 = vcmp.eq.s32.totalorder %v2323, 2
        %vm3292 = vcmp.eq.s32.totalorder %v2325, 2
        %vm3293 = vcmp.eq.s32.totalorder %v2327, 2
        %vm3294 = vcmp.eq.s32.totalorder %v2329, 2
        %vm3295 = vcmp.eq.s32.totalorder %v2331, 2
        %vm3296 = vcmp.eq.s32.totalorder %v2333, 2
        %vm3297 = vcmp.eq.s32.totalorder %v2335, 2
        %vm3298 = vcmp.eq.s32.totalorder %v2337, 2
        %vm3299 = vcmp.eq.s32.totalorder %v2339, 2
        %vm3300 = vcmp.eq.s32.totalorder %v2341, 2
        %vm3301 = vcmp.eq.s32.totalorder %v2343, 2
        %vm3302 = vcmp.eq.s32.totalorder %v2345, 2
        %vm3303 = vcmp.eq.s32.totalorder %v1635, 2
        %vm3304 = vcmp.eq.s32.totalorder %v1637, 2
        %vm3305 = vcmp.eq.s32.totalorder %v1639, 2
        %vm3306 = vcmp.eq.s32.totalorder %v1641, 2
        %vm3307 = vcmp.eq.s32.totalorder %v1643, 2
        %vm3308 = vcmp.eq.s32.totalorder %v1645, 2
        %vm3309 = vcmp.eq.s32.totalorder %v1647, 2
        %vm3310 = vcmp.eq.s32.totalorder %v1649, 2
        %vm3311 = vcmp.eq.s32.totalorder %v1651, 2
        %vm3312 = vcmp.eq.s32.totalorder %v1653, 2
        %vm3313 = vcmp.eq.s32.totalorder %v1655, 2
        %vm3314 = vcmp.eq.s32.totalorder %v1657, 2
        %vm3315 = vcmp.eq.s32.totalorder %v1659, 2
        %vm3316 = vcmp.eq.s32.totalorder %v1661, 2
        %vm3317 = vcmp.eq.s32.totalorder %v1663, 2
        %vm3318 = vcmp.eq.s32.totalorder %v1665, 2
        %vm3319 = vmand %vm3287, %vm3303
        %vm3320 = vmand %vm3288, %vm3304
        %vm3321 = vmand %vm3289, %vm3305
        %vm3322 = vmand %vm3290, %vm3306
        %vm3323 = vmand %vm3291, %vm3307
        %vm3324 = vmand %vm3292, %vm3308
        %vm3325 = vmand %vm3293, %vm3309
        %vm3326 = vmand %vm3294, %vm3310
        %vm3327 = vmand %vm3295, %vm3311
        %vm3328 = vmand %vm3296, %vm3312
        %vm3329 = vmand %vm3297, %vm3313
        %vm3330 = vmand %vm3298, %vm3314
        %vm3331 = vmand %vm3299, %vm3315
        %vm3332 = vmand %vm3300, %vm3316
        %vm3333 = vmand %vm3301, %vm3317
        %vm3334 = vmand %vm3302, %vm3318
        %v3335 = vsel %vm3319, 1.0, 0.7788008
        %v3336 = vsel %vm3320, 1.0, 0.7788008
        %v3337 = vsel %vm3321, 1.0, 0.7788008
        %v3338 = vsel %vm3322, 1.0, 0.7788008
        %v3339 = vsel %vm3323, 1.0, 0.7788008
        %v3340 = vsel %vm3324, 1.0, 0.7788008
        %v3341 = vsel %vm3325, 1.0, 0.7788008
        %v3342 = vsel %vm3326, 1.0, 0.7788008
        %v3343 = vsel %vm3327, 1.0, 0.7788008
        %v3344 = vsel %vm3328, 1.0, 0.7788008
        %v3345 = vsel %vm3329, 1.0, 0.7788008
        %v3346 = vsel %vm3330, 1.0, 0.7788008
        %v3347 = vsel %vm3331, 1.0, 0.7788008
        %v3348 = vsel %vm3332, 1.0, 0.7788008
        %v3349 = vsel %vm3333, 1.0, 0.7788008
        %v3350 = vsel %vm3334, 1.0, 0.7788008
        %v3351 = vsel %vm3319, 1.0, 0.60653067
        %v3352 = vsel %vm3320, 1.0, 0.60653067
        %v3353 = vsel %vm3321, 1.0, 0.60653067
        %v3354 = vsel %vm3322, 1.0, 0.60653067
        %v3355 = vsel %vm3323, 1.0, 0.60653067
        %v3356 = vsel %vm3324, 1.0, 0.60653067
        %v3357 = vsel %vm3325, 1.0, 0.60653067
        %v3358 = vsel %vm3326, 1.0, 0.60653067
        %v3359 = vsel %vm3327, 1.0, 0.60653067
        %v3360 = vsel %vm3328, 1.0, 0.60653067
        %v3361 = vsel %vm3329, 1.0, 0.60653067
        %v3362 = vsel %vm3330, 1.0, 0.60653067
        %v3363 = vsel %vm3331, 1.0, 0.60653067
        %v3364 = vsel %vm3332, 1.0, 0.60653067
        %v3365 = vsel %vm3333, 1.0, 0.60653067
        %v3366 = vsel %vm3334, 1.0, 0.60653067
        %v3367 = vmul.f32 %v3247, %v3335
        %v3368 = vmul.f32 %v3248, %v3336
        %v3369 = vmul.f32 %v3249, %v3337
        %v3370 = vmul.f32 %v3250, %v3338
        %v3371 = vmul.f32 %v3251, %v3339
        %v3372 = vmul.f32 %v3252, %v3340
        %v3373 = vmul.f32 %v3253, %v3341
        %v3374 = vmul.f32 %v3254, %v3342
        %v3375 = vmul.f32 %v3255, %v3343
        %v3376 = vmul.f32 %v3256, %v3344
        %v3377 = vmul.f32 %v3257, %v3345
        %v3378 = vmul.f32 %v3258, %v3346
        %v3379 = vmul.f32 %v3259, %v3347
        %v3380 = vmul.f32 %v3260, %v3348
        %v3381 = vmul.f32 %v3261, %v3349
        %v3382 = vmul.f32 %v3262, %v3350
        %v3399 = vrot.slane %v3335, 5
        %v3400 = vrot.slane %v3336, 5
        %v3401 = vsel %vm2498, %v3399, %v3400
        %v3402 = vrot.slane %v3337, 5
        %v3403 = vrot.slane %v3338, 5
        %v3404 = vsel %vm2498, %v3402, %v3403
        %v3405 = vrot.slane %v3339, 5
        %v3406 = vrot.slane %v3340, 5
        %v3407 = vsel %vm2498, %v3405, %v3406
        %v3408 = vrot.slane %v3341, 5
        %v3409 = vrot.slane %v3342, 5
        %v3410 = vsel %vm2498, %v3408, %v3409
        %v3411 = vrot.slane %v3343, 5
        %v3412 = vrot.slane %v3344, 5
        %v3413 = vsel %vm2498, %v3411, %v3412
        %v3414 = vrot.slane %v3345, 5
        %v3415 = vrot.slane %v3346, 5
        %v3416 = vsel %vm2498, %v3414, %v3415
        %v3417 = vrot.slane %v3347, 5
        %v3418 = vrot.slane %v3348, 5
        %v3419 = vsel %vm2498, %v3417, %v3418
        %v3420 = vrot.slane %v3349, 5
        %v3421 = vrot.slane %v3350, 5
        %v3422 = vsel %vm2498, %v3420, %v3421
        %3423 = vrot.lane.b32.xlu0 %v3399, 3
        %v3424 = vpop.permute.xlu0 %3423
        %3425 = vrot.lane.b32.xlu0 %v3401, 3
        %v3426 = vpop.permute.xlu0 %3425
        %3427 = vrot.lane.b32.xlu0 %v3400, 3
        %v3428 = vpop.permute.xlu0 %3427
        %3429 = vrot.lane.b32.xlu0 %v3402, 3
        %v3430 = vpop.permute.xlu0 %3429
        %3431 = vrot.lane.b32.xlu0 %v3404, 3
        %v3432 = vpop.permute.xlu0 %3431
        %3433 = vrot.lane.b32.xlu0 %v3403, 3
        %v3434 = vpop.permute.xlu0 %3433
        %3435 = vrot.lane.b32.xlu0 %v3405, 3
        %v3436 = vpop.permute.xlu0 %3435
        %3437 = vrot.lane.b32.xlu0 %v3407, 3
        %v3438 = vpop.permute.xlu0 %3437
        %3439 = vrot.lane.b32.xlu0 %v3406, 3
        %v3440 = vpop.permute.xlu0 %3439
        %3441 = vrot.lane.b32.xlu0 %v3408, 3
        %v3442 = vpop.permute.xlu0 %3441
        %3443 = vrot.lane.b32.xlu0 %v3410, 3
        %v3444 = vpop.permute.xlu0 %3443
        %3445 = vrot.lane.b32.xlu0 %v3409, 3
        %v3446 = vpop.permute.xlu0 %3445
        %3447 = vrot.lane.b32.xlu0 %v3411, 3
        %v3448 = vpop.permute.xlu0 %3447
        %3449 = vrot.lane.b32.xlu0 %v3413, 3
        %v3450 = vpop.permute.xlu0 %3449
        %3451 = vrot.lane.b32.xlu0 %v3412, 3
        %v3452 = vpop.permute.xlu0 %3451
        %3453 = vrot.lane.b32.xlu0 %v3414, 3
        %v3454 = vpop.permute.xlu0 %3453
        %3455 = vrot.lane.b32.xlu0 %v3416, 3
        %v3456 = vpop.permute.xlu0 %3455
        %3457 = vrot.lane.b32.xlu0 %v3415, 3
        %v3458 = vpop.permute.xlu0 %3457
        %3459 = vrot.lane.b32.xlu0 %v3417, 3
        %v3460 = vpop.permute.xlu0 %3459
        %3461 = vrot.lane.b32.xlu0 %v3419, 3
        %v3462 = vpop.permute.xlu0 %3461
        %3463 = vrot.lane.b32.xlu0 %v3418, 3
        %v3464 = vpop.permute.xlu0 %3463
        %3465 = vrot.lane.b32.xlu0 %v3420, 3
        %v3466 = vpop.permute.xlu0 %3465
        %3467 = vrot.lane.b32.xlu0 %v3422, 3
        %v3468 = vpop.permute.xlu0 %3467
        %3469 = vrot.lane.b32.xlu0 %v3421, 3
        %v3470 = vpop.permute.xlu0 %3469
        %v3495 = vsel %vm3263, %v3424, 0.0
        %v3496 = vsel %vm3264, %v3426, 0.0
        %v3497 = vsel %vm3265, %v3428, 0.0
        %v3498 = vsel %vm3266, %v3430, 0.0
        %v3499 = vsel %vm3267, %v3432, 0.0
        %v3500 = vsel %vm3268, %v3434, 0.0
        %v3501 = vsel %vm3269, %v3436, 0.0
        %v3502 = vsel %vm3270, %v3438, 0.0
        %v3503 = vsel %vm3271, %v3440, 0.0
        %v3504 = vsel %vm3272, %v3442, 0.0
        %v3505 = vsel %vm3273, %v3444, 0.0
        %v3506 = vsel %vm3274, %v3446, 0.0
        %v3507 = vsel %vm3275, %v3448, 0.0
        %v3508 = vsel %vm3276, %v3450, 0.0
        %v3509 = vsel %vm3277, %v3452, 0.0
        %v3510 = vsel %vm3278, %v3454, 0.0
        %v3511 = vsel %vm3279, %v3456, 0.0
        %v3512 = vsel %vm3280, %v3458, 0.0
        %v3513 = vsel %vm3281, %v3460, 0.0
        %v3514 = vsel %vm3282, %v3462, 0.0
        %v3515 = vsel %vm3283, %v3464, 0.0
        %v3516 = vsel %vm3284, %v3466, 0.0
        %v3517 = vsel %vm3285, %v3468, 0.0
        %v3518 = vsel %vm3286, %v3470, 0.0
        %v3519 = vsub.f32 1.0, %v3247
        %v3520 = vsub.f32 1.0, %v3248
        %v3521 = vsub.f32 1.0, %v3249
        %v3522 = vsub.f32 1.0, %v3250
        %v3523 = vsub.f32 1.0, %v3251
        %v3524 = vsub.f32 1.0, %v3252
        %v3525 = vsub.f32 1.0, %v3253
        %v3526 = vsub.f32 1.0, %v3254
        %v3527 = vsub.f32 1.0, %v3255
        %v3528 = vsub.f32 1.0, %v3256
        %v3529 = vsub.f32 1.0, %v3257
        %v3530 = vsub.f32 1.0, %v3258
        %v3531 = vsub.f32 1.0, %v3259
        %v3532 = vsub.f32 1.0, %v3260
        %v3533 = vsub.f32 1.0, %v3261
        %v3534 = vsub.f32 1.0, %v3262
        %v3535 = vmul.f32 %v3519, %v3351
        %v3536 = vmul.f32 %v3520, %v3352
        %v3537 = vmul.f32 %v3521, %v3353
        %v3538 = vmul.f32 %v3522, %v3354
        %v3539 = vmul.f32 %v3523, %v3355
        %v3540 = vmul.f32 %v3524, %v3356
        %v3541 = vmul.f32 %v3525, %v3357
        %v3542 = vmul.f32 %v3526, %v3358
        %v3543 = vmul.f32 %v3527, %v3359
        %v3544 = vmul.f32 %v3528, %v3360
        %v3545 = vmul.f32 %v3529, %v3361
        %v3546 = vmul.f32 %v3530, %v3362
        %v3547 = vmul.f32 %v3531, %v3363
        %v3548 = vmul.f32 %v3532, %v3364
        %v3549 = vmul.f32 %v3533, %v3365
        %v3550 = vmul.f32 %v3534, %v3366
        %v3567 = vrot.slane %v3535, 5
        %v3568 = vrot.slane %v3536, 5
        %v3569 = vsel %vm2498, %v3567, %v3568
        %v3570 = vrot.slane %v3537, 5
        %v3571 = vrot.slane %v3538, 5
        %v3572 = vsel %vm2498, %v3570, %v3571
        %v3573 = vrot.slane %v3539, 5
        %v3574 = vrot.slane %v3540, 5
        %v3575 = vsel %vm2498, %v3573, %v3574
        %v3576 = vrot.slane %v3541, 5
        %v3577 = vrot.slane %v3542, 5
        %v3578 = vsel %vm2498, %v3576, %v3577
        %v3579 = vrot.slane %v3543, 5
        %v3580 = vrot.slane %v3544, 5
        %v3581 = vsel %vm2498, %v3579, %v3580
        %v3582 = vrot.slane %v3545, 5
        %v3583 = vrot.slane %v3546, 5
        %v3584 = vsel %vm2498, %v3582, %v3583
        %v3585 = vrot.slane %v3547, 5
        %v3586 = vrot.slane %v3548, 5
        %v3587 = vsel %vm2498, %v3585, %v3586
        %v3588 = vrot.slane %v3549, 5
        %v3589 = vrot.slane %v3550, 5
        %v3590 = vsel %vm2498, %v3588, %v3589
        %3591 = vrot.lane.b32.xlu0 %v3567, 3
        %v3592 = vpop.permute.xlu0 %3591
        %3593 = vrot.lane.b32.xlu0 %v3569, 3
        %v3594 = vpop.permute.xlu0 %3593
        %3595 = vrot.lane.b32.xlu0 %v3568, 3
        %v3596 = vpop.permute.xlu0 %3595
        %3597 = vrot.lane.b32.xlu0 %v3570, 3
        %v3598 = vpop.permute.xlu0 %3597
        %3599 = vrot.lane.b32.xlu0 %v3572, 3
        %v3600 = vpop.permute.xlu0 %3599
        %3601 = vrot.lane.b32.xlu0 %v3571, 3
        %v3602 = vpop.permute.xlu0 %3601
        %3603 = vrot.lane.b32.xlu0 %v3573, 3
        %v3604 = vpop.permute.xlu0 %3603
        %3605 = vrot.lane.b32.xlu0 %v3575, 3
        %v3606 = vpop.permute.xlu0 %3605
        %3607 = vrot.lane.b32.xlu0 %v3574, 3
        %v3608 = vpop.permute.xlu0 %3607
        %3609 = vrot.lane.b32.xlu0 %v3576, 3
        %v3610 = vpop.permute.xlu0 %3609
        %3611 = vrot.lane.b32.xlu0 %v3578, 3
        %v3612 = vpop.permute.xlu0 %3611
        %3613 = vrot.lane.b32.xlu0 %v3577, 3
        %v3614 = vpop.permute.xlu0 %3613
        %3615 = vrot.lane.b32.xlu0 %v3579, 3
        %v3616 = vpop.permute.xlu0 %3615
        %3617 = vrot.lane.b32.xlu0 %v3581, 3
        %v3618 = vpop.permute.xlu0 %3617
        %3619 = vrot.lane.b32.xlu0 %v3580, 3
        %v3620 = vpop.permute.xlu0 %3619
        %3621 = vrot.lane.b32.xlu0 %v3582, 3
        %v3622 = vpop.permute.xlu0 %3621
        %3623 = vrot.lane.b32.xlu0 %v3584, 3
        %v3624 = vpop.permute.xlu0 %3623
        %3625 = vrot.lane.b32.xlu0 %v3583, 3
        %v3626 = vpop.permute.xlu0 %3625
        %3627 = vrot.lane.b32.xlu0 %v3585, 3
        %v3628 = vpop.permute.xlu0 %3627
        %3629 = vrot.lane.b32.xlu0 %v3587, 3
        %v3630 = vpop.permute.xlu0 %3629
        %3631 = vrot.lane.b32.xlu0 %v3586, 3
        %v3632 = vpop.permute.xlu0 %3631
        %3633 = vrot.lane.b32.xlu0 %v3588, 3
        %v3634 = vpop.permute.xlu0 %3633
        %3635 = vrot.lane.b32.xlu0 %v3590, 3
        %v3636 = vpop.permute.xlu0 %3635
        %3637 = vrot.lane.b32.xlu0 %v3589, 3
        %v3638 = vpop.permute.xlu0 %3637
        %v3663 = vsel %vm3263, 0.0, %v3592
        %v3664 = vsel %vm3264, 0.0, %v3594
        %v3665 = vsel %vm3265, 0.0, %v3596
        %v3666 = vsel %vm3266, 0.0, %v3598
        %v3667 = vsel %vm3267, 0.0, %v3600
        %v3668 = vsel %vm3268, 0.0, %v3602
        %v3669 = vsel %vm3269, 0.0, %v3604
        %v3670 = vsel %vm3270, 0.0, %v3606
        %v3671 = vsel %vm3271, 0.0, %v3608
        %v3672 = vsel %vm3272, 0.0, %v3610
        %v3673 = vsel %vm3273, 0.0, %v3612
        %v3674 = vsel %vm3274, 0.0, %v3614
        %v3675 = vsel %vm3275, 0.0, %v3616
        %v3676 = vsel %vm3276, 0.0, %v3618
        %v3677 = vsel %vm3277, 0.0, %v3620
        %v3678 = vsel %vm3278, 0.0, %v3622
        %v3679 = vsel %vm3279, 0.0, %v3624
        %v3680 = vsel %vm3280, 0.0, %v3626
        %v3681 = vsel %vm3281, 0.0, %v3628
        %v3682 = vsel %vm3282, 0.0, %v3630
        %v3683 = vsel %vm3283, 0.0, %v3632
        %v3684 = vsel %vm3284, 0.0, %v3634
        %v3685 = vsel %vm3285, 0.0, %v3636
        %v3686 = vsel %vm3286, 0.0, %v3638
        %s3687 = sld [smem:[#allocation7 + $0x80]]
        %v3712 = vrot.slane %v3495, 3
        %v3713 = vrot.slane %v3496, 3
        %v3714 = vsel %vm1401, %v3712, %v3713
        %v3715 = vrot.slane %v3497, 3
        %v3716 = vsel %vm1401, %v3713, %v3715
        %v3717 = vrot.slane %v3498, 3
        %v3718 = vrot.slane %v3499, 3
        %v3719 = vsel %vm1401, %v3717, %v3718
        %v3720 = vrot.slane %v3500, 3
        %v3721 = vsel %vm1401, %v3718, %v3720
        %v3722 = vrot.slane %v3501, 3
        %v3723 = vrot.slane %v3502, 3
        %v3724 = vsel %vm1401, %v3722, %v3723
        %v3725 = vrot.slane %v3503, 3
        %v3726 = vsel %vm1401, %v3723, %v3725
        %v3727 = vrot.slane %v3504, 3
        %v3728 = vrot.slane %v3505, 3
        %v3729 = vsel %vm1401, %v3727, %v3728
        %v3730 = vrot.slane %v3506, 3
        %v3731 = vsel %vm1401, %v3728, %v3730
        %v3732 = vrot.slane %v3507, 3
        %v3733 = vrot.slane %v3508, 3
        %v3734 = vsel %vm1401, %v3732, %v3733
        %v3735 = vrot.slane %v3509, 3
        %v3736 = vsel %vm1401, %v3733, %v3735
        %v3737 = vrot.slane %v3510, 3
        %v3738 = vrot.slane %v3511, 3
        %v3739 = vsel %vm1401, %v3737, %v3738
        %v3740 = vrot.slane %v3512, 3
        %v3741 = vsel %vm1401, %v3738, %v3740
        %v3742 = vrot.slane %v3513, 3
        %v3743 = vrot.slane %v3514, 3
        %v3744 = vsel %vm1401, %v3742, %v3743
        %v3745 = vrot.slane %v3515, 3
        %v3746 = vsel %vm1401, %v3743, %v3745
        %v3747 = vrot.slane %v3516, 3
        %v3748 = vrot.slane %v3517, 3
        %v3749 = vsel %vm1401, %v3747, %v3748
        %v3750 = vrot.slane %v3518, 3
        %v3751 = vsel %vm1401, %v3748, %v3750
        %3752 = vrot.lane.b32.xlu0 %v3714, 125
        %v3753 = vpop.permute.xlu0 %3752
        %3754 = vrot.lane.b32.xlu0 %v3716, 125
        %v3755 = vpop.permute.xlu0 %3754
        %3756 = vrot.lane.b32.xlu0 %v3719, 125
        %v3757 = vpop.permute.xlu0 %3756
        %3758 = vrot.lane.b32.xlu0 %v3721, 125
        %v3759 = vpop.permute.xlu0 %3758
        %3760 = vrot.lane.b32.xlu0 %v3724, 125
        %v3761 = vpop.permute.xlu0 %3760
        %3762 = vrot.lane.b32.xlu0 %v3726, 125
        %v3763 = vpop.permute.xlu0 %3762
        %3764 = vrot.lane.b32.xlu0 %v3729, 125
        %v3765 = vpop.permute.xlu0 %3764
        %3766 = vrot.lane.b32.xlu0 %v3731, 125
        %v3767 = vpop.permute.xlu0 %3766
        %3768 = vrot.lane.b32.xlu0 %v3734, 125
        %v3769 = vpop.permute.xlu0 %3768
        %3770 = vrot.lane.b32.xlu0 %v3736, 125
        %v3771 = vpop.permute.xlu0 %3770
        %3772 = vrot.lane.b32.xlu0 %v3739, 125
        %v3773 = vpop.permute.xlu0 %3772
        %3774 = vrot.lane.b32.xlu0 %v3741, 125
        %v3775 = vpop.permute.xlu0 %3774
        %3776 = vrot.lane.b32.xlu0 %v3744, 125
        %v3777 = vpop.permute.xlu0 %3776
        %3778 = vrot.lane.b32.xlu0 %v3746, 125
        %v3779 = vpop.permute.xlu0 %3778
        %3780 = vrot.lane.b32.xlu0 %v3749, 125
        %v3781 = vpop.permute.xlu0 %3780
        %3782 = vrot.lane.b32.xlu0 %v3751, 125
        %v3783 = vpop.permute.xlu0 %3782
        %v3800 = vmul.f32 %v3367, %v3753
        %v3801 = vmul.f32 %v3368, %v3755
        %v3802 = vmul.f32 %v3369, %v3757
        %v3803 = vmul.f32 %v3370, %v3759
        %v3804 = vmul.f32 %v3371, %v3761
        %v3805 = vmul.f32 %v3372, %v3763
        %v3806 = vmul.f32 %v3373, %v3765
        %v3807 = vmul.f32 %v3374, %v3767
        %v3808 = vmul.f32 %v3375, %v3769
        %v3809 = vmul.f32 %v3376, %v3771
        %v3810 = vmul.f32 %v3377, %v3773
        %v3811 = vmul.f32 %v3378, %v3775
        %v3812 = vmul.f32 %v3379, %v3777
        %v3813 = vmul.f32 %v3380, %v3779
        %v3814 = vmul.f32 %v3381, %v3781
        %v3815 = vmul.f32 %v3382, %v3783
        %v3816 = vsel %vm414, %v3800, 0.0
        %v3817 = vsel %vm414, %v3801, 0.0
        %v3818 = vadd.f32 %v3816, %v3817
        %v3819 = vsel %vm414, %v3802, 0.0
        %v3820 = vadd.f32 %v3818, %v3819
        %v3821 = vsel %vm414, %v3803, 0.0
        %v3822 = vadd.f32 %v3820, %v3821
        %v3823 = vsel %vm414, %v3804, 0.0
        %v3824 = vadd.f32 %v3822, %v3823
        %v3825 = vsel %vm414, %v3805, 0.0
        %v3826 = vadd.f32 %v3824, %v3825
        %v3827 = vsel %vm414, %v3806, 0.0
        %v3828 = vadd.f32 %v3826, %v3827
        %v3829 = vsel %vm414, %v3807, 0.0
        %v3830 = vadd.f32 %v3828, %v3829
        %v3831 = vsel %vm414, %v3808, 0.0
        %v3832 = vadd.f32 %v3830, %v3831
        %v3833 = vsel %vm414, %v3809, 0.0
        %v3834 = vadd.f32 %v3832, %v3833
        %v3835 = vsel %vm414, %v3810, 0.0
        %v3836 = vadd.f32 %v3834, %v3835
        %v3837 = vsel %vm414, %v3811, 0.0
        %v3838 = vadd.f32 %v3836, %v3837
        %v3839 = vsel %vm414, %v3812, 0.0
        %v3840 = vadd.f32 %v3838, %v3839
        %v3841 = vsel %vm414, %v3813, 0.0
        %v3842 = vadd.f32 %v3840, %v3841
        %v3843 = vsel %vm414, %v3814, 0.0
        %v3844 = vadd.f32 %v3842, %v3843
        %v3845 = vsel %vm414, %v3815, 0.0
        %v3846 = vadd.f32 %v3844, %v3845
        %3847 = vadd.xlane.f32.xlu0 %v3846
        %v3848 = vpop.xlane.xlu0 %3847
        %v3849 = vrot.slane %v3848, 4
        %v3850 = vadd.f32 %v3848, %v3849
        %v3851 = vrot.slane %v3850, 2
        %v3852 = vadd.f32 %v3850, %v3851
        %v3853 = vrot.slane %v3852, 1
        %v3854 = vadd.f32 %v3852, %v3853
        %s3855 = vtos %v3854
        %s3856 = sadd.f32 %s3687, %s3855
        %s3857 = scalar_lea.smem [#allocation7], 128
        %3858 = sst [smem:[%s3857]] %s3856
        %s3859 = sld [smem:[#allocation7 + $0x81]]
        %v3860 = vsel %vm414, %v3367, 0.0
        %v3861 = vsel %vm414, %v3368, 0.0
        %v3862 = vadd.f32 %v3860, %v3861
        %v3863 = vsel %vm414, %v3369, 0.0
        %v3864 = vadd.f32 %v3862, %v3863
        %v3865 = vsel %vm414, %v3370, 0.0
        %v3866 = vadd.f32 %v3864, %v3865
        %v3867 = vsel %vm414, %v3371, 0.0
        %v3868 = vadd.f32 %v3866, %v3867
        %v3869 = vsel %vm414, %v3372, 0.0
        %v3870 = vadd.f32 %v3868, %v3869
        %v3871 = vsel %vm414, %v3373, 0.0
        %v3872 = vadd.f32 %v3870, %v3871
        %v3873 = vsel %vm414, %v3374, 0.0
        %v3874 = vadd.f32 %v3872, %v3873
        %v3875 = vsel %vm414, %v3375, 0.0
        %v3876 = vadd.f32 %v3874, %v3875
        %v3877 = vsel %vm414, %v3376, 0.0
        %v3878 = vadd.f32 %v3876, %v3877
        %v3879 = vsel %vm414, %v3377, 0.0
        %v3880 = vadd.f32 %v3878, %v3879
        %v3881 = vsel %vm414, %v3378, 0.0
        %v3882 = vadd.f32 %v3880, %v3881
        %v3883 = vsel %vm414, %v3379, 0.0
        %v3884 = vadd.f32 %v3882, %v3883
        %v3885 = vsel %vm414, %v3380, 0.0
        %v3886 = vadd.f32 %v3884, %v3885
        %v3887 = vsel %vm414, %v3381, 0.0
        %v3888 = vadd.f32 %v3886, %v3887
        %v3889 = vsel %vm414, %v3382, 0.0
        %v3890 = vadd.f32 %v3888, %v3889
        %3891 = vadd.xlane.f32.xlu0 %v3890
        %v3892 = vpop.xlane.xlu0 %3891
        %v3893 = vrot.slane %v3892, 4
        %v3894 = vadd.f32 %v3892, %v3893
        %v3895 = vrot.slane %v3894, 2
        %v3896 = vadd.f32 %v3894, %v3895
        %v3897 = vrot.slane %v3896, 1
        %v3898 = vadd.f32 %v3896, %v3897
        %s3899 = vtos %v3898
        %s3900 = sadd.f32 %s3859, %s3899
        %s3901 = scalar_lea.smem [#allocation7], 129
        %3902 = sst [smem:[%s3901]] %s3900
        %s3903 = sld [smem:[#allocation7 + $0x82]]
        %v3904 = vsel %vm414, %v3753, 0.0
        %v3905 = vsel %vm414, %v3755, 0.0
        %v3906 = vadd.f32 %v3904, %v3905
        %v3907 = vsel %vm414, %v3757, 0.0
        %v3908 = vadd.f32 %v3906, %v3907
        %v3909 = vsel %vm414, %v3759, 0.0
        %v3910 = vadd.f32 %v3908, %v3909
        %v3911 = vsel %vm414, %v3761, 0.0
        %v3912 = vadd.f32 %v3910, %v3911
        %v3913 = vsel %vm414, %v3763, 0.0
        %v3914 = vadd.f32 %v3912, %v3913
        %v3915 = vsel %vm414, %v3765, 0.0
        %v3916 = vadd.f32 %v3914, %v3915
        %v3917 = vsel %vm414, %v3767, 0.0
        %v3918 = vadd.f32 %v3916, %v3917
        %v3919 = vsel %vm414, %v3769, 0.0
        %v3920 = vadd.f32 %v3918, %v3919
        %v3921 = vsel %vm414, %v3771, 0.0
        %v3922 = vadd.f32 %v3920, %v3921
        %v3923 = vsel %vm414, %v3773, 0.0
        %v3924 = vadd.f32 %v3922, %v3923
        %v3925 = vsel %vm414, %v3775, 0.0
        %v3926 = vadd.f32 %v3924, %v3925
        %v3927 = vsel %vm414, %v3777, 0.0
        %v3928 = vadd.f32 %v3926, %v3927
        %v3929 = vsel %vm414, %v3779, 0.0
        %v3930 = vadd.f32 %v3928, %v3929
        %v3931 = vsel %vm414, %v3781, 0.0
        %v3932 = vadd.f32 %v3930, %v3931
        %v3933 = vsel %vm414, %v3783, 0.0
        %v3934 = vadd.f32 %v3932, %v3933
        %3935 = vadd.xlane.f32.xlu0 %v3934
        %v3936 = vpop.xlane.xlu0 %3935
        %v3937 = vrot.slane %v3936, 4
        %v3938 = vadd.f32 %v3936, %v3937
        %v3939 = vrot.slane %v3938, 2
        %v3940 = vadd.f32 %v3938, %v3939
        %v3941 = vrot.slane %v3940, 1
        %v3942 = vadd.f32 %v3940, %v3941
        %s3943 = vtos %v3942
        %s3944 = sadd.f32 %s3903, %s3943
        %s3945 = scalar_lea.smem [#allocation7], 130
        %3946 = sst [smem:[%s3945]] %s3944
        %s3947 = sld [smem:[#allocation7 + $0x83]]
        %v3948 = vsel %vm414, %v3335, 0.0
        %v3949 = vsel %vm414, %v3336, 0.0
        %v3950 = vadd.f32 %v3948, %v3949
        %v3951 = vsel %vm414, %v3337, 0.0
        %v3952 = vadd.f32 %v3950, %v3951
        %v3953 = vsel %vm414, %v3338, 0.0
        %v3954 = vadd.f32 %v3952, %v3953
        %v3955 = vsel %vm414, %v3339, 0.0
        %v3956 = vadd.f32 %v3954, %v3955
        %v3957 = vsel %vm414, %v3340, 0.0
        %v3958 = vadd.f32 %v3956, %v3957
        %v3959 = vsel %vm414, %v3341, 0.0
        %v3960 = vadd.f32 %v3958, %v3959
        %v3961 = vsel %vm414, %v3342, 0.0
        %v3962 = vadd.f32 %v3960, %v3961
        %v3963 = vsel %vm414, %v3343, 0.0
        %v3964 = vadd.f32 %v3962, %v3963
        %v3965 = vsel %vm414, %v3344, 0.0
        %v3966 = vadd.f32 %v3964, %v3965
        %v3967 = vsel %vm414, %v3345, 0.0
        %v3968 = vadd.f32 %v3966, %v3967
        %v3969 = vsel %vm414, %v3346, 0.0
        %v3970 = vadd.f32 %v3968, %v3969
        %v3971 = vsel %vm414, %v3347, 0.0
        %v3972 = vadd.f32 %v3970, %v3971
        %v3973 = vsel %vm414, %v3348, 0.0
        %v3974 = vadd.f32 %v3972, %v3973
        %v3975 = vsel %vm414, %v3349, 0.0
        %v3976 = vadd.f32 %v3974, %v3975
        %v3977 = vsel %vm414, %v3350, 0.0
        %v3978 = vadd.f32 %v3976, %v3977
        %3979 = vadd.xlane.f32.xlu0 %v3978
        %v3980 = vpop.xlane.xlu0 %3979
        %v3981 = vrot.slane %v3980, 4
        %v3982 = vadd.f32 %v3980, %v3981
        %v3983 = vrot.slane %v3982, 2
        %v3984 = vadd.f32 %v3982, %v3983
        %v3985 = vrot.slane %v3984, 1
        %v3986 = vadd.f32 %v3984, %v3985
        %s3987 = vtos %v3986
        %s3988 = sadd.f32 %s3947, %s3987
        %s3989 = scalar_lea.smem [#allocation7], 131
        %3990 = sst [smem:[%s3989]] %s3988
        %s3991 = sld [smem:[#allocation7 + $0x84]]
        %v4016 = vrot.slane %v3663, 3
        %v4017 = vrot.slane %v3664, 3
        %v4018 = vsel %vm1401, %v4016, %v4017
        %v4019 = vrot.slane %v3665, 3
        %v4020 = vsel %vm1401, %v4017, %v4019
        %v4021 = vrot.slane %v3666, 3
        %v4022 = vrot.slane %v3667, 3
        %v4023 = vsel %vm1401, %v4021, %v4022
        %v4024 = vrot.slane %v3668, 3
        %v4025 = vsel %vm1401, %v4022, %v4024
        %v4026 = vrot.slane %v3669, 3
        %v4027 = vrot.slane %v3670, 3
        %v4028 = vsel %vm1401, %v4026, %v4027
        %v4029 = vrot.slane %v3671, 3
        %v4030 = vsel %vm1401, %v4027, %v4029
        %v4031 = vrot.slane %v3672, 3
        %v4032 = vrot.slane %v3673, 3
        %v4033 = vsel %vm1401, %v4031, %v4032
        %v4034 = vrot.slane %v3674, 3
        %v4035 = vsel %vm1401, %v4032, %v4034
        %v4036 = vrot.slane %v3675, 3
        %v4037 = vrot.slane %v3676, 3
        %v4038 = vsel %vm1401, %v4036, %v4037
        %v4039 = vrot.slane %v3677, 3
        %v4040 = vsel %vm1401, %v4037, %v4039
        %v4041 = vrot.slane %v3678, 3
        %v4042 = vrot.slane %v3679, 3
        %v4043 = vsel %vm1401, %v4041, %v4042
        %v4044 = vrot.slane %v3680, 3
        %v4045 = vsel %vm1401, %v4042, %v4044
        %v4046 = vrot.slane %v3681, 3
        %v4047 = vrot.slane %v3682, 3
        %v4048 = vsel %vm1401, %v4046, %v4047
        %v4049 = vrot.slane %v3683, 3
        %v4050 = vsel %vm1401, %v4047, %v4049
        %v4051 = vrot.slane %v3684, 3
        %v4052 = vrot.slane %v3685, 3
        %v4053 = vsel %vm1401, %v4051, %v4052
        %v4054 = vrot.slane %v3686, 3
        %v4055 = vsel %vm1401, %v4052, %v4054
        %4056 = vrot.lane.b32.xlu0 %v4018, 125
        %v4057 = vpop.permute.xlu0 %4056
        %4058 = vrot.lane.b32.xlu0 %v4020, 125
        %v4059 = vpop.permute.xlu0 %4058
        %4060 = vrot.lane.b32.xlu0 %v4023, 125
        %v4061 = vpop.permute.xlu0 %4060
        %4062 = vrot.lane.b32.xlu0 %v4025, 125
        %v4063 = vpop.permute.xlu0 %4062
        %4064 = vrot.lane.b32.xlu0 %v4028, 125
        %v4065 = vpop.permute.xlu0 %4064
        %4066 = vrot.lane.b32.xlu0 %v4030, 125
        %v4067 = vpop.permute.xlu0 %4066
        %4068 = vrot.lane.b32.xlu0 %v4033, 125
        %v4069 = vpop.permute.xlu0 %4068
        %4070 = vrot.lane.b32.xlu0 %v4035, 125
        %v4071 = vpop.permute.xlu0 %4070
        %4072 = vrot.lane.b32.xlu0 %v4038, 125
        %v4073 = vpop.permute.xlu0 %4072
        %4074 = vrot.lane.b32.xlu0 %v4040, 125
        %v4075 = vpop.permute.xlu0 %4074
        %4076 = vrot.lane.b32.xlu0 %v4043, 125
        %v4077 = vpop.permute.xlu0 %4076
        %4078 = vrot.lane.b32.xlu0 %v4045, 125
        %v4079 = vpop.permute.xlu0 %4078
        %4080 = vrot.lane.b32.xlu0 %v4048, 125
        %v4081 = vpop.permute.xlu0 %4080
        %4082 = vrot.lane.b32.xlu0 %v4050, 125
        %v4083 = vpop.permute.xlu0 %4082
        %4084 = vrot.lane.b32.xlu0 %v4053, 125
        %v4085 = vpop.permute.xlu0 %4084
        %4086 = vrot.lane.b32.xlu0 %v4055, 125
        %v4087 = vpop.permute.xlu0 %4086
        %v4104 = vsel %vm414, %v4057, 0.0
        %v4105 = vsel %vm414, %v4059, 0.0
        %v4106 = vadd.f32 %v4104, %v4105
        %v4107 = vsel %vm414, %v4061, 0.0
        %v4108 = vadd.f32 %v4106, %v4107
        %v4109 = vsel %vm414, %v4063, 0.0
        %v4110 = vadd.f32 %v4108, %v4109
        %v4111 = vsel %vm414, %v4065, 0.0
        %v4112 = vadd.f32 %v4110, %v4111
        %v4113 = vsel %vm414, %v4067, 0.0
        %v4114 = vadd.f32 %v4112, %v4113
        %v4115 = vsel %vm414, %v4069, 0.0
        %v4116 = vadd.f32 %v4114, %v4115
        %v4117 = vsel %vm414, %v4071, 0.0
        %v4118 = vadd.f32 %v4116, %v4117
        %v4119 = vsel %vm414, %v4073, 0.0
        %v4120 = vadd.f32 %v4118, %v4119
        %v4121 = vsel %vm414, %v4075, 0.0
        %v4122 = vadd.f32 %v4120, %v4121
        %v4123 = vsel %vm414, %v4077, 0.0
        %v4124 = vadd.f32 %v4122, %v4123
        %v4125 = vsel %vm414, %v4079, 0.0
        %v4126 = vadd.f32 %v4124, %v4125
        %v4127 = vsel %vm414, %v4081, 0.0
        %v4128 = vadd.f32 %v4126, %v4127
        %v4129 = vsel %vm414, %v4083, 0.0
        %v4130 = vadd.f32 %v4128, %v4129
        %v4131 = vsel %vm414, %v4085, 0.0
        %v4132 = vadd.f32 %v4130, %v4131
        %v4133 = vsel %vm414, %v4087, 0.0
        %v4134 = vadd.f32 %v4132, %v4133
        %4135 = vadd.xlane.f32.xlu0 %v4134
        %v4136 = vpop.xlane.xlu0 %4135
        %v4137 = vrot.slane %v4136, 4
        %v4138 = vadd.f32 %v4136, %v4137
        %v4139 = vrot.slane %v4138, 2
        %v4140 = vadd.f32 %v4138, %v4139
        %v4141 = vrot.slane %v4140, 1
        %v4142 = vadd.f32 %v4140, %v4141
        %s4143 = vtos %v4142
        %s4144 = sadd.f32 %s3991, %s4143
        %s4145 = scalar_lea.smem [#allocation7], 132
        %4146 = sst [smem:[%s4145]] %s4144
        %v4147 = vmul.f32 %v640, %v832
        %v4148 = vmul.f32 %v642, %v834
        %v4149 = vmul.f32 %v644, %v836
        %v4150 = vmul.f32 %v646, %v838
        %v4151 = vmul.f32 %v648, %v840
        %v4152 = vmul.f32 %v650, %v842
        %v4153 = vmul.f32 %v652, %v844
        %v4154 = vmul.f32 %v654, %v846
        %v4155 = vmul.f32 %v704, %v848
        %v4156 = vmul.f32 %v706, %v850
        %v4157 = vmul.f32 %v708, %v852
        %v4158 = vmul.f32 %v710, %v854
        %v4159 = vmul.f32 %v712, %v856
        %v4160 = vmul.f32 %v714, %v858
        %v4161 = vmul.f32 %v716, %v860
        %v4162 = vmul.f32 %v718, %v862
        %vm4163 = vcmp.eq.s32.totalorder %v299, 3
        %vm4164 = vcmp.eq.s32.totalorder %v300, 3
        %vm4165 = vcmp.eq.s32.totalorder %v301, 3
        %vm4166 = vcmp.eq.s32.totalorder %v302, 3
        %vm4167 = vcmp.eq.s32.totalorder %v303, 3
        %vm4168 = vcmp.eq.s32.totalorder %v304, 3
        %vm4169 = vcmp.eq.s32.totalorder %v305, 3
        %vm4170 = vcmp.eq.s32.totalorder %v306, 3
        %vm4171 = vcmp.eq.s32.totalorder %v307, 3
        %vm4172 = vcmp.eq.s32.totalorder %v308, 3
        %vm4173 = vcmp.eq.s32.totalorder %v309, 3
        %vm4174 = vcmp.eq.s32.totalorder %v310, 3
        %vm4175 = vcmp.eq.s32.totalorder %v329, 3
        %vm4176 = vcmp.eq.s32.totalorder %v330, 3
        %vm4177 = vcmp.eq.s32.totalorder %v331, 3
        %vm4178 = vcmp.eq.s32.totalorder %v332, 3
        %vm4179 = vcmp.eq.s32.totalorder %v333, 3
        %vm4180 = vcmp.eq.s32.totalorder %v334, 3
        %vm4181 = vcmp.eq.s32.totalorder %v335, 3
        %vm4182 = vcmp.eq.s32.totalorder %v336, 3
        %vm4183 = vcmp.eq.s32.totalorder %v337, 3
        %vm4184 = vcmp.eq.s32.totalorder %v338, 3
        %vm4185 = vcmp.eq.s32.totalorder %v339, 3
        %vm4186 = vcmp.eq.s32.totalorder %v340, 3
        %vm4187 = vcmp.eq.s32.totalorder %v2315, 3
        %vm4188 = vcmp.eq.s32.totalorder %v2317, 3
        %vm4189 = vcmp.eq.s32.totalorder %v2319, 3
        %vm4190 = vcmp.eq.s32.totalorder %v2321, 3
        %vm4191 = vcmp.eq.s32.totalorder %v2323, 3
        %vm4192 = vcmp.eq.s32.totalorder %v2325, 3
        %vm4193 = vcmp.eq.s32.totalorder %v2327, 3
        %vm4194 = vcmp.eq.s32.totalorder %v2329, 3
        %vm4195 = vcmp.eq.s32.totalorder %v2331, 3
        %vm4196 = vcmp.eq.s32.totalorder %v2333, 3
        %vm4197 = vcmp.eq.s32.totalorder %v2335, 3
        %vm4198 = vcmp.eq.s32.totalorder %v2337, 3
        %vm4199 = vcmp.eq.s32.totalorder %v2339, 3
        %vm4200 = vcmp.eq.s32.totalorder %v2341, 3
        %vm4201 = vcmp.eq.s32.totalorder %v2343, 3
        %vm4202 = vcmp.eq.s32.totalorder %v2345, 3
        %vm4203 = vcmp.eq.s32.totalorder %v1635, 3
        %vm4204 = vcmp.eq.s32.totalorder %v1637, 3
        %vm4205 = vcmp.eq.s32.totalorder %v1639, 3
        %vm4206 = vcmp.eq.s32.totalorder %v1641, 3
        %vm4207 = vcmp.eq.s32.totalorder %v1643, 3
        %vm4208 = vcmp.eq.s32.totalorder %v1645, 3
        %vm4209 = vcmp.eq.s32.totalorder %v1647, 3
        %vm4210 = vcmp.eq.s32.totalorder %v1649, 3
        %vm4211 = vcmp.eq.s32.totalorder %v1651, 3
        %vm4212 = vcmp.eq.s32.totalorder %v1653, 3
        %vm4213 = vcmp.eq.s32.totalorder %v1655, 3
        %vm4214 = vcmp.eq.s32.totalorder %v1657, 3
        %vm4215 = vcmp.eq.s32.totalorder %v1659, 3
        %vm4216 = vcmp.eq.s32.totalorder %v1661, 3
        %vm4217 = vcmp.eq.s32.totalorder %v1663, 3
        %vm4218 = vcmp.eq.s32.totalorder %v1665, 3
        %vm4219 = vmand %vm4187, %vm4203
        %vm4220 = vmand %vm4188, %vm4204
        %vm4221 = vmand %vm4189, %vm4205
        %vm4222 = vmand %vm4190, %vm4206
        %vm4223 = vmand %vm4191, %vm4207
        %vm4224 = vmand %vm4192, %vm4208
        %vm4225 = vmand %vm4193, %vm4209
        %vm4226 = vmand %vm4194, %vm4210
        %vm4227 = vmand %vm4195, %vm4211
        %vm4228 = vmand %vm4196, %vm4212
        %vm4229 = vmand %vm4197, %vm4213
        %vm4230 = vmand %vm4198, %vm4214
        %vm4231 = vmand %vm4199, %vm4215
        %vm4232 = vmand %vm4200, %vm4216
        %vm4233 = vmand %vm4201, %vm4217
        %vm4234 = vmand %vm4202, %vm4218
        %v4235 = vsel %vm4219, 1.0, 0.7788008
        %v4236 = vsel %vm4220, 1.0, 0.7788008
        %v4237 = vsel %vm4221, 1.0, 0.7788008
        %v4238 = vsel %vm4222, 1.0, 0.7788008
        %v4239 = vsel %vm4223, 1.0, 0.7788008
        %v4240 = vsel %vm4224, 1.0, 0.7788008
        %v4241 = vsel %vm4225, 1.0, 0.7788008
        %v4242 = vsel %vm4226, 1.0, 0.7788008
        %v4243 = vsel %vm4227, 1.0, 0.7788008
        %v4244 = vsel %vm4228, 1.0, 0.7788008
        %v4245 = vsel %vm4229, 1.0, 0.7788008
        %v4246 = vsel %vm4230, 1.0, 0.7788008
        %v4247 = vsel %vm4231, 1.0, 0.7788008
        %v4248 = vsel %vm4232, 1.0, 0.7788008
        %v4249 = vsel %vm4233, 1.0, 0.7788008
        %v4250 = vsel %vm4234, 1.0, 0.7788008
        %v4251 = vsel %vm4219, 1.0, 0.60653067
        %v4252 = vsel %vm4220, 1.0, 0.60653067
        %v4253 = vsel %vm4221, 1.0, 0.60653067
        %v4254 = vsel %vm4222, 1.0, 0.60653067
        %v4255 = vsel %vm4223, 1.0, 0.60653067
        %v4256 = vsel %vm4224, 1.0, 0.60653067
        %v4257 = vsel %vm4225, 1.0, 0.60653067
        %v4258 = vsel %vm4226, 1.0, 0.60653067
        %v4259 = vsel %vm4227, 1.0, 0.60653067
        %v4260 = vsel %vm4228, 1.0, 0.60653067
        %v4261 = vsel %vm4229, 1.0, 0.60653067
        %v4262 = vsel %vm4230, 1.0, 0.60653067
        %v4263 = vsel %vm4231, 1.0, 0.60653067
        %v4264 = vsel %vm4232, 1.0, 0.60653067
        %v4265 = vsel %vm4233, 1.0, 0.60653067
        %v4266 = vsel %vm4234, 1.0, 0.60653067
        %v4267 = vmul.f32 %v4147, %v4235
        %v4268 = vmul.f32 %v4148, %v4236
        %v4269 = vmul.f32 %v4149, %v4237
        %v4270 = vmul.f32 %v4150, %v4238
        %v4271 = vmul.f32 %v4151, %v4239
        %v4272 = vmul.f32 %v4152, %v4240
        %v4273 = vmul.f32 %v4153, %v4241
        %v4274 = vmul.f32 %v4154, %v4242
        %v4275 = vmul.f32 %v4155, %v4243
        %v4276 = vmul.f32 %v4156, %v4244
        %v4277 = vmul.f32 %v4157, %v4245
        %v4278 = vmul.f32 %v4158, %v4246
        %v4279 = vmul.f32 %v4159, %v4247
        %v4280 = vmul.f32 %v4160, %v4248
        %v4281 = vmul.f32 %v4161, %v4249
        %v4282 = vmul.f32 %v4162, %v4250
        %v4299 = vrot.slane %v4235, 5
        %v4300 = vrot.slane %v4236, 5
        %v4301 = vsel %vm2498, %v4299, %v4300
        %v4302 = vrot.slane %v4237, 5
        %v4303 = vrot.slane %v4238, 5
        %v4304 = vsel %vm2498, %v4302, %v4303
        %v4305 = vrot.slane %v4239, 5
        %v4306 = vrot.slane %v4240, 5
        %v4307 = vsel %vm2498, %v4305, %v4306
        %v4308 = vrot.slane %v4241, 5
        %v4309 = vrot.slane %v4242, 5
        %v4310 = vsel %vm2498, %v4308, %v4309
        %v4311 = vrot.slane %v4243, 5
        %v4312 = vrot.slane %v4244, 5
        %v4313 = vsel %vm2498, %v4311, %v4312
        %v4314 = vrot.slane %v4245, 5
        %v4315 = vrot.slane %v4246, 5
        %v4316 = vsel %vm2498, %v4314, %v4315
        %v4317 = vrot.slane %v4247, 5
        %v4318 = vrot.slane %v4248, 5
        %v4319 = vsel %vm2498, %v4317, %v4318
        %v4320 = vrot.slane %v4249, 5
        %v4321 = vrot.slane %v4250, 5
        %v4322 = vsel %vm2498, %v4320, %v4321
        %4323 = vrot.lane.b32.xlu0 %v4299, 3
        %v4324 = vpop.permute.xlu0 %4323
        %4325 = vrot.lane.b32.xlu0 %v4301, 3
        %v4326 = vpop.permute.xlu0 %4325
        %4327 = vrot.lane.b32.xlu0 %v4300, 3
        %v4328 = vpop.permute.xlu0 %4327
        %4329 = vrot.lane.b32.xlu0 %v4302, 3
        %v4330 = vpop.permute.xlu0 %4329
        %4331 = vrot.lane.b32.xlu0 %v4304, 3
        %v4332 = vpop.permute.xlu0 %4331
        %4333 = vrot.lane.b32.xlu0 %v4303, 3
        %v4334 = vpop.permute.xlu0 %4333
        %4335 = vrot.lane.b32.xlu0 %v4305, 3
        %v4336 = vpop.permute.xlu0 %4335
        %4337 = vrot.lane.b32.xlu0 %v4307, 3
        %v4338 = vpop.permute.xlu0 %4337
        %4339 = vrot.lane.b32.xlu0 %v4306, 3
        %v4340 = vpop.permute.xlu0 %4339
        %4341 = vrot.lane.b32.xlu0 %v4308, 3
        %v4342 = vpop.permute.xlu0 %4341
        %4343 = vrot.lane.b32.xlu0 %v4310, 3
        %v4344 = vpop.permute.xlu0 %4343
        %4345 = vrot.lane.b32.xlu0 %v4309, 3
        %v4346 = vpop.permute.xlu0 %4345
        %4347 = vrot.lane.b32.xlu0 %v4311, 3
        %v4348 = vpop.permute.xlu0 %4347
        %4349 = vrot.lane.b32.xlu0 %v4313, 3
        %v4350 = vpop.permute.xlu0 %4349
        %4351 = vrot.lane.b32.xlu0 %v4312, 3
        %v4352 = vpop.permute.xlu0 %4351
        %4353 = vrot.lane.b32.xlu0 %v4314, 3
        %v4354 = vpop.permute.xlu0 %4353
        %4355 = vrot.lane.b32.xlu0 %v4316, 3
        %v4356 = vpop.permute.xlu0 %4355
        %4357 = vrot.lane.b32.xlu0 %v4315, 3
        %v4358 = vpop.permute.xlu0 %4357
        %4359 = vrot.lane.b32.xlu0 %v4317, 3
        %v4360 = vpop.permute.xlu0 %4359
        %4361 = vrot.lane.b32.xlu0 %v4319, 3
        %v4362 = vpop.permute.xlu0 %4361
        %4363 = vrot.lane.b32.xlu0 %v4318, 3
        %v4364 = vpop.permute.xlu0 %4363
        %4365 = vrot.lane.b32.xlu0 %v4320, 3
        %v4366 = vpop.permute.xlu0 %4365
        %4367 = vrot.lane.b32.xlu0 %v4322, 3
        %v4368 = vpop.permute.xlu0 %4367
        %4369 = vrot.lane.b32.xlu0 %v4321, 3
        %v4370 = vpop.permute.xlu0 %4369
        %v4395 = vsel %vm4163, %v4324, 0.0
        %v4396 = vsel %vm4164, %v4326, 0.0
        %v4397 = vsel %vm4165, %v4328, 0.0
        %v4398 = vsel %vm4166, %v4330, 0.0
        %v4399 = vsel %vm4167, %v4332, 0.0
        %v4400 = vsel %vm4168, %v4334, 0.0
        %v4401 = vsel %vm4169, %v4336, 0.0
        %v4402 = vsel %vm4170, %v4338, 0.0
        %v4403 = vsel %vm4171, %v4340, 0.0
        %v4404 = vsel %vm4172, %v4342, 0.0
        %v4405 = vsel %vm4173, %v4344, 0.0
        %v4406 = vsel %vm4174, %v4346, 0.0
        %v4407 = vsel %vm4175, %v4348, 0.0
        %v4408 = vsel %vm4176, %v4350, 0.0
        %v4409 = vsel %vm4177, %v4352, 0.0
        %v4410 = vsel %vm4178, %v4354, 0.0
        %v4411 = vsel %vm4179, %v4356, 0.0
        %v4412 = vsel %vm4180, %v4358, 0.0
        %v4413 = vsel %vm4181, %v4360, 0.0
        %v4414 = vsel %vm4182, %v4362, 0.0
        %v4415 = vsel %vm4183, %v4364, 0.0
        %v4416 = vsel %vm4184, %v4366, 0.0
        %v4417 = vsel %vm4185, %v4368, 0.0
        %v4418 = vsel %vm4186, %v4370, 0.0
        %v4419 = vsub.f32 1.0, %v4147
        %v4420 = vsub.f32 1.0, %v4148
        %v4421 = vsub.f32 1.0, %v4149
        %v4422 = vsub.f32 1.0, %v4150
        %v4423 = vsub.f32 1.0, %v4151
        %v4424 = vsub.f32 1.0, %v4152
        %v4425 = vsub.f32 1.0, %v4153
        %v4426 = vsub.f32 1.0, %v4154
        %v4427 = vsub.f32 1.0, %v4155
        %v4428 = vsub.f32 1.0, %v4156
        %v4429 = vsub.f32 1.0, %v4157
        %v4430 = vsub.f32 1.0, %v4158
        %v4431 = vsub.f32 1.0, %v4159
        %v4432 = vsub.f32 1.0, %v4160
        %v4433 = vsub.f32 1.0, %v4161
        %v4434 = vsub.f32 1.0, %v4162
        %v4435 = vmul.f32 %v4419, %v4251
        %v4436 = vmul.f32 %v4420, %v4252
        %v4437 = vmul.f32 %v4421, %v4253
        %v4438 = vmul.f32 %v4422, %v4254
        %v4439 = vmul.f32 %v4423, %v4255
        %v4440 = vmul.f32 %v4424, %v4256
        %v4441 = vmul.f32 %v4425, %v4257
        %v4442 = vmul.f32 %v4426, %v4258
        %v4443 = vmul.f32 %v4427, %v4259
        %v4444 = vmul.f32 %v4428, %v4260
        %v4445 = vmul.f32 %v4429, %v4261
        %v4446 = vmul.f32 %v4430, %v4262
        %v4447 = vmul.f32 %v4431, %v4263
        %v4448 = vmul.f32 %v4432, %v4264
        %v4449 = vmul.f32 %v4433, %v4265
        %v4450 = vmul.f32 %v4434, %v4266
        %v4467 = vrot.slane %v4435, 5
        %v4468 = vrot.slane %v4436, 5
        %v4469 = vsel %vm2498, %v4467, %v4468
        %v4470 = vrot.slane %v4437, 5
        %v4471 = vrot.slane %v4438, 5
        %v4472 = vsel %vm2498, %v4470, %v4471
        %v4473 = vrot.slane %v4439, 5
        %v4474 = vrot.slane %v4440, 5
        %v4475 = vsel %vm2498, %v4473, %v4474
        %v4476 = vrot.slane %v4441, 5
        %v4477 = vrot.slane %v4442, 5
        %v4478 = vsel %vm2498, %v4476, %v4477
        %v4479 = vrot.slane %v4443, 5
        %v4480 = vrot.slane %v4444, 5
        %v4481 = vsel %vm2498, %v4479, %v4480
        %v4482 = vrot.slane %v4445, 5
        %v4483 = vrot.slane %v4446, 5
        %v4484 = vsel %vm2498, %v4482, %v4483
        %v4485 = vrot.slane %v4447, 5
        %v4486 = vrot.slane %v4448, 5
        %v4487 = vsel %vm2498, %v4485, %v4486
        %v4488 = vrot.slane %v4449, 5
        %v4489 = vrot.slane %v4450, 5
        %v4490 = vsel %vm2498, %v4488, %v4489
        %4491 = vrot.lane.b32.xlu0 %v4467, 3
        %v4492 = vpop.permute.xlu0 %4491
        %4493 = vrot.lane.b32.xlu0 %v4469, 3
        %v4494 = vpop.permute.xlu0 %4493
        %4495 = vrot.lane.b32.xlu0 %v4468, 3
        %v4496 = vpop.permute.xlu0 %4495
        %4497 = vrot.lane.b32.xlu0 %v4470, 3
        %v4498 = vpop.permute.xlu0 %4497
        %4499 = vrot.lane.b32.xlu0 %v4472, 3
        %v4500 = vpop.permute.xlu0 %4499
        %4501 = vrot.lane.b32.xlu0 %v4471, 3
        %v4502 = vpop.permute.xlu0 %4501
        %4503 = vrot.lane.b32.xlu0 %v4473, 3
        %v4504 = vpop.permute.xlu0 %4503
        %4505 = vrot.lane.b32.xlu0 %v4475, 3
        %v4506 = vpop.permute.xlu0 %4505
        %4507 = vrot.lane.b32.xlu0 %v4474, 3
        %v4508 = vpop.permute.xlu0 %4507
        %4509 = vrot.lane.b32.xlu0 %v4476, 3
        %v4510 = vpop.permute.xlu0 %4509
        %4511 = vrot.lane.b32.xlu0 %v4478, 3
        %v4512 = vpop.permute.xlu0 %4511
        %4513 = vrot.lane.b32.xlu0 %v4477, 3
        %v4514 = vpop.permute.xlu0 %4513
        %4515 = vrot.lane.b32.xlu0 %v4479, 3
        %v4516 = vpop.permute.xlu0 %4515
        %4517 = vrot.lane.b32.xlu0 %v4481, 3
        %v4518 = vpop.permute.xlu0 %4517
        %4519 = vrot.lane.b32.xlu0 %v4480, 3
        %v4520 = vpop.permute.xlu0 %4519
        %4521 = vrot.lane.b32.xlu0 %v4482, 3
        %v4522 = vpop.permute.xlu0 %4521
        %4523 = vrot.lane.b32.xlu0 %v4484, 3
        %v4524 = vpop.permute.xlu0 %4523
        %4525 = vrot.lane.b32.xlu0 %v4483, 3
        %v4526 = vpop.permute.xlu0 %4525
        %4527 = vrot.lane.b32.xlu0 %v4485, 3
        %v4528 = vpop.permute.xlu0 %4527
        %4529 = vrot.lane.b32.xlu0 %v4487, 3
        %v4530 = vpop.permute.xlu0 %4529
        %4531 = vrot.lane.b32.xlu0 %v4486, 3
        %v4532 = vpop.permute.xlu0 %4531
        %4533 = vrot.lane.b32.xlu0 %v4488, 3
        %v4534 = vpop.permute.xlu0 %4533
        %4535 = vrot.lane.b32.xlu0 %v4490, 3
        %v4536 = vpop.permute.xlu0 %4535
        %4537 = vrot.lane.b32.xlu0 %v4489, 3
        %v4538 = vpop.permute.xlu0 %4537
        %v4563 = vsel %vm4163, 0.0, %v4492
        %v4564 = vsel %vm4164, 0.0, %v4494
        %v4565 = vsel %vm4165, 0.0, %v4496
        %v4566 = vsel %vm4166, 0.0, %v4498
        %v4567 = vsel %vm4167, 0.0, %v4500
        %v4568 = vsel %vm4168, 0.0, %v4502
        %v4569 = vsel %vm4169, 0.0, %v4504
        %v4570 = vsel %vm4170, 0.0, %v4506
        %v4571 = vsel %vm4171, 0.0, %v4508
        %v4572 = vsel %vm4172, 0.0, %v4510
        %v4573 = vsel %vm4173, 0.0, %v4512
        %v4574 = vsel %vm4174, 0.0, %v4514
        %v4575 = vsel %vm4175, 0.0, %v4516
        %v4576 = vsel %vm4176, 0.0, %v4518
        %v4577 = vsel %vm4177, 0.0, %v4520
        %v4578 = vsel %vm4178, 0.0, %v4522
        %v4579 = vsel %vm4179, 0.0, %v4524
        %v4580 = vsel %vm4180, 0.0, %v4526
        %v4581 = vsel %vm4181, 0.0, %v4528
        %v4582 = vsel %vm4182, 0.0, %v4530
        %v4583 = vsel %vm4183, 0.0, %v4532
        %v4584 = vsel %vm4184, 0.0, %v4534
        %v4585 = vsel %vm4185, 0.0, %v4536
        %v4586 = vsel %vm4186, 0.0, %v4538
        %s4587 = sld [smem:[#allocation7 + $0x100]]
        %v4612 = vrot.slane %v4395, 3
        %v4613 = vrot.slane %v4396, 3
        %v4614 = vsel %vm1401, %v4612, %v4613
        %v4615 = vrot.slane %v4397, 3
        %v4616 = vsel %vm1401, %v4613, %v4615
        %v4617 = vrot.slane %v4398, 3
        %v4618 = vrot.slane %v4399, 3
        %v4619 = vsel %vm1401, %v4617, %v4618
        %v4620 = vrot.slane %v4400, 3
        %v4621 = vsel %vm1401, %v4618, %v4620
        %v4622 = vrot.slane %v4401, 3
        %v4623 = vrot.slane %v4402, 3
        %v4624 = vsel %vm1401, %v4622, %v4623
        %v4625 = vrot.slane %v4403, 3
        %v4626 = vsel %vm1401, %v4623, %v4625
        %v4627 = vrot.slane %v4404, 3
        %v4628 = vrot.slane %v4405, 3
        %v4629 = vsel %vm1401, %v4627, %v4628
        %v4630 = vrot.slane %v4406, 3
        %v4631 = vsel %vm1401, %v4628, %v4630
        %v4632 = vrot.slane %v4407, 3
        %v4633 = vrot.slane %v4408, 3
        %v4634 = vsel %vm1401, %v4632, %v4633
        %v4635 = vrot.slane %v4409, 3
        %v4636 = vsel %vm1401, %v4633, %v4635
        %v4637 = vrot.slane %v4410, 3
        %v4638 = vrot.slane %v4411, 3
        %v4639 = vsel %vm1401, %v4637, %v4638
        %v4640 = vrot.slane %v4412, 3
        %v4641 = vsel %vm1401, %v4638, %v4640
        %v4642 = vrot.slane %v4413, 3
        %v4643 = vrot.slane %v4414, 3
        %v4644 = vsel %vm1401, %v4642, %v4643
        %v4645 = vrot.slane %v4415, 3
        %v4646 = vsel %vm1401, %v4643, %v4645
        %v4647 = vrot.slane %v4416, 3
        %v4648 = vrot.slane %v4417, 3
        %v4649 = vsel %vm1401, %v4647, %v4648
        %v4650 = vrot.slane %v4418, 3
        %v4651 = vsel %vm1401, %v4648, %v4650
        %4652 = vrot.lane.b32.xlu0 %v4614, 125
        %v4653 = vpop.permute.xlu0 %4652
        %4654 = vrot.lane.b32.xlu0 %v4616, 125
        %v4655 = vpop.permute.xlu0 %4654
        %4656 = vrot.lane.b32.xlu0 %v4619, 125
        %v4657 = vpop.permute.xlu0 %4656
        %4658 = vrot.lane.b32.xlu0 %v4621, 125
        %v4659 = vpop.permute.xlu0 %4658
        %4660 = vrot.lane.b32.xlu0 %v4624, 125
        %v4661 = vpop.permute.xlu0 %4660
        %4662 = vrot.lane.b32.xlu0 %v4626, 125
        %v4663 = vpop.permute.xlu0 %4662
        %4664 = vrot.lane.b32.xlu0 %v4629, 125
        %v4665 = vpop.permute.xlu0 %4664
        %4666 = vrot.lane.b32.xlu0 %v4631, 125
        %v4667 = vpop.permute.xlu0 %4666
        %4668 = vrot.lane.b32.xlu0 %v4634, 125
        %v4669 = vpop.permute.xlu0 %4668
        %4670 = vrot.lane.b32.xlu0 %v4636, 125
        %v4671 = vpop.permute.xlu0 %4670
        %4672 = vrot.lane.b32.xlu0 %v4639, 125
        %v4673 = vpop.permute.xlu0 %4672
        %4674 = vrot.lane.b32.xlu0 %v4641, 125
        %v4675 = vpop.permute.xlu0 %4674
        %4676 = vrot.lane.b32.xlu0 %v4644, 125
        %v4677 = vpop.permute.xlu0 %4676
        %4678 = vrot.lane.b32.xlu0 %v4646, 125
        %v4679 = vpop.permute.xlu0 %4678
        %4680 = vrot.lane.b32.xlu0 %v4649, 125
        %v4681 = vpop.permute.xlu0 %4680
        %4682 = vrot.lane.b32.xlu0 %v4651, 125
        %v4683 = vpop.permute.xlu0 %4682
        %v4700 = vmul.f32 %v4267, %v4653
        %v4701 = vmul.f32 %v4268, %v4655
        %v4702 = vmul.f32 %v4269, %v4657
        %v4703 = vmul.f32 %v4270, %v4659
        %v4704 = vmul.f32 %v4271, %v4661
        %v4705 = vmul.f32 %v4272, %v4663
        %v4706 = vmul.f32 %v4273, %v4665
        %v4707 = vmul.f32 %v4274, %v4667
        %v4708 = vmul.f32 %v4275, %v4669
        %v4709 = vmul.f32 %v4276, %v4671
        %v4710 = vmul.f32 %v4277, %v4673
        %v4711 = vmul.f32 %v4278, %v4675
        %v4712 = vmul.f32 %v4279, %v4677
        %v4713 = vmul.f32 %v4280, %v4679
        %v4714 = vmul.f32 %v4281, %v4681
        %v4715 = vmul.f32 %v4282, %v4683
        %v4716 = vsel %vm414, %v4700, 0.0
        %v4717 = vsel %vm414, %v4701, 0.0
        %v4718 = vadd.f32 %v4716, %v4717
        %v4719 = vsel %vm414, %v4702, 0.0
        %v4720 = vadd.f32 %v4718, %v4719
        %v4721 = vsel %vm414, %v4703, 0.0
        %v4722 = vadd.f32 %v4720, %v4721
        %v4723 = vsel %vm414, %v4704, 0.0
        %v4724 = vadd.f32 %v4722, %v4723
        %v4725 = vsel %vm414, %v4705, 0.0
        %v4726 = vadd.f32 %v4724, %v4725
        %v4727 = vsel %vm414, %v4706, 0.0
        %v4728 = vadd.f32 %v4726, %v4727
        %v4729 = vsel %vm414, %v4707, 0.0
        %v4730 = vadd.f32 %v4728, %v4729
        %v4731 = vsel %vm414, %v4708, 0.0
        %v4732 = vadd.f32 %v4730, %v4731
        %v4733 = vsel %vm414, %v4709, 0.0
        %v4734 = vadd.f32 %v4732, %v4733
        %v4735 = vsel %vm414, %v4710, 0.0
        %v4736 = vadd.f32 %v4734, %v4735
        %v4737 = vsel %vm414, %v4711, 0.0
        %v4738 = vadd.f32 %v4736, %v4737
        %v4739 = vsel %vm414, %v4712, 0.0
        %v4740 = vadd.f32 %v4738, %v4739
        %v4741 = vsel %vm414, %v4713, 0.0
        %v4742 = vadd.f32 %v4740, %v4741
        %v4743 = vsel %vm414, %v4714, 0.0
        %v4744 = vadd.f32 %v4742, %v4743
        %v4745 = vsel %vm414, %v4715, 0.0
        %v4746 = vadd.f32 %v4744, %v4745
        %4747 = vadd.xlane.f32.xlu0 %v4746
        %v4748 = vpop.xlane.xlu0 %4747
        %v4749 = vrot.slane %v4748, 4
        %v4750 = vadd.f32 %v4748, %v4749
        %v4751 = vrot.slane %v4750, 2
        %v4752 = vadd.f32 %v4750, %v4751
        %v4753 = vrot.slane %v4752, 1
        %v4754 = vadd.f32 %v4752, %v4753
        %s4755 = vtos %v4754
        %s4756 = sadd.f32 %s4587, %s4755
        %s4757 = scalar_lea.smem [#allocation7], 256
        %4758 = sst [smem:[%s4757]] %s4756
        %s4759 = sld [smem:[#allocation7 + $0x101]]
        %v4760 = vsel %vm414, %v4267, 0.0
        %v4761 = vsel %vm414, %v4268, 0.0
        %v4762 = vadd.f32 %v4760, %v4761
        %v4763 = vsel %vm414, %v4269, 0.0
        %v4764 = vadd.f32 %v4762, %v4763
        %v4765 = vsel %vm414, %v4270, 0.0
        %v4766 = vadd.f32 %v4764, %v4765
        %v4767 = vsel %vm414, %v4271, 0.0
        %v4768 = vadd.f32 %v4766, %v4767
        %v4769 = vsel %vm414, %v4272, 0.0
        %v4770 = vadd.f32 %v4768, %v4769
        %v4771 = vsel %vm414, %v4273, 0.0
        %v4772 = vadd.f32 %v4770, %v4771
        %v4773 = vsel %vm414, %v4274, 0.0
        %v4774 = vadd.f32 %v4772, %v4773
        %v4775 = vsel %vm414, %v4275, 0.0
        %v4776 = vadd.f32 %v4774, %v4775
        %v4777 = vsel %vm414, %v4276, 0.0
        %v4778 = vadd.f32 %v4776, %v4777
        %v4779 = vsel %vm414, %v4277, 0.0
        %v4780 = vadd.f32 %v4778, %v4779
        %v4781 = vsel %vm414, %v4278, 0.0
        %v4782 = vadd.f32 %v4780, %v4781
        %v4783 = vsel %vm414, %v4279, 0.0
        %v4784 = vadd.f32 %v4782, %v4783
        %v4785 = vsel %vm414, %v4280, 0.0
        %v4786 = vadd.f32 %v4784, %v4785
        %v4787 = vsel %vm414, %v4281, 0.0
        %v4788 = vadd.f32 %v4786, %v4787
        %v4789 = vsel %vm414, %v4282, 0.0
        %v4790 = vadd.f32 %v4788, %v4789
        %4791 = vadd.xlane.f32.xlu0 %v4790
        %v4792 = vpop.xlane.xlu0 %4791
        %v4793 = vrot.slane %v4792, 4
        %v4794 = vadd.f32 %v4792, %v4793
        %v4795 = vrot.slane %v4794, 2
        %v4796 = vadd.f32 %v4794, %v4795
        %v4797 = vrot.slane %v4796, 1
        %v4798 = vadd.f32 %v4796, %v4797
        %s4799 = vtos %v4798
        %s4800 = sadd.f32 %s4759, %s4799
        %s4801 = scalar_lea.smem [#allocation7], 257
        %4802 = sst [smem:[%s4801]] %s4800
        %s4803 = sld [smem:[#allocation7 + $0x102]]
        %v4804 = vsel %vm414, %v4653, 0.0
        %v4805 = vsel %vm414, %v4655, 0.0
        %v4806 = vadd.f32 %v4804, %v4805
        %v4807 = vsel %vm414, %v4657, 0.0
        %v4808 = vadd.f32 %v4806, %v4807
        %v4809 = vsel %vm414, %v4659, 0.0
        %v4810 = vadd.f32 %v4808, %v4809
        %v4811 = vsel %vm414, %v4661, 0.0
        %v4812 = vadd.f32 %v4810, %v4811
        %v4813 = vsel %vm414, %v4663, 0.0
        %v4814 = vadd.f32 %v4812, %v4813
        %v4815 = vsel %vm414, %v4665, 0.0
        %v4816 = vadd.f32 %v4814, %v4815
        %v4817 = vsel %vm414, %v4667, 0.0
        %v4818 = vadd.f32 %v4816, %v4817
        %v4819 = vsel %vm414, %v4669, 0.0
        %v4820 = vadd.f32 %v4818, %v4819
        %v4821 = vsel %vm414, %v4671, 0.0
        %v4822 = vadd.f32 %v4820, %v4821
        %v4823 = vsel %vm414, %v4673, 0.0
        %v4824 = vadd.f32 %v4822, %v4823
        %v4825 = vsel %vm414, %v4675, 0.0
        %v4826 = vadd.f32 %v4824, %v4825
        %v4827 = vsel %vm414, %v4677, 0.0
        %v4828 = vadd.f32 %v4826, %v4827
        %v4829 = vsel %vm414, %v4679, 0.0
        %v4830 = vadd.f32 %v4828, %v4829
        %v4831 = vsel %vm414, %v4681, 0.0
        %v4832 = vadd.f32 %v4830, %v4831
        %v4833 = vsel %vm414, %v4683, 0.0
        %v4834 = vadd.f32 %v4832, %v4833
        %4835 = vadd.xlane.f32.xlu0 %v4834
        %v4836 = vpop.xlane.xlu0 %4835
        %v4837 = vrot.slane %v4836, 4
        %v4838 = vadd.f32 %v4836, %v4837
        %v4839 = vrot.slane %v4838, 2
        %v4840 = vadd.f32 %v4838, %v4839
        %v4841 = vrot.slane %v4840, 1
        %v4842 = vadd.f32 %v4840, %v4841
        %s4843 = vtos %v4842
        %s4844 = sadd.f32 %s4803, %s4843
        %s4845 = scalar_lea.smem [#allocation7], 258
        %4846 = sst [smem:[%s4845]] %s4844
        %s4847 = sld [smem:[#allocation7 + $0x103]]
        %v4848 = vsel %vm414, %v4235, 0.0
        %v4849 = vsel %vm414, %v4236, 0.0
        %v4850 = vadd.f32 %v4848, %v4849
        %v4851 = vsel %vm414, %v4237, 0.0
        %v4852 = vadd.f32 %v4850, %v4851
        %v4853 = vsel %vm414, %v4238, 0.0
        %v4854 = vadd.f32 %v4852, %v4853
        %v4855 = vsel %vm414, %v4239, 0.0
        %v4856 = vadd.f32 %v4854, %v4855
        %v4857 = vsel %vm414, %v4240, 0.0
        %v4858 = vadd.f32 %v4856, %v4857
        %v4859 = vsel %vm414, %v4241, 0.0
        %v4860 = vadd.f32 %v4858, %v4859
        %v4861 = vsel %vm414, %v4242, 0.0
        %v4862 = vadd.f32 %v4860, %v4861
        %v4863 = vsel %vm414, %v4243, 0.0
        %v4864 = vadd.f32 %v4862, %v4863
        %v4865 = vsel %vm414, %v4244, 0.0
        %v4866 = vadd.f32 %v4864, %v4865
        %v4867 = vsel %vm414, %v4245, 0.0
        %v4868 = vadd.f32 %v4866, %v4867
        %v4869 = vsel %vm414, %v4246, 0.0
        %v4870 = vadd.f32 %v4868, %v4869
        %v4871 = vsel %vm414, %v4247, 0.0
        %v4872 = vadd.f32 %v4870, %v4871
        %v4873 = vsel %vm414, %v4248, 0.0
        %v4874 = vadd.f32 %v4872, %v4873
        %v4875 = vsel %vm414, %v4249, 0.0
        %v4876 = vadd.f32 %v4874, %v4875
        %v4877 = vsel %vm414, %v4250, 0.0
        %v4878 = vadd.f32 %v4876, %v4877
        %4879 = vadd.xlane.f32.xlu0 %v4878
        %v4880 = vpop.xlane.xlu0 %4879
        %v4881 = vrot.slane %v4880, 4
        %v4882 = vadd.f32 %v4880, %v4881
        %v4883 = vrot.slane %v4882, 2
        %v4884 = vadd.f32 %v4882, %v4883
        %v4885 = vrot.slane %v4884, 1
        %v4886 = vadd.f32 %v4884, %v4885
        %s4887 = vtos %v4886
        %s4888 = sadd.f32 %s4847, %s4887
        %s4889 = scalar_lea.smem [#allocation7], 259
        %4890 = sst [smem:[%s4889]] %s4888
        %s4891 = sld [smem:[#allocation7 + $0x104]]
        %v4916 = vrot.slane %v4563, 3
        %v4917 = vrot.slane %v4564, 3
        %v4918 = vsel %vm1401, %v4916, %v4917
        %v4919 = vrot.slane %v4565, 3
        %v4920 = vsel %vm1401, %v4917, %v4919
        %v4921 = vrot.slane %v4566, 3
        %v4922 = vrot.slane %v4567, 3
        %v4923 = vsel %vm1401, %v4921, %v4922
        %v4924 = vrot.slane %v4568, 3
        %v4925 = vsel %vm1401, %v4922, %v4924
        %v4926 = vrot.slane %v4569, 3
        %v4927 = vrot.slane %v4570, 3
        %v4928 = vsel %vm1401, %v4926, %v4927
        %v4929 = vrot.slane %v4571, 3
        %v4930 = vsel %vm1401, %v4927, %v4929
        %v4931 = vrot.slane %v4572, 3
        %v4932 = vrot.slane %v4573, 3
        %v4933 = vsel %vm1401, %v4931, %v4932
        %v4934 = vrot.slane %v4574, 3
        %v4935 = vsel %vm1401, %v4932, %v4934
        %v4936 = vrot.slane %v4575, 3
        %v4937 = vrot.slane %v4576, 3
        %v4938 = vsel %vm1401, %v4936, %v4937
        %v4939 = vrot.slane %v4577, 3
        %v4940 = vsel %vm1401, %v4937, %v4939
        %v4941 = vrot.slane %v4578, 3
        %v4942 = vrot.slane %v4579, 3
        %v4943 = vsel %vm1401, %v4941, %v4942
        %v4944 = vrot.slane %v4580, 3
        %v4945 = vsel %vm1401, %v4942, %v4944
        %v4946 = vrot.slane %v4581, 3
        %v4947 = vrot.slane %v4582, 3
        %v4948 = vsel %vm1401, %v4946, %v4947
        %v4949 = vrot.slane %v4583, 3
        %v4950 = vsel %vm1401, %v4947, %v4949
        %v4951 = vrot.slane %v4584, 3
        %v4952 = vrot.slane %v4585, 3
        %v4953 = vsel %vm1401, %v4951, %v4952
        %v4954 = vrot.slane %v4586, 3
        %v4955 = vsel %vm1401, %v4952, %v4954
        %4956 = vrot.lane.b32.xlu0 %v4918, 125
        %v4957 = vpop.permute.xlu0 %4956
        %4958 = vrot.lane.b32.xlu0 %v4920, 125
        %v4959 = vpop.permute.xlu0 %4958
        %4960 = vrot.lane.b32.xlu0 %v4923, 125
        %v4961 = vpop.permute.xlu0 %4960
        %4962 = vrot.lane.b32.xlu0 %v4925, 125
        %v4963 = vpop.permute.xlu0 %4962
        %4964 = vrot.lane.b32.xlu0 %v4928, 125
        %v4965 = vpop.permute.xlu0 %4964
        %4966 = vrot.lane.b32.xlu0 %v4930, 125
        %v4967 = vpop.permute.xlu0 %4966
        %4968 = vrot.lane.b32.xlu0 %v4933, 125
        %v4969 = vpop.permute.xlu0 %4968
        %4970 = vrot.lane.b32.xlu0 %v4935, 125
        %v4971 = vpop.permute.xlu0 %4970
        %4972 = vrot.lane.b32.xlu0 %v4938, 125
        %v4973 = vpop.permute.xlu0 %4972
        %4974 = vrot.lane.b32.xlu0 %v4940, 125
        %v4975 = vpop.permute.xlu0 %4974
        %4976 = vrot.lane.b32.xlu0 %v4943, 125
        %v4977 = vpop.permute.xlu0 %4976
        %4978 = vrot.lane.b32.xlu0 %v4945, 125
        %v4979 = vpop.permute.xlu0 %4978
        %4980 = vrot.lane.b32.xlu0 %v4948, 125
        %v4981 = vpop.permute.xlu0 %4980
        %4982 = vrot.lane.b32.xlu0 %v4950, 125
        %v4983 = vpop.permute.xlu0 %4982
        %4984 = vrot.lane.b32.xlu0 %v4953, 125
        %v4985 = vpop.permute.xlu0 %4984
        %4986 = vrot.lane.b32.xlu0 %v4955, 125
        %v4987 = vpop.permute.xlu0 %4986
        %v5004 = vsel %vm414, %v4957, 0.0
        %v5005 = vsel %vm414, %v4959, 0.0
        %v5006 = vadd.f32 %v5004, %v5005
        %v5007 = vsel %vm414, %v4961, 0.0
        %v5008 = vadd.f32 %v5006, %v5007
        %v5009 = vsel %vm414, %v4963, 0.0
        %v5010 = vadd.f32 %v5008, %v5009
        %v5011 = vsel %vm414, %v4965, 0.0
        %v5012 = vadd.f32 %v5010, %v5011
        %v5013 = vsel %vm414, %v4967, 0.0
        %v5014 = vadd.f32 %v5012, %v5013
        %v5015 = vsel %vm414, %v4969, 0.0
        %v5016 = vadd.f32 %v5014, %v5015
        %v5017 = vsel %vm414, %v4971, 0.0
        %v5018 = vadd.f32 %v5016, %v5017
        %v5019 = vsel %vm414, %v4973, 0.0
        %v5020 = vadd.f32 %v5018, %v5019
        %v5021 = vsel %vm414, %v4975, 0.0
        %v5022 = vadd.f32 %v5020, %v5021
        %v5023 = vsel %vm414, %v4977, 0.0
        %v5024 = vadd.f32 %v5022, %v5023
        %v5025 = vsel %vm414, %v4979, 0.0
        %v5026 = vadd.f32 %v5024, %v5025
        %v5027 = vsel %vm414, %v4981, 0.0
        %v5028 = vadd.f32 %v5026, %v5027
        %v5029 = vsel %vm414, %v4983, 0.0
        %v5030 = vadd.f32 %v5028, %v5029
        %v5031 = vsel %vm414, %v4985, 0.0
        %v5032 = vadd.f32 %v5030, %v5031
        %v5033 = vsel %vm414, %v4987, 0.0
        %v5034 = vadd.f32 %v5032, %v5033
        %5035 = vadd.xlane.f32.xlu0 %v5034
        %v5036 = vpop.xlane.xlu0 %5035
        %v5037 = vrot.slane %v5036, 4
        %v5038 = vadd.f32 %v5036, %v5037
        %v5039 = vrot.slane %v5038, 2
        %v5040 = vadd.f32 %v5038, %v5039
        %v5041 = vrot.slane %v5040, 1
        %v5042 = vadd.f32 %v5040, %v5041
        %s5043 = vtos %v5042
        %s5044 = sadd.f32 %s4891, %s5043
        %s5045 = scalar_lea.smem [#allocation7], 260
        %5046 = sst [smem:[%s5045]] %s5044
        // Predicated region
        $region41: #{tpu_custom_call.1} parent=27 // pred_check
          %p5047 = pneg %p78
        $region42: #{tpu_custom_call.1} parent=27 // pred_check_branch
          %5049 = sbr.rel (%p5047) target = $region44
        $region43: #{tpu_custom_call.1} parent=27 // pred_region
          %s5051 = ssub.s32 64, 64
          %5052 = vsyncadd [#allocation4], %s5051
          %5055 = dma.smem_to_hbm [#allocation7], 64, %s2, [#allocation4]
        $region44: #{tpu_custom_call.1} parent=27 // pred_fallthru
          _
        // Predicated region
        $region45: #{tpu_custom_call.1} parent=27 // pred_check
          %p5056 = pneg %p78
        $region46: #{tpu_custom_call.1} parent=27 // pred_check_branch
          %5058 = sbr.rel (%p5056) target = $region48
        $region47: #{tpu_custom_call.1} parent=27 // pred_region
          %5059 = dma.done [#allocation4], 64
        $region48: #{tpu_custom_call.1} parent=27 // pred_fallthru
          _
        %5060 = sfence
      $region28: #{tpu_custom_call.1} parent=5 // pred_fallthru
        _
      %p5061 = scmp.le.s32.totalorder 2, %s13
      // Predicated region
      $region49: #{tpu_custom_call.1} parent=5 // pred_check
        %p5062 = pneg %p5061
      $region50: #{tpu_custom_call.1} parent=5 // pred_check_branch
        %5064 = sbr.rel (%p5062) target = $region52
      $region51: #{tpu_custom_call.1} parent=5 // pred_region
        %s5065 = ssub.s32 %s13, 2
      $region52: #{tpu_custom_call.1} parent=5 // pred_fallthru
        _
    $region6: #{tpu_custom_call.1} parent=1 // loop_footer
      %s17 = sadd.s32 1, %s13
    $region7: #{tpu_custom_call.1} parent=1 // loop_footer_branch
      %12 = sbr.rel target = $region3
    $region8: #{tpu_custom_call.1} parent=1 // loop_exit
      _
    %5066 = vsyncpa [#allocation3], 1
    %s5067 = scalar_lea.sflag [#allocation3], 1
    %5068 = vsyncpa %s5067, 1
    %5069 = vsyncpa [#allocation6], 1
    %5070 = vsyncpa [#allocation4], 1
    %s5071 = scalar_lea.sflag [#allocation4], 1
    %5072 = vsyncpa %s5071, 1

</llo_original>
